<compile_context>
chip_gen: v6e
topology: v6e:2x2x1
jax: 0.10.0
libtpu: 0.0.40
codegen_flags: <defaults>
</compile_context>

<pallas_src>
import math

import numpy as np
import jax
import jax.numpy as jnp
from jax.experimental import pallas as pl
from jax.experimental.pallas import tpu as pltpu

HIGHEST = jax.lax.Precision.HIGHEST


# ----------------------------------------------------------------------------
# Fused kernel: one block of Nb images per grid step.
#   x_ref : (Nb*H, Kin)   bf16  row-flat [t | td_even | td_odd] per image row
#   w1_ref: (4, Kin, Wm)  bf16  folded conv1 weights [even/off0, even/off1,
#                               odd/off0, odd/off1]  (ConvTranspose folded in)
#   b1_ref: (1, Wm)       f32   conv1 bias (+ folded up-bias), row-tiled
#   w2_ref: (3, Wm, Wo)   bf16  conv2 block-Toeplitz weights
#   b2_ref: (1, Wo)       f32
#   o_ref : (2, Nb*H, Wo)       parity-major output rows
#                               (last 2 rows of each image are padding)
# ----------------------------------------------------------------------------
def _fused_up_kernel(x_ref, w1_ref, b1_ref, w2_ref, b2_ref, o_ref):
    M = x_ref.shape[0]          # Nb * H
    Wm = w1_ref.shape[2]
    Wo = w2_ref.shape[2]
    f32 = jnp.float32

    x = x_ref[...]              # (M, Kin) bf16

    def up1(v):
        # v[r] <- v[r+1] (cyclic).  The wrap / cross-image rows only feed the
        # per-image padding rows, which are never stored as valid output.
        return pltpu.roll(v, shift=M - 1, axis=0)

    # Hoisted bias broadcasts (accumulator init).
    b1 = jnp.broadcast_to(b1_ref[...], (M, Wm))
    b2 = jnp.broadcast_to(b2_ref[...], (M, Wo))

    # --- conv1 (3x3 valid) with the ConvTranspose folded into its weights:
    #     4 MXU dots, K = Kin, M = Nb*H.  Outputs split by row parity.
    y1e = jnp.maximum(
        b1
        + jnp.dot(x, w1_ref[0], preferred_element_type=f32)
        + up1(jnp.dot(x, w1_ref[1], preferred_element_type=f32)), 0.0)
    y1o = jnp.maximum(
        b1
        + jnp.dot(x, w1_ref[2], preferred_element_type=f32)
        + up1(jnp.dot(x, w1_ref[3], preferred_element_type=f32)), 0.0)

    y1e_b = y1e.astype(w2_ref.dtype)
    y1o_b = y1o.astype(w2_ref.dtype)

    # --- conv2 (3x3 valid): 6 MXU dots, K = Wm.
    z_e0 = jnp.dot(y1e_b, w2_ref[0], preferred_element_type=f32)
    z_e1 = jnp.dot(y1e_b, w2_ref[1], preferred_element_type=f32)
    z_e2 = jnp.dot(y1e_b, w2_ref[2], preferred_element_type=f32)
    z_o0 = jnp.dot(y1o_b, w2_ref[0], preferred_element_type=f32)
    z_o1 = jnp.dot(y1o_b, w2_ref[1], preferred_element_type=f32)
    z_o2 = jnp.dot(y1o_b, w2_ref[2], preferred_element_type=f32)

    o_e = jnp.maximum(b2 + z_e0 + z_o1 + up1(z_e2), 0.0)       # even output rows
    o_o = jnp.maximum(b2 + z_o0 + up1(z_e1 + z_o2), 0.0)       # odd  output rows

    # Two dense block stores (no masked single-row / strided stores).
    o_ref[0] = o_e.astype(o_ref.dtype)
    o_ref[1] = o_o.astype(o_ref.dtype)


# ----------------------------------------------------------------------------
# Wrapper-side derived weight operands (tiny, weight-only, exact).
# ----------------------------------------------------------------------------
def _upsample_matmul_weights(up_w, W):
    """ConvTranspose2d(k=2,s=2) in row-flat form.

    up_w: (in_c, out_c, 2, 2) (PyTorch layout).  Returns M of shape
    (2, W*in_c, 2W*out_c) with M[kh, w*in_c+ci, (2w+kw)*out_c+oc] =
    up_w[ci, oc, kh, kw], so (t_row_flat @ M[kh])[h] is upsampled row 2h+kh.
    """
    in_c, out_c = up_w.shape[0], up_w.shape[1]
    w = np.arange(W)[:, None, None]
    q = np.arange(2 * W)[None, :, None]
    kw = np.arange(2)[None, None, :]
    scatter = jnp.asarray((q == 2 * w + kw).astype(np.float32))     # (W, 2W, 2)
    m = jnp.einsum("iokw,WQw->kWiQo", up_w, scatter, precision=HIGHEST)
    return m.reshape(2, W * in_c, 2 * W * out_c)


def _conv3x3_toeplitz(w_hwio, w_in, w_out):
    """3x3 valid conv in row-flat form as 3 block-Toeplitz matmuls.

    w_hwio: (3, 3, C, Cm).  Returns T of shape (3, w_in*C, w_out*Cm) with
    T[dy, q*C+c, j*Cm+m] = w_hwio[dy, q-j, c, m] for 0 <= q-j < 3 (else 0),
    so y_flat[i] = sum_dy x_flat[i+dy, :] @ T[dy].
    """
    C, Cm = w_hwio.shape[2], w_hwio.shape[3]
    q = np.arange(w_in)[:, None, None]
    j = np.arange(w_out)[None, :, None]
    dx = np.arange(3)[None, None, :]
    select = jnp.asarray((q == j + dx).astype(np.float32))          # (w_in, w_out, 3)
    t = jnp.einsum("yxcm,qjx->yqcjm", w_hwio, select, precision=HIGHEST)
    return t.reshape(3, w_in * C, w_out * Cm)


def center_crop_nhwc(x, size):
    # int(round(...)) matches torchvision CenterCrop for even differences.
    H, W = x.shape[1], x.shape[2]
    top = int(round((H - size) / 2.0))
    left = int(round((W - size) / 2.0))
    return x[:, top:top + size, left:left + size, :]


def up_forward(params, t, td):
    """t: (N, H, W, in_c) NHWC, td: (N, Htd, Wtd, in_c - out_c) NHWC."""
    N, H, W, in_c = t.shape
    assert H == W, "CenterCrop(len(t[0,0,:])) implies square feature maps"
    out_c = params["up_w"].shape[1]
    mid_c = params["c1_w"].shape[-1]
    skip = in_c - out_c
    Hu, Wu = 2 * H, 2 * W              # upsampled / concat spatial size
    Ho1, Wo1 = Hu - 2, Wu - 2          # conv1 output spatial size
    Ho2, Wo2 = Ho1 - 2, Wo1 - 2        # conv2 output spatial size
    Qh = Ho2 // 2                      # valid output rows per parity per image

    Kin = W * in_c + 2 * Wu * skip     # [t | td_even | td_odd] lane width
    Wm = Wo1 * mid_c
    Wo = Wo2 * out_c

    # ---- activations: static crop + parity split + lane concat (tiny) -----
    td_c = center_crop_nhwc(td, Hu)                            # (N, Hu, Hu, skip)
    td_pair = td_c.reshape(N, Hu, Wu * skip).reshape(N, H, 2, Wu * skip)
    t_flat = t.reshape(N, H, W * in_c)
    xcat = jnp.concatenate(
        [t_flat, td_pair[:, :, 0, :], td_pair[:, :, 1, :]], axis=-1)   # (N, H, Kin)
    xcat2 = xcat.reshape(N * H, Kin).astype(jnp.bfloat16)

    # ---- derived weights (tiny, weight-only, f32 HIGHEST, then bf16) ------
    upm = _upsample_matmul_weights(params["up_w"], W)          # (2, W*in_c, Wu*out_c)
    upb_row = jnp.tile(params["up_b"], Wu).reshape(1, Wu * out_c)
    w1s = _conv3x3_toeplitz(params["c1_w"][:, :, :skip, :], Wu, Wo1)   # skip branch
    w1u = _conv3x3_toeplitz(params["c1_w"][:, :, skip:, :], Wu, Wo1)   # up branch

    mm = lambda a, b: jnp.matmul(a, b, precision=HIGHEST)
    # ConvTranspose folded into conv1 up-branch, split by output-row parity
    # and by which t-row (offset 0 / +1) it consumes.
    w_a = mm(upm[0], w1u[0]) + mm(upm[1], w1u[1])   # even rows, t[p]
    w_b = mm(upm[0], w1u[2])                        # even rows, t[p+1]
    w_c = mm(upm[1], w1u[0])                        # odd  rows, t[p]
    w_d = mm(upm[0], w1u[1]) + mm(upm[1], w1u[2])   # odd  rows, t[p+1]
    zeros = jnp.zeros_like(w1s[0])
    w1 = jnp.stack([
        jnp.concatenate([w_a, w1s[0], w1s[1]], axis=0),   # even rows, row offset 0
        jnp.concatenate([w_b, w1s[2], zeros], axis=0),    # even rows, row offset 1
        jnp.concatenate([w_c, zeros, w1s[0]], axis=0),    # odd rows,  row offset 0
        jnp.concatenate([w_d, w1s[1], w1s[2]], axis=0),   # odd rows,  row offset 1
    ]).astype(jnp.bfloat16)                               # (4, Kin, Wm)

    b1_eff = (jnp.tile(params["c1_b"], Wo1).reshape(1, Wm)
              + mm(upb_row, w1u[0] + w1u[1] + w1u[2]))    # up-bias folded in, f32
    w2 = _conv3x3_toeplitz(params["c2_w"], Wo1, Wo2).astype(jnp.bfloat16)  # (3, Wm, Wo)
    b2_row = jnp.tile(params["c2_b"], Wo2).reshape(1, Wo)

    # ---- batch blocking: Nb images per grid step (M = Nb*H per dot) -------
    Nb = math.gcd(N, 8)
    Mb = Nb * H

    out2 = pl.pallas_call(
        _fused_up_kernel,
        out_shape=jax.ShapeDtypeStruct((2, N * H, Wo), t.dtype),
        grid=(N // Nb,),
        in_specs=[
            pl.BlockSpec((Mb, Kin), lambda i: (i, 0)),
            # Constant-index weight operands (tiny here; at real UNet sizes
            # mark these pl.Buffered(1) and set vmem_limit_bytes).
            pl.BlockSpec((4, Kin, Wm), lambda i: (0, 0, 0)),
            pl.BlockSpec((1, Wm), lambda i: (0, 0)),
            pl.BlockSpec((3, Wm, Wo), lambda i: (0, 0, 0)),
            pl.BlockSpec((1, Wo), lambda i: (0, 0)),
        ],
        out_specs=pl.BlockSpec((2, Mb, Wo), lambda i: (0, i, 0)),
        compiler_params=pltpu.CompilerParams(
            dimension_semantics=("parallel",)),   # independent batch blocks
    )(xcat2, w1, b1_eff, w2, b2_row)

    # Un-interleave parity rows and drop the 2 padding rows per image
    # (tiny, input/output-side XLA metadata + copy, not inter-stage glue).
    out = out2.reshape(2, N, H, Wo).transpose(1, 2, 0, 3)[:, :Qh]   # (N, Qh, 2, Wo)
    return out.reshape(N, Ho2, Wo2, out_c)


# ----------------------------------------------------------------------------
# Pure-JAX reference (HIGHEST precision) for correctness checking.
# ----------------------------------------------------------------------------
def _ref_conv3x3_relu(x, w_hwio, b):
    y = jax.lax.conv_general_dilated(
        x, w_hwio, (1, 1), "VALID",
        dimension_numbers=("NHWC", "HWIO", "NHWC"), precision=HIGHEST)
    return jnp.maximum(y + b, 0.0)


def reference_forward(params, t, td):
    N, H, W, Cin = t.shape
    w = params["up_w"]
    Cout = w.shape[1]
    z = jnp.einsum("nhwc,cokl->nhwklo", t, w, precision=HIGHEST) + params["up_b"]
    t_up = jnp.transpose(z, (0, 1, 3, 2, 4, 5)).reshape(N, 2 * H, 2 * W, Cout)
    td_c = center_crop_nhwc(td, t_up.shape[1])
    x = jnp.concatenate([td_c, t_up], axis=-1)
    x = _ref_conv3x3_relu(x, params["c1_w"], params["c1_b"])
    x = _ref_conv3x3_relu(x, params["c2_w"], params["c2_b"])
    return x


if __name__ == "__main__":
    # Module config: up(in_channels=8, out_channels=4) -> mid = round(12/2) = 6
    in_c, out_c = 8, 4
    mid_c = int(round((out_c + in_c) / 2))

    key = jax.random.PRNGKey(0)
    ks = jax.random.split(key, 8)
    params = {
        # nn.ConvTranspose2d weight layout: (in_c, out_c, kH, kW)
        "up_w": 0.1 * jax.random.normal(ks[0], (in_c, out_c, 2, 2), jnp.float32),
        "up_b": 0.05 * jax.random.normal(ks[1], (out_c,), jnp.float32),
        # Conv weights created directly in HWIO
        "c1_w": 0.1 * jax.random.normal(ks[2], (3, 3, in_c, mid_c), jnp.float32),
        "c1_b": 0.05 * jax.random.normal(ks[3], (mid_c,), jnp.float32),
        "c2_w": 0.1 * jax.random.normal(ks[4], (3, 3, mid_c, out_c), jnp.float32),
        "c2_b": 0.05 * jax.random.normal(ks[5], (out_c,), jnp.float32),
    }

    # PyTorch-equivalent NCHW shapes: t = (2, 8, 8, 8), td = (2, 4, 20, 20)
    N, H = 2, 8
    t = jax.random.normal(ks[6], (N, H, H, in_c), jnp.float32)              # NHWC
    td = jax.random.normal(ks[7], (N, 20, 20, in_c - out_c), jnp.float32)   # NHWC

    fwd = jax.jit(up_forward)
    out = jax.block_until_ready(fwd(params, t, td))

    expected_shape = (N, 2 * H - 4, 2 * H - 4, out_c)   # (2, 12, 12, 4)
    assert out.shape == expected_shape, (out.shape, expected_shape)

    ref = jax.block_until_ready(jax.jit(reference_forward)(params, t, td))
    # Kernel uses bf16 operands with f32 accumulation (per perf review); the
    # reference uses f32/HIGHEST, hence the bf16-level tolerance.
    np.testing.assert_allclose(np.asarray(out), np.asarray(ref),
                               rtol=2e-2, atol=2e-2)

    print("KERNEL_OK")
</pallas_src>

<mosaic_0001>
module attributes {stable_mosaic.version = 11 : i64} {
  func.func @_fused_up_kernel(%arg0: i32, %arg1: memref<16x192xbf16, #tpu.memory_space<vmem>>, %arg2: memref<4x192x84xbf16, #tpu.memory_space<vmem>>, %arg3: memref<1x84xf32, #tpu.memory_space<vmem>>, %arg4: memref<3x84x48xbf16, #tpu.memory_space<vmem>>, %arg5: memref<1x48xf32, #tpu.memory_space<vmem>>, %arg6: memref<2x16x48xf32, #tpu.memory_space<vmem>>) attributes {dimension_semantics = [#tpu.dimension_semantics<parallel>], iteration_bounds = array<i64: 1>, scalar_prefetch = 0 : i64, scratch_operands = 0 : i64, tpu.core_type = #tpu.core_type<tc>, window_params = [{transform_indices = @transform_0, window_bounds = array<i64: 16, 192>}, {pipeline_mode = #tpu.pipeline_mode<synchronous>, transform_indices = @transform_1, window_bounds = array<i64: 4, 192, 84>}, {pipeline_mode = #tpu.pipeline_mode<synchronous>, transform_indices = @transform_2, window_bounds = array<i64: 1, 84>}, {pipeline_mode = #tpu.pipeline_mode<synchronous>, transform_indices = @transform_3, window_bounds = array<i64: 3, 84, 48>}, {pipeline_mode = #tpu.pipeline_mode<synchronous>, transform_indices = @transform_4, window_bounds = array<i64: 1, 48>}, {transform_indices = @transform_5, window_bounds = array<i64: 2, 16, 48>}]} {
    %c0 = arith.constant 0 : index
    %c0_0 = arith.constant 0 : index
    %0 = vector.load %arg1[%c0, %c0_0] : memref<16x192xbf16, #tpu.memory_space<vmem>>, vector<16x192xbf16>
    %c0_1 = arith.constant 0 : index
    %c0_2 = arith.constant 0 : index
    %1 = vector.load %arg3[%c0_1, %c0_2] : memref<1x84xf32, #tpu.memory_space<vmem>>, vector<1x84xf32>
    %2 = vector.shape_cast %1 : vector<1x84xf32> to vector<1x84xf32>
    %3 = vector.broadcast %2 : vector<1x84xf32> to vector<16x84xf32>
    %c0_3 = arith.constant 0 : index
    %c0_4 = arith.constant 0 : index
    %4 = vector.load %arg5[%c0_3, %c0_4] : memref<1x48xf32, #tpu.memory_space<vmem>>, vector<1x48xf32>
    %5 = vector.shape_cast %4 : vector<1x48xf32> to vector<1x48xf32>
    %6 = vector.broadcast %5 : vector<1x48xf32> to vector<16x48xf32>
    %c0_5 = arith.constant 0 : index
    %c0_6 = arith.constant 0 : index
    %c0_7 = arith.constant 0 : index
    %7 = vector.load %arg2[%c0_5, %c0_6, %c0_7] : memref<4x192x84xbf16, #tpu.memory_space<vmem>>, vector<1x192x84xbf16>
    %8 = vector.shape_cast %7 : vector<1x192x84xbf16> to vector<192x84xbf16>
    %cst = arith.constant dense<0.000000e+00> : vector<16x84xf32>
    %9 = tpu.matmul %0, %8, %cst {dimension_numbers = #tpu.dot_dimension_numbers<[1], [0], [0], [1], [0, 0, 1, 1], [], []>} : vector<16x192xbf16>, vector<192x84xbf16>, vector<16x84xf32> -> vector<16x84xf32>
    %10 = arith.addf %3, %9 : vector<16x84xf32>
    %c1 = arith.constant 1 : index
    %c0_8 = arith.constant 0 : index
    %c0_9 = arith.constant 0 : index
    %11 = vector.load %arg2[%c1, %c0_8, %c0_9] : memref<4x192x84xbf16, #tpu.memory_space<vmem>>, vector<1x192x84xbf16>
    %12 = vector.shape_cast %11 : vector<1x192x84xbf16> to vector<192x84xbf16>
    %cst_10 = arith.constant dense<0.000000e+00> : vector<16x84xf32>
    %13 = tpu.matmul %0, %12, %cst_10 {dimension_numbers = #tpu.dot_dimension_numbers<[1], [0], [0], [1], [0, 0, 1, 1], [], []>} : vector<16x192xbf16>, vector<192x84xbf16>, vector<16x84xf32> -> vector<16x84xf32>
    %c15_i32 = arith.constant 15 : i32
    %14 = tpu.dynamic_rotate %13 by %c15_i32 dim 0 : vector<16x84xf32>, i32 -> vector<16x84xf32>
    %15 = arith.addf %10, %14 : vector<16x84xf32>
    %cst_11 = arith.constant 0.000000e+00 : f32
    %16 = vector.broadcast %cst_11 : f32 to vector<16x84xf32>
    %17 = arith.maximumf %15, %16 : vector<16x84xf32>
    %c2 = arith.constant 2 : index
    %c0_12 = arith.constant 0 : index
    %c0_13 = arith.constant 0 : index
    %18 = vector.load %arg2[%c2, %c0_12, %c0_13] : memref<4x192x84xbf16, #tpu.memory_space<vmem>>, vector<1x192x84xbf16>
    %19 = vector.shape_cast %18 : vector<1x192x84xbf16> to vector<192x84xbf16>
    %cst_14 = arith.constant dense<0.000000e+00> : vector<16x84xf32>
    %20 = tpu.matmul %0, %19, %cst_14 {dimension_numbers = #tpu.dot_dimension_numbers<[1], [0], [0], [1], [0, 0, 1, 1], [], []>} : vector<16x192xbf16>, vector<192x84xbf16>, vector<16x84xf32> -> vector<16x84xf32>
    %21 = arith.addf %3, %20 : vector<16x84xf32>
    %c3 = arith.constant 3 : index
    %c0_15 = arith.constant 0 : index
    %c0_16 = arith.constant 0 : index
    %22 = vector.load %arg2[%c3, %c0_15, %c0_16] : memref<4x192x84xbf16, #tpu.memory_space<vmem>>, vector<1x192x84xbf16>
    %23 = vector.shape_cast %22 : vector<1x192x84xbf16> to vector<192x84xbf16>
    %cst_17 = arith.constant dense<0.000000e+00> : vector<16x84xf32>
    %24 = tpu.matmul %0, %23, %cst_17 {dimension_numbers = #tpu.dot_dimension_numbers<[1], [0], [0], [1], [0, 0, 1, 1], [], []>} : vector<16x192xbf16>, vector<192x84xbf16>, vector<16x84xf32> -> vector<16x84xf32>
    %c15_i32_18 = arith.constant 15 : i32
    %25 = tpu.dynamic_rotate %24 by %c15_i32_18 dim 0 : vector<16x84xf32>, i32 -> vector<16x84xf32>
    %26 = arith.addf %21, %25 : vector<16x84xf32>
    %cst_19 = arith.constant 0.000000e+00 : f32
    %27 = vector.broadcast %cst_19 : f32 to vector<16x84xf32>
    %28 = arith.maximumf %26, %27 : vector<16x84xf32>
    %29 = arith.truncf %17 : vector<16x84xf32> to vector<16x84xbf16>
    %30 = arith.truncf %28 : vector<16x84xf32> to vector<16x84xbf16>
    %c0_20 = arith.constant 0 : index
    %c0_21 = arith.constant 0 : index
    %c0_22 = arith.constant 0 : index
    %31 = vector.load %arg4[%c0_20, %c0_21, %c0_22] : memref<3x84x48xbf16, #tpu.memory_space<vmem>>, vector<1x84x48xbf16>
    %32 = vector.shape_cast %31 : vector<1x84x48xbf16> to vector<84x48xbf16>
    %cst_23 = arith.constant dense<0.000000e+00> : vector<16x48xf32>
    %33 = tpu.matmul %29, %32, %cst_23 {dimension_numbers = #tpu.dot_dimension_numbers<[1], [0], [0], [1], [0, 0, 1, 1], [], []>} : vector<16x84xbf16>, vector<84x48xbf16>, vector<16x48xf32> -> vector<16x48xf32>
    %c1_24 = arith.constant 1 : index
    %c0_25 = arith.constant 0 : index
    %c0_26 = arith.constant 0 : index
    %34 = vector.load %arg4[%c1_24, %c0_25, %c0_26] : memref<3x84x48xbf16, #tpu.memory_space<vmem>>, vector<1x84x48xbf16>
    %35 = vector.shape_cast %34 : vector<1x84x48xbf16> to vector<84x48xbf16>
    %cst_27 = arith.constant dense<0.000000e+00> : vector<16x48xf32>
    %36 = tpu.matmul %29, %35, %cst_27 {dimension_numbers = #tpu.dot_dimension_numbers<[1], [0], [0], [1], [0, 0, 1, 1], [], []>} : vector<16x84xbf16>, vector<84x48xbf16>, vector<16x48xf32> -> vector<16x48xf32>
    %c2_28 = arith.constant 2 : index
    %c0_29 = arith.constant 0 : index
    %c0_30 = arith.constant 0 : index
    %37 = vector.load %arg4[%c2_28, %c0_29, %c0_30] : memref<3x84x48xbf16, #tpu.memory_space<vmem>>, vector<1x84x48xbf16>
    %38 = vector.shape_cast %37 : vector<1x84x48xbf16> to vector<84x48xbf16>
    %cst_31 = arith.constant dense<0.000000e+00> : vector<16x48xf32>
    %39 = tpu.matmul %29, %38, %cst_31 {dimension_numbers = #tpu.dot_dimension_numbers<[1], [0], [0], [1], [0, 0, 1, 1], [], []>} : vector<16x84xbf16>, vector<84x48xbf16>, vector<16x48xf32> -> vector<16x48xf32>
    %c0_32 = arith.constant 0 : index
    %c0_33 = arith.constant 0 : index
    %c0_34 = arith.constant 0 : index
    %40 = vector.load %arg4[%c0_32, %c0_33, %c0_34] : memref<3x84x48xbf16, #tpu.memory_space<vmem>>, vector<1x84x48xbf16>
    %41 = vector.shape_cast %40 : vector<1x84x48xbf16> to vector<84x48xbf16>
    %cst_35 = arith.constant dense<0.000000e+00> : vector<16x48xf32>
    %42 = tpu.matmul %30, %41, %cst_35 {dimension_numbers = #tpu.dot_dimension_numbers<[1], [0], [0], [1], [0, 0, 1, 1], [], []>} : vector<16x84xbf16>, vector<84x48xbf16>, vector<16x48xf32> -> vector<16x48xf32>
    %c1_36 = arith.constant 1 : index
    %c0_37 = arith.constant 0 : index
    %c0_38 = arith.constant 0 : index
    %43 = vector.load %arg4[%c1_36, %c0_37, %c0_38] : memref<3x84x48xbf16, #tpu.memory_space<vmem>>, vector<1x84x48xbf16>
    %44 = vector.shape_cast %43 : vector<1x84x48xbf16> to vector<84x48xbf16>
    %cst_39 = arith.constant dense<0.000000e+00> : vector<16x48xf32>
    %45 = tpu.matmul %30, %44, %cst_39 {dimension_numbers = #tpu.dot_dimension_numbers<[1], [0], [0], [1], [0, 0, 1, 1], [], []>} : vector<16x84xbf16>, vector<84x48xbf16>, vector<16x48xf32> -> vector<16x48xf32>
    %c2_40 = arith.constant 2 : index
    %c0_41 = arith.constant 0 : index
    %c0_42 = arith.constant 0 : index
    %46 = vector.load %arg4[%c2_40, %c0_41, %c0_42] : memref<3x84x48xbf16, #tpu.memory_space<vmem>>, vector<1x84x48xbf16>
    %47 = vector.shape_cast %46 : vector<1x84x48xbf16> to vector<84x48xbf16>
    %cst_43 = arith.constant dense<0.000000e+00> : vector<16x48xf32>
    %48 = tpu.matmul %30, %47, %cst_43 {dimension_numbers = #tpu.dot_dimension_numbers<[1], [0], [0], [1], [0, 0, 1, 1], [], []>} : vector<16x84xbf16>, vector<84x48xbf16>, vector<16x48xf32> -> vector<16x48xf32>
    %49 = arith.addf %6, %33 : vector<16x48xf32>
    %50 = arith.addf %49, %45 : vector<16x48xf32>
    %c15_i32_44 = arith.constant 15 : i32
    %51 = tpu.dynamic_rotate %39 by %c15_i32_44 dim 0 : vector<16x48xf32>, i32 -> vector<16x48xf32>
    %52 = arith.addf %50, %51 : vector<16x48xf32>
    %cst_45 = arith.constant 0.000000e+00 : f32
    %53 = vector.broadcast %cst_45 : f32 to vector<16x48xf32>
    %54 = arith.maximumf %52, %53 : vector<16x48xf32>
    %55 = arith.addf %6, %42 : vector<16x48xf32>
    %56 = arith.addf %36, %48 : vector<16x48xf32>
    %c15_i32_46 = arith.constant 15 : i32
    %57 = tpu.dynamic_rotate %56 by %c15_i32_46 dim 0 : vector<16x48xf32>, i32 -> vector<16x48xf32>
    %58 = arith.addf %55, %57 : vector<16x48xf32>
    %cst_47 = arith.constant 0.000000e+00 : f32
    %59 = vector.broadcast %cst_47 : f32 to vector<16x48xf32>
    %60 = arith.maximumf %58, %59 : vector<16x48xf32>
    %c0_48 = arith.constant 0 : index
    %c0_49 = arith.constant 0 : index
    %c0_50 = arith.constant 0 : index
    %61 = vector.load %arg6[%c0_48, %c0_49, %c0_50] : memref<2x16x48xf32, #tpu.memory_space<vmem>>, vector<1x16x48xf32>
    %62 = vector.shape_cast %61 : vector<1x16x48xf32> to vector<16x48xf32>
    %63 = vector.shape_cast %54 : vector<16x48xf32> to vector<1x16x48xf32>
    tpu.vector_store %arg6[%c0_48, %c0_49, %c0_50], %63 {strides = array<i32>} : memref<2x16x48xf32, #tpu.memory_space<vmem>>, vector<1x16x48xf32>,
    %c1_51 = arith.constant 1 : index
    %c0_52 = arith.constant 0 : index
    %c0_53 = arith.constant 0 : index
    %64 = vector.load %arg6[%c1_51, %c0_52, %c0_53] : memref<2x16x48xf32, #tpu.memory_space<vmem>>, vector<1x16x48xf32>
    %65 = vector.shape_cast %64 : vector<1x16x48xf32> to vector<16x48xf32>
    %66 = vector.shape_cast %60 : vector<16x48xf32> to vector<1x16x48xf32>
    tpu.vector_store %arg6[%c1_51, %c0_52, %c0_53], %66 {strides = array<i32>} : memref<2x16x48xf32, #tpu.memory_space<vmem>>, vector<1x16x48xf32>,
    return
  }
  func.func @transform_0(%arg0: i32) -> (i32, i32) {
    %c0_i32 = arith.constant 0 : i32
    %c0_i32_0 = arith.constant 0 : i32
    return %arg0, %c0_i32 : i32, i32
  }
  func.func @transform_1(%arg0: i32) -> (i32, i32, i32) {
    %c0_i32 = arith.constant 0 : i32
    %c0_i32_0 = arith.constant 0 : i32
    %c0_i32_1 = arith.constant 0 : i32
    %c0_i32_2 = arith.constant 0 : i32
    return %c0_i32, %c0_i32_0, %c0_i32_1 : i32, i32, i32
  }
  func.func @transform_2(%arg0: i32) -> (i32, i32) {
    %c0_i32 = arith.constant 0 : i32
    %c0_i32_0 = arith.constant 0 : i32
    %c0_i32_1 = arith.constant 0 : i32
    return %c0_i32, %c0_i32_0 : i32, i32
  }
  func.func @transform_3(%arg0: i32) -> (i32, i32, i32) {
    %c0_i32 = arith.constant 0 : i32
    %c0_i32_0 = arith.constant 0 : i32
    %c0_i32_1 = arith.constant 0 : i32
    %c0_i32_2 = arith.constant 0 : i32
    return %c0_i32, %c0_i32_0, %c0_i32_1 : i32, i32, i32
  }
  func.func @transform_4(%arg0: i32) -> (i32, i32) {
    %c0_i32 = arith.constant 0 : i32
    %c0_i32_0 = arith.constant 0 : i32
    %c0_i32_1 = arith.constant 0 : i32
    return %c0_i32, %c0_i32_0 : i32, i32
  }
  func.func @transform_5(%arg0: i32) -> (i32, i32, i32) {
    %c0_i32 = arith.constant 0 : i32
    %c0_i32_0 = arith.constant 0 : i32
    %c0_i32_1 = arith.constant 0 : i32
    return %c0_i32, %arg0, %c0_i32_0 : i32, i32, i32
  }
}

</mosaic_0001>

<llo_original>
// kernel: squeeze.25
$region0: #{squeeze.25}
  %s0 = inlined_call_operand.vmem [shape: f32[1,8,8,16,4], index: 0, kind: input, shape index: {}]
  %s1 = inlined_call_operand.vmem [shape: f32[64,64], index: 1, kind: output, shape index: {}]
  %v2 = vld [vmem:[%s0] ss:$8 sm:$0xf]
  %v3 = vld [vmem:[%s0] ss:$8 sm:$0xf0]
  %vm4 = vcmask 1047556
  %v5 = vsel %vm4, %v3, %v2
  %vm6 = vcmask 64512
  %7 = vst.msk [vmem:[%s1] sm:$0xff] %vm6, %v5
  %s8 = scalar_lea.vmem %s0, 64
  %v9 = vld [vmem:[%s8] ss:$8 sm:$0xf]
  %s10 = scalar_lea.vmem %s0, 64
  %v11 = vld [vmem:[%s10] ss:$8 sm:$0xf0]
  %vm12 = vcmask 1047556
  %v13 = vsel %vm12, %v11, %v9
  %vm14 = vcmask 64512
  %s15 = scalar_lea.vmem %s1, 8
  %16 = vst.msk [vmem:[%s15] sm:$0xff] %vm14, %v13
  %s17 = scalar_lea.vmem %s0, 128
  %v18 = vld [vmem:[%s17] ss:$8 sm:$0xf]
  %s19 = scalar_lea.vmem %s0, 128
  %v20 = vld [vmem:[%s19] ss:$8 sm:$0xf0]
  %vm21 = vcmask 1047556
  %v22 = vsel %vm21, %v20, %v18
  %vm23 = vcmask 64512
  %s24 = scalar_lea.vmem %s1, 16
  %25 = vst.msk [vmem:[%s24] sm:$0xff] %vm23, %v22
  %s26 = scalar_lea.vmem %s0, 192
  %v27 = vld [vmem:[%s26] ss:$8 sm:$0xf]
  %s28 = scalar_lea.vmem %s0, 192
  %v29 = vld [vmem:[%s28] ss:$8 sm:$0xf0]
  %vm30 = vcmask 1047556
  %v31 = vsel %vm30, %v29, %v27
  %vm32 = vcmask 64512
  %s33 = scalar_lea.vmem %s1, 24
  %34 = vst.msk [vmem:[%s33] sm:$0xff] %vm32, %v31
  %s35 = scalar_lea.vmem %s0, 256
  %v36 = vld [vmem:[%s35] ss:$8 sm:$0xf]
  %s37 = scalar_lea.vmem %s0, 256
  %v38 = vld [vmem:[%s37] ss:$8 sm:$0xf0]
  %vm39 = vcmask 1047556
  %v40 = vsel %vm39, %v38, %v36
  %vm41 = vcmask 64512
  %s42 = scalar_lea.vmem %s1, 32
  %43 = vst.msk [vmem:[%s42] sm:$0xff] %vm41, %v40
  %s44 = scalar_lea.vmem %s0, 320
  %v45 = vld [vmem:[%s44] ss:$8 sm:$0xf]
  %s46 = scalar_lea.vmem %s0, 320
  %v47 = vld [vmem:[%s46] ss:$8 sm:$0xf0]
  %vm48 = vcmask 1047556
  %v49 = vsel %vm48, %v47, %v45
  %vm50 = vcmask 64512
  %s51 = scalar_lea.vmem %s1, 40
  %52 = vst.msk [vmem:[%s51] sm:$0xff] %vm50, %v49
  %s53 = scalar_lea.vmem %s0, 384
  %v54 = vld [vmem:[%s53] ss:$8 sm:$0xf]
  %s55 = scalar_lea.vmem %s0, 384
  %v56 = vld [vmem:[%s55] ss:$8 sm:$0xf0]
  %vm57 = vcmask 1047556
  %v58 = vsel %vm57, %v56, %v54
  %vm59 = vcmask 64512
  %s60 = scalar_lea.vmem %s1, 48
  %61 = vst.msk [vmem:[%s60] sm:$0xff] %vm59, %v58
  %s62 = scalar_lea.vmem %s0, 448
  %v63 = vld [vmem:[%s62] ss:$8 sm:$0xf]
  %s64 = scalar_lea.vmem %s0, 448
  %v65 = vld [vmem:[%s64] ss:$8 sm:$0xf0]
  %vm66 = vcmask 1047556
  %v67 = vsel %vm66, %v65, %v63
  %vm68 = vcmask 64512
  %s69 = scalar_lea.vmem %s1, 56
  %70 = vst.msk [vmem:[%s69] sm:$0xff] %vm68, %v67
  %s71 = scalar_lea.vmem %s0, 7
  %v72 = vld [vmem:[%s71] ss:$8 sm:$0xf]
  %s73 = scalar_lea.vmem %s0, 7
  %v74 = vld [vmem:[%s73] ss:$8 sm:$0xf0]
  %vm75 = vcmask 1047556
  %v76 = vsel %vm75, %v74, %v72
  %77 = vrot.lane.b32.xlu0 %v76, 56
  %v78 = vpop.permute.xlu0 %77
  %vm79 = vcmask 523712
  %80 = vst.msk [vmem:[%s1] sm:$0xff] %vm79, %v78
  %s81 = scalar_lea.vmem %s0, 263
  %v82 = vld [vmem:[%s81] ss:$8 sm:$0xf]
  %s83 = scalar_lea.vmem %s0, 263
  %v84 = vld [vmem:[%s83] ss:$8 sm:$0xf0]
  %vm85 = vcmask 1047556
  %v86 = vsel %vm85, %v84, %v82
  %87 = vrot.lane.b32.xlu0 %v86, 56
  %v88 = vpop.permute.xlu0 %87
  %vm89 = vcmask 523712
  %s90 = scalar_lea.vmem %s1, 32
  %91 = vst.msk [vmem:[%s90] sm:$0xff] %vm89, %v88
  %s92 = scalar_lea.vmem %s0, 71
  %v93 = vld [vmem:[%s92] ss:$8 sm:$0xf]
  %s94 = scalar_lea.vmem %s0, 71
  %v95 = vld [vmem:[%s94] ss:$8 sm:$0xf0]
  %vm96 = vcmask 1047556
  %v97 = vsel %vm96, %v95, %v93
  %98 = vrot.lane.b32.xlu0 %v97, 56
  %v99 = vpop.permute.xlu0 %98
  %vm100 = vcmask 523712
  %s101 = scalar_lea.vmem %s1, 8
  %102 = vst.msk [vmem:[%s101] sm:$0xff] %vm100, %v99
  %s103 = scalar_lea.vmem %s0, 327
  %v104 = vld [vmem:[%s103] ss:$8 sm:$0xf]
  %s105 = scalar_lea.vmem %s0, 327
  %v106 = vld [vmem:[%s105] ss:$8 sm:$0xf0]
  %vm107 = vcmask 1047556
  %v108 = vsel %vm107, %v106, %v104
  %109 = vrot.lane.b32.xlu0 %v108, 56
  %v110 = vpop.permute.xlu0 %109
  %vm111 = vcmask 523712
  %s112 = scalar_lea.vmem %s1, 40
  %113 = vst.msk [vmem:[%s112] sm:$0xff] %vm111, %v110
  %s114 = scalar_lea.vmem %s0, 135
  %v115 = vld [vmem:[%s114] ss:$8 sm:$0xf]
  %s116 = scalar_lea.vmem %s0, 135
  %v117 = vld [vmem:[%s116] ss:$8 sm:$0xf0]
  %vm118 = vcmask 1047556
  %v119 = vsel %vm118, %v117, %v115
  %120 = vrot.lane.b32.xlu0 %v119, 56
  %v121 = vpop.permute.xlu0 %120
  %vm122 = vcmask 523712
  %s123 = scalar_lea.vmem %s1, 16
  %124 = vst.msk [vmem:[%s123] sm:$0xff] %vm122, %v121
  %s125 = scalar_lea.vmem %s0, 391
  %v126 = vld [vmem:[%s125] ss:$8 sm:$0xf]
  %s127 = scalar_lea.vmem %s0, 391
  %v128 = vld [vmem:[%s127] ss:$8 sm:$0xf0]
  %vm129 = vcmask 1047556
  %v130 = vsel %vm129, %v128, %v126
  %131 = vrot.lane.b32.xlu0 %v130, 56
  %v132 = vpop.permute.xlu0 %131
  %vm133 = vcmask 523712
  %s134 = scalar_lea.vmem %s1, 48
  %135 = vst.msk [vmem:[%s134] sm:$0xff] %vm133, %v132
  %s136 = scalar_lea.vmem %s0, 199
  %v137 = vld [vmem:[%s136] ss:$8 sm:$0xf]
  %s138 = scalar_lea.vmem %s0, 199
  %v139 = vld [vmem:[%s138] ss:$8 sm:$0xf0]
  %vm140 = vcmask 1047556
  %v141 = vsel %vm140, %v139, %v137
  %142 = vrot.lane.b32.xlu0 %v141, 56
  %v143 = vpop.permute.xlu0 %142
  %vm144 = vcmask 523712
  %s145 = scalar_lea.vmem %s1, 24
  %146 = vst.msk [vmem:[%s145] sm:$0xff] %vm144, %v143
  %s147 = scalar_lea.vmem %s0, 455
  %v148 = vld [vmem:[%s147] ss:$8 sm:$0xf]
  %s149 = scalar_lea.vmem %s0, 455
  %v150 = vld [vmem:[%s149] ss:$8 sm:$0xf0]
  %vm151 = vcmask 1047556
  %v152 = vsel %vm151, %v150, %v148
  %153 = vrot.lane.b32.xlu0 %v152, 56
  %v154 = vpop.permute.xlu0 %153
  %vm155 = vcmask 523712
  %s156 = scalar_lea.vmem %s1, 56
  %157 = vst.msk [vmem:[%s156] sm:$0xff] %vm155, %v154
  %s158 = scalar_lea.vmem %s0, 6
  %v159 = vld [vmem:[%s158] ss:$8 sm:$0xf]
  %s160 = scalar_lea.vmem %s0, 6
  %v161 = vld [vmem:[%s160] ss:$8 sm:$0xf0]
  %vm162 = vcmask 1047556
  %v163 = vsel %vm162, %v161, %v159
  %164 = vrot.lane.b32.xlu0 %v163, 48
  %v165 = vpop.permute.xlu0 %164
  %vm166 = vcmask 458112
  %167 = vst.msk [vmem:[%s1] sm:$0xff] %vm166, %v165
  %s168 = scalar_lea.vmem %s0, 262
  %v169 = vld [vmem:[%s168] ss:$8 sm:$0xf]
  %s170 = scalar_lea.vmem %s0, 262
  %v171 = vld [vmem:[%s170] ss:$8 sm:$0xf0]
  %vm172 = vcmask 1047556
  %v173 = vsel %vm172, %v171, %v169
  %174 = vrot.lane.b32.xlu0 %v173, 48
  %v175 = vpop.permute.xlu0 %174
  %vm176 = vcmask 458112
  %s177 = scalar_lea.vmem %s1, 32
  %178 = vst.msk [vmem:[%s177] sm:$0xff] %vm176, %v175
  %s179 = scalar_lea.vmem %s0, 70
  %v180 = vld [vmem:[%s179] ss:$8 sm:$0xf]
  %s181 = scalar_lea.vmem %s0, 70
  %v182 = vld [vmem:[%s181] ss:$8 sm:$0xf0]
  %vm183 = vcmask 1047556
  %v184 = vsel %vm183, %v182, %v180
  %185 = vrot.lane.b32.xlu0 %v184, 48
  %v186 = vpop.permute.xlu0 %185
  %vm187 = vcmask 458112
  %s188 = scalar_lea.vmem %s1, 8
  %189 = vst.msk [vmem:[%s188] sm:$0xff] %vm187, %v186
  %s190 = scalar_lea.vmem %s0, 326
  %v191 = vld [vmem:[%s190] ss:$8 sm:$0xf]
  %s192 = scalar_lea.vmem %s0, 326
  %v193 = vld [vmem:[%s192] ss:$8 sm:$0xf0]
  %vm194 = vcmask 1047556
  %v195 = vsel %vm194, %v193, %v191
  %196 = vrot.lane.b32.xlu0 %v195, 48
  %v197 = vpop.permute.xlu0 %196
  %vm198 = vcmask 458112
  %s199 = scalar_lea.vmem %s1, 40
  %200 = vst.msk [vmem:[%s199] sm:$0xff] %vm198, %v197
  %s201 = scalar_lea.vmem %s0, 134
  %v202 = vld [vmem:[%s201] ss:$8 sm:$0xf]
  %s203 = scalar_lea.vmem %s0, 134
  %v204 = vld [vmem:[%s203] ss:$8 sm:$0xf0]
  %vm205 = vcmask 1047556
  %v206 = vsel %vm205, %v204, %v202
  %207 = vrot.lane.b32.xlu0 %v206, 48
  %v208 = vpop.permute.xlu0 %207
  %vm209 = vcmask 458112
  %s210 = scalar_lea.vmem %s1, 16
  %211 = vst.msk [vmem:[%s210] sm:$0xff] %vm209, %v208
  %s212 = scalar_lea.vmem %s0, 390
  %v213 = vld [vmem:[%s212] ss:$8 sm:$0xf]
  %s214 = scalar_lea.vmem %s0, 390
  %v215 = vld [vmem:[%s214] ss:$8 sm:$0xf0]
  %vm216 = vcmask 1047556
  %v217 = vsel %vm216, %v215, %v213
  %218 = vrot.lane.b32.xlu0 %v217, 48
  %v219 = vpop.permute.xlu0 %218
  %vm220 = vcmask 458112
  %s221 = scalar_lea.vmem %s1, 48
  %222 = vst.msk [vmem:[%s221] sm:$0xff] %vm220, %v219
  %s223 = scalar_lea.vmem %s0, 198
  %v224 = vld [vmem:[%s223] ss:$8 sm:$0xf]
  %s225 = scalar_lea.vmem %s0, 198
  %v226 = vld [vmem:[%s225] ss:$8 sm:$0xf0]
  %vm227 = vcmask 1047556
  %v228 = vsel %vm227, %v226, %v224
  %229 = vrot.lane.b32.xlu0 %v228, 48
  %v230 = vpop.permute.xlu0 %229
  %vm231 = vcmask 458112
  %s232 = scalar_lea.vmem %s1, 24
  %233 = vst.msk [vmem:[%s232] sm:$0xff] %vm231, %v230
  %s234 = scalar_lea.vmem %s0, 454
  %v235 = vld [vmem:[%s234] ss:$8 sm:$0xf]
  %s236 = scalar_lea.vmem %s0, 454
  %v237 = vld [vmem:[%s236] ss:$8 sm:$0xf0]
  %vm238 = vcmask 1047556
  %v239 = vsel %vm238, %v237, %v235
  %240 = vrot.lane.b32.xlu0 %v239, 48
  %v241 = vpop.permute.xlu0 %240
  %vm242 = vcmask 458112
  %s243 = scalar_lea.vmem %s1, 56
  %244 = vst.msk [vmem:[%s243] sm:$0xff] %vm242, %v241
  %s245 = scalar_lea.vmem %s0, 5
  %v246 = vld [vmem:[%s245] ss:$8 sm:$0xf]
  %s247 = scalar_lea.vmem %s0, 5
  %v248 = vld [vmem:[%s247] ss:$8 sm:$0xf0]
  %vm249 = vcmask 1047556
  %v250 = vsel %vm249, %v248, %v246
  %251 = vrot.lane.b32.xlu0 %v250, 40
  %v252 = vpop.permute.xlu0 %251
  %vm253 = vcmask 392512
  %254 = vst.msk [vmem:[%s1] sm:$0xff] %vm253, %v252
  %s255 = scalar_lea.vmem %s0, 261
  %v256 = vld [vmem:[%s255] ss:$8 sm:$0xf]
  %s257 = scalar_lea.vmem %s0, 261
  %v258 = vld [vmem:[%s257] ss:$8 sm:$0xf0]
  %vm259 = vcmask 1047556
  %v260 = vsel %vm259, %v258, %v256
  %261 = vrot.lane.b32.xlu0 %v260, 40
  %v262 = vpop.permute.xlu0 %261
  %vm263 = vcmask 392512
  %s264 = scalar_lea.vmem %s1, 32
  %265 = vst.msk [vmem:[%s264] sm:$0xff] %vm263, %v262
  %s266 = scalar_lea.vmem %s0, 69
  %v267 = vld [vmem:[%s266] ss:$8 sm:$0xf]
  %s268 = scalar_lea.vmem %s0, 69
  %v269 = vld [vmem:[%s268] ss:$8 sm:$0xf0]
  %vm270 = vcmask 1047556
  %v271 = vsel %vm270, %v269, %v267
  %272 = vrot.lane.b32.xlu0 %v271, 40
  %v273 = vpop.permute.xlu0 %272
  %vm274 = vcmask 392512
  %s275 = scalar_lea.vmem %s1, 8
  %276 = vst.msk [vmem:[%s275] sm:$0xff] %vm274, %v273
  %s277 = scalar_lea.vmem %s0, 325
  %v278 = vld [vmem:[%s277] ss:$8 sm:$0xf]
  %s279 = scalar_lea.vmem %s0, 325
  %v280 = vld [vmem:[%s279] ss:$8 sm:$0xf0]
  %vm281 = vcmask 1047556
  %v282 = vsel %vm281, %v280, %v278
  %283 = vrot.lane.b32.xlu0 %v282, 40
  %v284 = vpop.permute.xlu0 %283
  %vm285 = vcmask 392512
  %s286 = scalar_lea.vmem %s1, 40
  %287 = vst.msk [vmem:[%s286] sm:$0xff] %vm285, %v284
  %s288 = scalar_lea.vmem %s0, 133
  %v289 = vld [vmem:[%s288] ss:$8 sm:$0xf]
  %s290 = scalar_lea.vmem %s0, 133
  %v291 = vld [vmem:[%s290] ss:$8 sm:$0xf0]
  %vm292 = vcmask 1047556
  %v293 = vsel %vm292, %v291, %v289
  %294 = vrot.lane.b32.xlu0 %v293, 40
  %v295 = vpop.permute.xlu0 %294
  %vm296 = vcmask 392512
  %s297 = scalar_lea.vmem %s1, 16
  %298 = vst.msk [vmem:[%s297] sm:$0xff] %vm296, %v295
  %s299 = scalar_lea.vmem %s0, 389
  %v300 = vld [vmem:[%s299] ss:$8 sm:$0xf]
  %s301 = scalar_lea.vmem %s0, 389
  %v302 = vld [vmem:[%s301] ss:$8 sm:$0xf0]
  %vm303 = vcmask 1047556
  %v304 = vsel %vm303, %v302, %v300
  %305 = vrot.lane.b32.xlu0 %v304, 40
  %v306 = vpop.permute.xlu0 %305
  %vm307 = vcmask 392512
  %s308 = scalar_lea.vmem %s1, 48
  %309 = vst.msk [vmem:[%s308] sm:$0xff] %vm307, %v306
  %s310 = scalar_lea.vmem %s0, 197
  %v311 = vld [vmem:[%s310] ss:$8 sm:$0xf]
  %s312 = scalar_lea.vmem %s0, 197
  %v313 = vld [vmem:[%s312] ss:$8 sm:$0xf0]
  %vm314 = vcmask 1047556
  %v315 = vsel %vm314, %v313, %v311
  %316 = vrot.lane.b32.xlu0 %v315, 40
  %v317 = vpop.permute.xlu0 %316
  %vm318 = vcmask 392512
  %s319 = scalar_lea.vmem %s1, 24
  %320 = vst.msk [vmem:[%s319] sm:$0xff] %vm318, %v317
  %s321 = scalar_lea.vmem %s0, 453
  %v322 = vld [vmem:[%s321] ss:$8 sm:$0xf]
  %s323 = scalar_lea.vmem %s0, 453
  %v324 = vld [vmem:[%s323] ss:$8 sm:$0xf0]
  %vm325 = vcmask 1047556
  %v326 = vsel %vm325, %v324, %v322
  %327 = vrot.lane.b32.xlu0 %v326, 40
  %v328 = vpop.permute.xlu0 %327
  %vm329 = vcmask 392512
  %s330 = scalar_lea.vmem %s1, 56
  %331 = vst.msk [vmem:[%s330] sm:$0xff] %vm329, %v328
  %s332 = scalar_lea.vmem %s0, 4
  %v333 = vld [vmem:[%s332] ss:$8 sm:$0xf]
  %s334 = scalar_lea.vmem %s0, 4
  %v335 = vld [vmem:[%s334] ss:$8 sm:$0xf0]
  %vm336 = vcmask 1047556
  %v337 = vsel %vm336, %v335, %v333
  %338 = vrot.lane.b32.xlu0 %v337, 32
  %v339 = vpop.permute.xlu0 %338
  %vm340 = vcmask 326912
  %341 = vst.msk [vmem:[%s1] sm:$0xff] %vm340, %v339
  %s342 = scalar_lea.vmem %s0, 260
  %v343 = vld [vmem:[%s342] ss:$8 sm:$0xf]
  %s344 = scalar_lea.vmem %s0, 260
  %v345 = vld [vmem:[%s344] ss:$8 sm:$0xf0]
  %vm346 = vcmask 1047556
  %v347 = vsel %vm346, %v345, %v343
  %348 = vrot.lane.b32.xlu0 %v347, 32
  %v349 = vpop.permute.xlu0 %348
  %vm350 = vcmask 326912
  %s351 = scalar_lea.vmem %s1, 32
  %352 = vst.msk [vmem:[%s351] sm:$0xff] %vm350, %v349
  %s353 = scalar_lea.vmem %s0, 68
  %v354 = vld [vmem:[%s353] ss:$8 sm:$0xf]
  %s355 = scalar_lea.vmem %s0, 68
  %v356 = vld [vmem:[%s355] ss:$8 sm:$0xf0]
  %vm357 = vcmask 1047556
  %v358 = vsel %vm357, %v356, %v354
  %359 = vrot.lane.b32.xlu0 %v358, 32
  %v360 = vpop.permute.xlu0 %359
  %vm361 = vcmask 326912
  %s362 = scalar_lea.vmem %s1, 8
  %363 = vst.msk [vmem:[%s362] sm:$0xff] %vm361, %v360
  %s364 = scalar_lea.vmem %s0, 324
  %v365 = vld [vmem:[%s364] ss:$8 sm:$0xf]
  %s366 = scalar_lea.vmem %s0, 324
  %v367 = vld [vmem:[%s366] ss:$8 sm:$0xf0]
  %vm368 = vcmask 1047556
  %v369 = vsel %vm368, %v367, %v365
  %370 = vrot.lane.b32.xlu0 %v369, 32
  %v371 = vpop.permute.xlu0 %370
  %vm372 = vcmask 326912
  %s373 = scalar_lea.vmem %s1, 40
  %374 = vst.msk [vmem:[%s373] sm:$0xff] %vm372, %v371
  %s375 = scalar_lea.vmem %s0, 132
  %v376 = vld [vmem:[%s375] ss:$8 sm:$0xf]
  %s377 = scalar_lea.vmem %s0, 132
  %v378 = vld [vmem:[%s377] ss:$8 sm:$0xf0]
  %vm379 = vcmask 1047556
  %v380 = vsel %vm379, %v378, %v376
  %381 = vrot.lane.b32.xlu0 %v380, 32
  %v382 = vpop.permute.xlu0 %381
  %vm383 = vcmask 326912
  %s384 = scalar_lea.vmem %s1, 16
  %385 = vst.msk [vmem:[%s384] sm:$0xff] %vm383, %v382
  %s386 = scalar_lea.vmem %s0, 388
  %v387 = vld [vmem:[%s386] ss:$8 sm:$0xf]
  %s388 = scalar_lea.vmem %s0, 388
  %v389 = vld [vmem:[%s388] ss:$8 sm:$0xf0]
  %vm390 = vcmask 1047556
  %v391 = vsel %vm390, %v389, %v387
  %392 = vrot.lane.b32.xlu0 %v391, 32
  %v393 = vpop.permute.xlu0 %392
  %vm394 = vcmask 326912
  %s395 = scalar_lea.vmem %s1, 48
  %396 = vst.msk [vmem:[%s395] sm:$0xff] %vm394, %v393
  %s397 = scalar_lea.vmem %s0, 196
  %v398 = vld [vmem:[%s397] ss:$8 sm:$0xf]
  %s399 = scalar_lea.vmem %s0, 196
  %v400 = vld [vmem:[%s399] ss:$8 sm:$0xf0]
  %vm401 = vcmask 1047556
  %v402 = vsel %vm401, %v400, %v398
  %403 = vrot.lane.b32.xlu0 %v402, 32
  %v404 = vpop.permute.xlu0 %403
  %vm405 = vcmask 326912
  %s406 = scalar_lea.vmem %s1, 24
  %407 = vst.msk [vmem:[%s406] sm:$0xff] %vm405, %v404
  %s408 = scalar_lea.vmem %s0, 452
  %v409 = vld [vmem:[%s408] ss:$8 sm:$0xf]
  %s410 = scalar_lea.vmem %s0, 452
  %v411 = vld [vmem:[%s410] ss:$8 sm:$0xf0]
  %vm412 = vcmask 1047556
  %v413 = vsel %vm412, %v411, %v409
  %414 = vrot.lane.b32.xlu0 %v413, 32
  %v415 = vpop.permute.xlu0 %414
  %vm416 = vcmask 326912
  %s417 = scalar_lea.vmem %s1, 56
  %418 = vst.msk [vmem:[%s417] sm:$0xff] %vm416, %v415
  %s419 = scalar_lea.vmem %s0, 3
  %v420 = vld [vmem:[%s419] ss:$8 sm:$0xf]
  %s421 = scalar_lea.vmem %s0, 3
  %v422 = vld [vmem:[%s421] ss:$8 sm:$0xf0]
  %vm423 = vcmask 1047556
  %v424 = vsel %vm423, %v422, %v420
  %425 = vrot.lane.b32.xlu0 %v424, 24
  %v426 = vpop.permute.xlu0 %425
  %vm427 = vcmask 261312
  %428 = vst.msk [vmem:[%s1] sm:$0xff] %vm427, %v426
  %s429 = scalar_lea.vmem %s0, 259
  %v430 = vld [vmem:[%s429] ss:$8 sm:$0xf]
  %s431 = scalar_lea.vmem %s0, 259
  %v432 = vld [vmem:[%s431] ss:$8 sm:$0xf0]
  %vm433 = vcmask 1047556
  %v434 = vsel %vm433, %v432, %v430
  %435 = vrot.lane.b32.xlu0 %v434, 24
  %v436 = vpop.permute.xlu0 %435
  %vm437 = vcmask 261312
  %s438 = scalar_lea.vmem %s1, 32
  %439 = vst.msk [vmem:[%s438] sm:$0xff] %vm437, %v436
  %s440 = scalar_lea.vmem %s0, 67
  %v441 = vld [vmem:[%s440] ss:$8 sm:$0xf]
  %s442 = scalar_lea.vmem %s0, 67
  %v443 = vld [vmem:[%s442] ss:$8 sm:$0xf0]
  %vm444 = vcmask 1047556
  %v445 = vsel %vm444, %v443, %v441
  %446 = vrot.lane.b32.xlu0 %v445, 24
  %v447 = vpop.permute.xlu0 %446
  %vm448 = vcmask 261312
  %s449 = scalar_lea.vmem %s1, 8
  %450 = vst.msk [vmem:[%s449] sm:$0xff] %vm448, %v447
  %s451 = scalar_lea.vmem %s0, 323
  %v452 = vld [vmem:[%s451] ss:$8 sm:$0xf]
  %s453 = scalar_lea.vmem %s0, 323
  %v454 = vld [vmem:[%s453] ss:$8 sm:$0xf0]
  %vm455 = vcmask 1047556
  %v456 = vsel %vm455, %v454, %v452
  %457 = vrot.lane.b32.xlu0 %v456, 24
  %v458 = vpop.permute.xlu0 %457
  %vm459 = vcmask 261312
  %s460 = scalar_lea.vmem %s1, 40
  %461 = vst.msk [vmem:[%s460] sm:$0xff] %vm459, %v458
  %s462 = scalar_lea.vmem %s0, 131
  %v463 = vld [vmem:[%s462] ss:$8 sm:$0xf]
  %s464 = scalar_lea.vmem %s0, 131
  %v465 = vld [vmem:[%s464] ss:$8 sm:$0xf0]
  %vm466 = vcmask 1047556
  %v467 = vsel %vm466, %v465, %v463
  %468 = vrot.lane.b32.xlu0 %v467, 24
  %v469 = vpop.permute.xlu0 %468
  %vm470 = vcmask 261312
  %s471 = scalar_lea.vmem %s1, 16
  %472 = vst.msk [vmem:[%s471] sm:$0xff] %vm470, %v469
  %s473 = scalar_lea.vmem %s0, 387
  %v474 = vld [vmem:[%s473] ss:$8 sm:$0xf]
  %s475 = scalar_lea.vmem %s0, 387
  %v476 = vld [vmem:[%s475] ss:$8 sm:$0xf0]
  %vm477 = vcmask 1047556
  %v478 = vsel %vm477, %v476, %v474
  %479 = vrot.lane.b32.xlu0 %v478, 24
  %v480 = vpop.permute.xlu0 %479
  %vm481 = vcmask 261312
  %s482 = scalar_lea.vmem %s1, 48
  %483 = vst.msk [vmem:[%s482] sm:$0xff] %vm481, %v480
  %s484 = scalar_lea.vmem %s0, 195
  %v485 = vld [vmem:[%s484] ss:$8 sm:$0xf]
  %s486 = scalar_lea.vmem %s0, 195
  %v487 = vld [vmem:[%s486] ss:$8 sm:$0xf0]
  %vm488 = vcmask 1047556
  %v489 = vsel %vm488, %v487, %v485
  %490 = vrot.lane.b32.xlu0 %v489, 24
  %v491 = vpop.permute.xlu0 %490
  %vm492 = vcmask 261312
  %s493 = scalar_lea.vmem %s1, 24
  %494 = vst.msk [vmem:[%s493] sm:$0xff] %vm492, %v491
  %s495 = scalar_lea.vmem %s0, 451
  %v496 = vld [vmem:[%s495] ss:$8 sm:$0xf]
  %s497 = scalar_lea.vmem %s0, 451
  %v498 = vld [vmem:[%s497] ss:$8 sm:$0xf0]
  %vm499 = vcmask 1047556
  %v500 = vsel %vm499, %v498, %v496
  %501 = vrot.lane.b32.xlu0 %v500, 24
  %v502 = vpop.permute.xlu0 %501
  %vm503 = vcmask 261312
  %s504 = scalar_lea.vmem %s1, 56
  %505 = vst.msk [vmem:[%s504] sm:$0xff] %vm503, %v502
  %s506 = scalar_lea.vmem %s0, 2
  %v507 = vld [vmem:[%s506] ss:$8 sm:$0xf]
  %s508 = scalar_lea.vmem %s0, 2
  %v509 = vld [vmem:[%s508] ss:$8 sm:$0xf0]
  %vm510 = vcmask 1047556
  %v511 = vsel %vm510, %v509, %v507
  %512 = vrot.lane.b32.xlu0 %v511, 16
  %v513 = vpop.permute.xlu0 %512
  %vm514 = vcmask 195712
  %515 = vst.msk [vmem:[%s1] sm:$0xff] %vm514, %v513
  %s516 = scalar_lea.vmem %s0, 258
  %v517 = vld [vmem:[%s516] ss:$8 sm:$0xf]
  %s518 = scalar_lea.vmem %s0, 258
  %v519 = vld [vmem:[%s518] ss:$8 sm:$0xf0]
  %vm520 = vcmask 1047556
  %v521 = vsel %vm520, %v519, %v517
  %522 = vrot.lane.b32.xlu0 %v521, 16
  %v523 = vpop.permute.xlu0 %522
  %vm524 = vcmask 195712
  %s525 = scalar_lea.vmem %s1, 32
  %526 = vst.msk [vmem:[%s525] sm:$0xff] %vm524, %v523
  %s527 = scalar_lea.vmem %s0, 66
  %v528 = vld [vmem:[%s527] ss:$8 sm:$0xf]
  %s529 = scalar_lea.vmem %s0, 66
  %v530 = vld [vmem:[%s529] ss:$8 sm:$0xf0]
  %vm531 = vcmask 1047556
  %v532 = vsel %vm531, %v530, %v528
  %533 = vrot.lane.b32.xlu0 %v532, 16
  %v534 = vpop.permute.xlu0 %533
  %vm535 = vcmask 195712
  %s536 = scalar_lea.vmem %s1, 8
  %537 = vst.msk [vmem:[%s536] sm:$0xff] %vm535, %v534
  %s538 = scalar_lea.vmem %s0, 322
  %v539 = vld [vmem:[%s538] ss:$8 sm:$0xf]
  %s540 = scalar_lea.vmem %s0, 322
  %v541 = vld [vmem:[%s540] ss:$8 sm:$0xf0]
  %vm542 = vcmask 1047556
  %v543 = vsel %vm542, %v541, %v539
  %544 = vrot.lane.b32.xlu0 %v543, 16
  %v545 = vpop.permute.xlu0 %544
  %vm546 = vcmask 195712
  %s547 = scalar_lea.vmem %s1, 40
  %548 = vst.msk [vmem:[%s547] sm:$0xff] %vm546, %v545
  %s549 = scalar_lea.vmem %s0, 130
  %v550 = vld [vmem:[%s549] ss:$8 sm:$0xf]
  %s551 = scalar_lea.vmem %s0, 130
  %v552 = vld [vmem:[%s551] ss:$8 sm:$0xf0]
  %vm553 = vcmask 1047556
  %v554 = vsel %vm553, %v552, %v550
  %555 = vrot.lane.b32.xlu0 %v554, 16
  %v556 = vpop.permute.xlu0 %555
  %vm557 = vcmask 195712
  %s558 = scalar_lea.vmem %s1, 16
  %559 = vst.msk [vmem:[%s558] sm:$0xff] %vm557, %v556
  %s560 = scalar_lea.vmem %s0, 386
  %v561 = vld [vmem:[%s560] ss:$8 sm:$0xf]
  %s562 = scalar_lea.vmem %s0, 386
  %v563 = vld [vmem:[%s562] ss:$8 sm:$0xf0]
  %vm564 = vcmask 1047556
  %v565 = vsel %vm564, %v563, %v561
  %566 = vrot.lane.b32.xlu0 %v565, 16
  %v567 = vpop.permute.xlu0 %566
  %vm568 = vcmask 195712
  %s569 = scalar_lea.vmem %s1, 48
  %570 = vst.msk [vmem:[%s569] sm:$0xff] %vm568, %v567
  %s571 = scalar_lea.vmem %s0, 194
  %v572 = vld [vmem:[%s571] ss:$8 sm:$0xf]
  %s573 = scalar_lea.vmem %s0, 194
  %v574 = vld [vmem:[%s573] ss:$8 sm:$0xf0]
  %vm575 = vcmask 1047556
  %v576 = vsel %vm575, %v574, %v572
  %577 = vrot.lane.b32.xlu0 %v576, 16
  %v578 = vpop.permute.xlu0 %577
  %vm579 = vcmask 195712
  %s580 = scalar_lea.vmem %s1, 24
  %581 = vst.msk [vmem:[%s580] sm:$0xff] %vm579, %v578
  %s582 = scalar_lea.vmem %s0, 450
  %v583 = vld [vmem:[%s582] ss:$8 sm:$0xf]
  %s584 = scalar_lea.vmem %s0, 450
  %v585 = vld [vmem:[%s584] ss:$8 sm:$0xf0]
  %vm586 = vcmask 1047556
  %v587 = vsel %vm586, %v585, %v583
  %588 = vrot.lane.b32.xlu0 %v587, 16
  %v589 = vpop.permute.xlu0 %588
  %vm590 = vcmask 195712
  %s591 = scalar_lea.vmem %s1, 56
  %592 = vst.msk [vmem:[%s591] sm:$0xff] %vm590, %v589
  %s593 = scalar_lea.vmem %s0, 1
  %v594 = vld [vmem:[%s593] ss:$8 sm:$0xf]
  %s595 = scalar_lea.vmem %s0, 1
  %v596 = vld [vmem:[%s595] ss:$8 sm:$0xf0]
  %vm597 = vcmask 1047556
  %v598 = vsel %vm597, %v596, %v594
  %599 = vrot.lane.b32.xlu0 %v598, 8
  %v600 = vpop.permute.xlu0 %599
  %vm601 = vcmask 130112
  %602 = vst.msk [vmem:[%s1] sm:$0xff] %vm601, %v600
  %s603 = scalar_lea.vmem %s0, 257
  %v604 = vld [vmem:[%s603] ss:$8 sm:$0xf]
  %s605 = scalar_lea.vmem %s0, 257
  %v606 = vld [vmem:[%s605] ss:$8 sm:$0xf0]
  %vm607 = vcmask 1047556
  %v608 = vsel %vm607, %v606, %v604
  %609 = vrot.lane.b32.xlu0 %v608, 8
  %v610 = vpop.permute.xlu0 %609
  %vm611 = vcmask 130112
  %s612 = scalar_lea.vmem %s1, 32
  %613 = vst.msk [vmem:[%s612] sm:$0xff] %vm611, %v610
  %s614 = scalar_lea.vmem %s0, 65
  %v615 = vld [vmem:[%s614] ss:$8 sm:$0xf]
  %s616 = scalar_lea.vmem %s0, 65
  %v617 = vld [vmem:[%s616] ss:$8 sm:$0xf0]
  %vm618 = vcmask 1047556
  %v619 = vsel %vm618, %v617, %v615
  %620 = vrot.lane.b32.xlu0 %v619, 8
  %v621 = vpop.permute.xlu0 %620
  %vm622 = vcmask 130112
  %s623 = scalar_lea.vmem %s1, 8
  %624 = vst.msk [vmem:[%s623] sm:$0xff] %vm622, %v621
  %s625 = scalar_lea.vmem %s0, 321
  %v626 = vld [vmem:[%s625] ss:$8 sm:$0xf]
  %s627 = scalar_lea.vmem %s0, 321
  %v628 = vld [vmem:[%s627] ss:$8 sm:$0xf0]
  %vm629 = vcmask 1047556
  %v630 = vsel %vm629, %v628, %v626
  %631 = vrot.lane.b32.xlu0 %v630, 8
  %v632 = vpop.permute.xlu0 %631
  %vm633 = vcmask 130112
  %s634 = scalar_lea.vmem %s1, 40
  %635 = vst.msk [vmem:[%s634] sm:$0xff] %vm633, %v632
  %s636 = scalar_lea.vmem %s0, 129
  %v637 = vld [vmem:[%s636] ss:$8 sm:$0xf]
  %s638 = scalar_lea.vmem %s0, 129
  %v639 = vld [vmem:[%s638] ss:$8 sm:$0xf0]
  %vm640 = vcmask 1047556
  %v641 = vsel %vm640, %v639, %v637
  %642 = vrot.lane.b32.xlu0 %v641, 8
  %v643 = vpop.permute.xlu0 %642
  %vm644 = vcmask 130112
  %s645 = scalar_lea.vmem %s1, 16
  %646 = vst.msk [vmem:[%s645] sm:$0xff] %vm644, %v643
  %s647 = scalar_lea.vmem %s0, 385
  %v648 = vld [vmem:[%s647] ss:$8 sm:$0xf]
  %s649 = scalar_lea.vmem %s0, 385
  %v650 = vld [vmem:[%s649] ss:$8 sm:$0xf0]
  %vm651 = vcmask 1047556
  %v652 = vsel %vm651, %v650, %v648
  %653 = vrot.lane.b32.xlu0 %v652, 8
  %v654 = vpop.permute.xlu0 %653
  %vm655 = vcmask 130112
  %s656 = scalar_lea.vmem %s1, 48
  %657 = vst.msk [vmem:[%s656] sm:$0xff] %vm655, %v654
  %s658 = scalar_lea.vmem %s0, 193
  %v659 = vld [vmem:[%s658] ss:$8 sm:$0xf]
  %s660 = scalar_lea.vmem %s0, 193
  %v661 = vld [vmem:[%s660] ss:$8 sm:$0xf0]
  %vm662 = vcmask 1047556
  %v663 = vsel %vm662, %v661, %v659
  %664 = vrot.lane.b32.xlu0 %v663, 8
  %v665 = vpop.permute.xlu0 %664
  %vm666 = vcmask 130112
  %s667 = scalar_lea.vmem %s1, 24
  %668 = vst.msk [vmem:[%s667] sm:$0xff] %vm666, %v665
  %s669 = scalar_lea.vmem %s0, 449
  %v670 = vld [vmem:[%s669] ss:$8 sm:$0xf]
  %s671 = scalar_lea.vmem %s0, 449
  %v672 = vld [vmem:[%s671] ss:$8 sm:$0xf0]
  %vm673 = vcmask 1047556
  %v674 = vsel %vm673, %v672, %v670
  %675 = vrot.lane.b32.xlu0 %v674, 8
  %v676 = vpop.permute.xlu0 %675
  %vm677 = vcmask 130112
  %s678 = scalar_lea.vmem %s1, 56
  %679 = vst.msk [vmem:[%s678] sm:$0xff] %vm677, %v676

// kernel: squeeze.26
$region0: #{squeeze.26}
  %s0 = inlined_call_operand.vmem [shape: f32[1,16,4,14,6], index: 0, kind: input, shape index: {}]
  %s1 = inlined_call_operand.vmem [shape: f32[64,84], index: 1, kind: output, shape index: {}]
  %s2 = smov 3
  %v3 = vld [vmem:[%s0] ss:$16 sm:%s2]
  %s4 = smov 12
  %v5 = vld [vmem:[%s0] ss:$16 sm:%s4]
  %vm6 = vcmask 1043458
  %v7 = vsel %vm6, %v5, %v3
  %s8 = smov 48
  %v9 = vld [vmem:[%s0] ss:$16 sm:%s8]
  %vm10 = vcmask 1045508
  %v11 = vsel %vm10, %v9, %v7
  %s12 = smov 192
  %v13 = vld [vmem:[%s0] ss:$16 sm:%s12]
  %vm14 = vcmask 1047558
  %v15 = vsel %vm14, %v13, %v11
  %vm16 = vcmask 48128
  %17 = vst.msk [vmem:[%s1] sm:$0xff] %vm16, %v15
  %s18 = scalar_lea.vmem %s0, 128
  %s19 = smov 3
  %v20 = vld [vmem:[%s18] ss:$16 sm:%s19]
  %s21 = scalar_lea.vmem %s0, 128
  %s22 = smov 12
  %v23 = vld [vmem:[%s21] ss:$16 sm:%s22]
  %vm24 = vcmask 1043458
  %v25 = vsel %vm24, %v23, %v20
  %s26 = scalar_lea.vmem %s0, 128
  %s27 = smov 48
  %v28 = vld [vmem:[%s26] ss:$16 sm:%s27]
  %vm29 = vcmask 1045508
  %v30 = vsel %vm29, %v28, %v25
  %s31 = scalar_lea.vmem %s0, 128
  %s32 = smov 192
  %v33 = vld [vmem:[%s31] ss:$16 sm:%s32]
  %vm34 = vcmask 1047558
  %v35 = vsel %vm34, %v33, %v30
  %vm36 = vcmask 48128
  %s37 = scalar_lea.vmem %s1, 8
  %38 = vst.msk [vmem:[%s37] sm:$0xff] %vm36, %v35
  %s39 = scalar_lea.vmem %s0, 256
  %s40 = smov 3
  %v41 = vld [vmem:[%s39] ss:$16 sm:%s40]
  %s42 = scalar_lea.vmem %s0, 256
  %s43 = smov 12
  %v44 = vld [vmem:[%s42] ss:$16 sm:%s43]
  %vm45 = vcmask 1043458
  %v46 = vsel %vm45, %v44, %v41
  %s47 = scalar_lea.vmem %s0, 256
  %s48 = smov 48
  %v49 = vld [vmem:[%s47] ss:$16 sm:%s48]
  %vm50 = vcmask 1045508
  %v51 = vsel %vm50, %v49, %v46
  %s52 = scalar_lea.vmem %s0, 256
  %s53 = smov 192
  %v54 = vld [vmem:[%s52] ss:$16 sm:%s53]
  %vm55 = vcmask 1047558
  %v56 = vsel %vm55, %v54, %v51
  %vm57 = vcmask 48128
  %s58 = scalar_lea.vmem %s1, 16
  %59 = vst.msk [vmem:[%s58] sm:$0xff] %vm57, %v56
  %s60 = scalar_lea.vmem %s0, 384
  %s61 = smov 3
  %v62 = vld [vmem:[%s60] ss:$16 sm:%s61]
  %s63 = scalar_lea.vmem %s0, 384
  %s64 = smov 12
  %v65 = vld [vmem:[%s63] ss:$16 sm:%s64]
  %vm66 = vcmask 1043458
  %v67 = vsel %vm66, %v65, %v62
  %s68 = scalar_lea.vmem %s0, 384
  %s69 = smov 48
  %v70 = vld [vmem:[%s68] ss:$16 sm:%s69]
  %vm71 = vcmask 1045508
  %v72 = vsel %vm71, %v70, %v67
  %s73 = scalar_lea.vmem %s0, 384
  %s74 = smov 192
  %v75 = vld [vmem:[%s73] ss:$16 sm:%s74]
  %vm76 = vcmask 1047558
  %v77 = vsel %vm76, %v75, %v72
  %vm78 = vcmask 48128
  %s79 = scalar_lea.vmem %s1, 24
  %80 = vst.msk [vmem:[%s79] sm:$0xff] %vm78, %v77
  %s81 = scalar_lea.vmem %s0, 512
  %s82 = smov 3
  %v83 = vld [vmem:[%s81] ss:$16 sm:%s82]
  %s84 = scalar_lea.vmem %s0, 512
  %s85 = smov 12
  %v86 = vld [vmem:[%s84] ss:$16 sm:%s85]
  %vm87 = vcmask 1043458
  %v88 = vsel %vm87, %v86, %v83
  %s89 = scalar_lea.vmem %s0, 512
  %s90 = smov 48
  %v91 = vld [vmem:[%s89] ss:$16 sm:%s90]
  %vm92 = vcmask 1045508
  %v93 = vsel %vm92, %v91, %v88
  %s94 = scalar_lea.vmem %s0, 512
  %s95 = smov 192
  %v96 = vld [vmem:[%s94] ss:$16 sm:%s95]
  %vm97 = vcmask 1047558
  %v98 = vsel %vm97, %v96, %v93
  %vm99 = vcmask 48128
  %s100 = scalar_lea.vmem %s1, 32
  %101 = vst.msk [vmem:[%s100] sm:$0xff] %vm99, %v98
  %s102 = scalar_lea.vmem %s0, 640
  %s103 = smov 3
  %v104 = vld [vmem:[%s102] ss:$16 sm:%s103]
  %s105 = scalar_lea.vmem %s0, 640
  %s106 = smov 12
  %v107 = vld [vmem:[%s105] ss:$16 sm:%s106]
  %vm108 = vcmask 1043458
  %v109 = vsel %vm108, %v107, %v104
  %s110 = scalar_lea.vmem %s0, 640
  %s111 = smov 48
  %v112 = vld [vmem:[%s110] ss:$16 sm:%s111]
  %vm113 = vcmask 1045508
  %v114 = vsel %vm113, %v112, %v109
  %s115 = scalar_lea.vmem %s0, 640
  %s116 = smov 192
  %v117 = vld [vmem:[%s115] ss:$16 sm:%s116]
  %vm118 = vcmask 1047558
  %v119 = vsel %vm118, %v117, %v114
  %vm120 = vcmask 48128
  %s121 = scalar_lea.vmem %s1, 40
  %122 = vst.msk [vmem:[%s121] sm:$0xff] %vm120, %v119
  %s123 = scalar_lea.vmem %s0, 768
  %s124 = smov 3
  %v125 = vld [vmem:[%s123] ss:$16 sm:%s124]
  %s126 = scalar_lea.vmem %s0, 768
  %s127 = smov 12
  %v128 = vld [vmem:[%s126] ss:$16 sm:%s127]
  %vm129 = vcmask 1043458
  %v130 = vsel %vm129, %v128, %v125
  %s131 = scalar_lea.vmem %s0, 768
  %s132 = smov 48
  %v133 = vld [vmem:[%s131] ss:$16 sm:%s132]
  %vm134 = vcmask 1045508
  %v135 = vsel %vm134, %v133, %v130
  %s136 = scalar_lea.vmem %s0, 768
  %s137 = smov 192
  %v138 = vld [vmem:[%s136] ss:$16 sm:%s137]
  %vm139 = vcmask 1047558
  %v140 = vsel %vm139, %v138, %v135
  %vm141 = vcmask 48128
  %s142 = scalar_lea.vmem %s1, 48
  %143 = vst.msk [vmem:[%s142] sm:$0xff] %vm141, %v140
  %s144 = scalar_lea.vmem %s0, 896
  %s145 = smov 3
  %v146 = vld [vmem:[%s144] ss:$16 sm:%s145]
  %s147 = scalar_lea.vmem %s0, 896
  %s148 = smov 12
  %v149 = vld [vmem:[%s147] ss:$16 sm:%s148]
  %vm150 = vcmask 1043458
  %v151 = vsel %vm150, %v149, %v146
  %s152 = scalar_lea.vmem %s0, 896
  %s153 = smov 48
  %v154 = vld [vmem:[%s152] ss:$16 sm:%s153]
  %vm155 = vcmask 1045508
  %v156 = vsel %vm155, %v154, %v151
  %s157 = scalar_lea.vmem %s0, 896
  %s158 = smov 192
  %v159 = vld [vmem:[%s157] ss:$16 sm:%s158]
  %vm160 = vcmask 1047558
  %v161 = vsel %vm160, %v159, %v156
  %vm162 = vcmask 48128
  %s163 = scalar_lea.vmem %s1, 56
  %164 = vst.msk [vmem:[%s163] sm:$0xff] %vm162, %v161
  %s165 = scalar_lea.vmem %s0, 13
  %s166 = smov 3
  %v167 = vld [vmem:[%s165] ss:$16 sm:%s166]
  %s168 = scalar_lea.vmem %s0, 13
  %s169 = smov 12
  %v170 = vld [vmem:[%s168] ss:$16 sm:%s169]
  %vm171 = vcmask 1043458
  %v172 = vsel %vm171, %v170, %v167
  %s173 = scalar_lea.vmem %s0, 13
  %s174 = smov 48
  %v175 = vld [vmem:[%s173] ss:$16 sm:%s174]
  %vm176 = vcmask 1045508
  %v177 = vsel %vm176, %v175, %v172
  %s178 = scalar_lea.vmem %s0, 13
  %s179 = smov 192
  %v180 = vld [vmem:[%s178] ss:$16 sm:%s179]
  %vm181 = vcmask 1047558
  %v182 = vsel %vm181, %v180, %v177
  %183 = vrot.lane.b32.xlu0 %v182, 78
  %v184 = vpop.permute.xlu0 %183
  %vm185 = vcmask 687728
  %186 = vst.msk [vmem:[%s1] sm:$0xff] %vm185, %v184
  %s187 = scalar_lea.vmem %s0, 525
  %s188 = smov 3
  %v189 = vld [vmem:[%s187] ss:$16 sm:%s188]
  %s190 = scalar_lea.vmem %s0, 525
  %s191 = smov 12
  %v192 = vld [vmem:[%s190] ss:$16 sm:%s191]
  %vm193 = vcmask 1043458
  %v194 = vsel %vm193, %v192, %v189
  %s195 = scalar_lea.vmem %s0, 525
  %s196 = smov 48
  %v197 = vld [vmem:[%s195] ss:$16 sm:%s196]
  %vm198 = vcmask 1045508
  %v199 = vsel %vm198, %v197, %v194
  %s200 = scalar_lea.vmem %s0, 525
  %s201 = smov 192
  %v202 = vld [vmem:[%s200] ss:$16 sm:%s201]
  %vm203 = vcmask 1047558
  %v204 = vsel %vm203, %v202, %v199
  %205 = vrot.lane.b32.xlu0 %v204, 78
  %v206 = vpop.permute.xlu0 %205
  %vm207 = vcmask 687728
  %s208 = scalar_lea.vmem %s1, 32
  %209 = vst.msk [vmem:[%s208] sm:$0xff] %vm207, %v206
  %s210 = scalar_lea.vmem %s0, 141
  %s211 = smov 3
  %v212 = vld [vmem:[%s210] ss:$16 sm:%s211]
  %s213 = scalar_lea.vmem %s0, 141
  %s214 = smov 12
  %v215 = vld [vmem:[%s213] ss:$16 sm:%s214]
  %vm216 = vcmask 1043458
  %v217 = vsel %vm216, %v215, %v212
  %s218 = scalar_lea.vmem %s0, 141
  %s219 = smov 48
  %v220 = vld [vmem:[%s218] ss:$16 sm:%s219]
  %vm221 = vcmask 1045508
  %v222 = vsel %vm221, %v220, %v217
  %s223 = scalar_lea.vmem %s0, 141
  %s224 = smov 192
  %v225 = vld [vmem:[%s223] ss:$16 sm:%s224]
  %vm226 = vcmask 1047558
  %v227 = vsel %vm226, %v225, %v222
  %228 = vrot.lane.b32.xlu0 %v227, 78
  %v229 = vpop.permute.xlu0 %228
  %vm230 = vcmask 687728
  %s231 = scalar_lea.vmem %s1, 8
  %232 = vst.msk [vmem:[%s231] sm:$0xff] %vm230, %v229
  %s233 = scalar_lea.vmem %s0, 653
  %s234 = smov 3
  %v235 = vld [vmem:[%s233] ss:$16 sm:%s234]
  %s236 = scalar_lea.vmem %s0, 653
  %s237 = smov 12
  %v238 = vld [vmem:[%s236] ss:$16 sm:%s237]
  %vm239 = vcmask 1043458
  %v240 = vsel %vm239, %v238, %v235
  %s241 = scalar_lea.vmem %s0, 653
  %s242 = smov 48
  %v243 = vld [vmem:[%s241] ss:$16 sm:%s242]
  %vm244 = vcmask 1045508
  %v245 = vsel %vm244, %v243, %v240
  %s246 = scalar_lea.vmem %s0, 653
  %s247 = smov 192
  %v248 = vld [vmem:[%s246] ss:$16 sm:%s247]
  %vm249 = vcmask 1047558
  %v250 = vsel %vm249, %v248, %v245
  %251 = vrot.lane.b32.xlu0 %v250, 78
  %v252 = vpop.permute.xlu0 %251
  %vm253 = vcmask 687728
  %s254 = scalar_lea.vmem %s1, 40
  %255 = vst.msk [vmem:[%s254] sm:$0xff] %vm253, %v252
  %s256 = scalar_lea.vmem %s0, 269
  %s257 = smov 3
  %v258 = vld [vmem:[%s256] ss:$16 sm:%s257]
  %s259 = scalar_lea.vmem %s0, 269
  %s260 = smov 12
  %v261 = vld [vmem:[%s259] ss:$16 sm:%s260]
  %vm262 = vcmask 1043458
  %v263 = vsel %vm262, %v261, %v258
  %s264 = scalar_lea.vmem %s0, 269
  %s265 = smov 48
  %v266 = vld [vmem:[%s264] ss:$16 sm:%s265]
  %vm267 = vcmask 1045508
  %v268 = vsel %vm267, %v266, %v263
  %s269 = scalar_lea.vmem %s0, 269
  %s270 = smov 192
  %v271 = vld [vmem:[%s269] ss:$16 sm:%s270]
  %vm272 = vcmask 1047558
  %v273 = vsel %vm272, %v271, %v268
  %274 = vrot.lane.b32.xlu0 %v273, 78
  %v275 = vpop.permute.xlu0 %274
  %vm276 = vcmask 687728
  %s277 = scalar_lea.vmem %s1, 16
  %278 = vst.msk [vmem:[%s277] sm:$0xff] %vm276, %v275
  %s279 = scalar_lea.vmem %s0, 781
  %s280 = smov 3
  %v281 = vld [vmem:[%s279] ss:$16 sm:%s280]
  %s282 = scalar_lea.vmem %s0, 781
  %s283 = smov 12
  %v284 = vld [vmem:[%s282] ss:$16 sm:%s283]
  %vm285 = vcmask 1043458
  %v286 = vsel %vm285, %v284, %v281
  %s287 = scalar_lea.vmem %s0, 781
  %s288 = smov 48
  %v289 = vld [vmem:[%s287] ss:$16 sm:%s288]
  %vm290 = vcmask 1045508
  %v291 = vsel %vm290, %v289, %v286
  %s292 = scalar_lea.vmem %s0, 781
  %s293 = smov 192
  %v294 = vld [vmem:[%s292] ss:$16 sm:%s293]
  %vm295 = vcmask 1047558
  %v296 = vsel %vm295, %v294, %v291
  %297 = vrot.lane.b32.xlu0 %v296, 78
  %v298 = vpop.permute.xlu0 %297
  %vm299 = vcmask 687728
  %s300 = scalar_lea.vmem %s1, 48
  %301 = vst.msk [vmem:[%s300] sm:$0xff] %vm299, %v298
  %s302 = scalar_lea.vmem %s0, 397
  %s303 = smov 3
  %v304 = vld [vmem:[%s302] ss:$16 sm:%s303]
  %s305 = scalar_lea.vmem %s0, 397
  %s306 = smov 12
  %v307 = vld [vmem:[%s305] ss:$16 sm:%s306]
  %vm308 = vcmask 1043458
  %v309 = vsel %vm308, %v307, %v304
  %s310 = scalar_lea.vmem %s0, 397
  %s311 = smov 48
  %v312 = vld [vmem:[%s310] ss:$16 sm:%s311]
  %vm313 = vcmask 1045508
  %v314 = vsel %vm313, %v312, %v309
  %s315 = scalar_lea.vmem %s0, 397
  %s316 = smov 192
  %v317 = vld [vmem:[%s315] ss:$16 sm:%s316]
  %vm318 = vcmask 1047558
  %v319 = vsel %vm318, %v317, %v314
  %320 = vrot.lane.b32.xlu0 %v319, 78
  %v321 = vpop.permute.xlu0 %320
  %vm322 = vcmask 687728
  %s323 = scalar_lea.vmem %s1, 24
  %324 = vst.msk [vmem:[%s323] sm:$0xff] %vm322, %v321
  %s325 = scalar_lea.vmem %s0, 909
  %s326 = smov 3
  %v327 = vld [vmem:[%s325] ss:$16 sm:%s326]
  %s328 = scalar_lea.vmem %s0, 909
  %s329 = smov 12
  %v330 = vld [vmem:[%s328] ss:$16 sm:%s329]
  %vm331 = vcmask 1043458
  %v332 = vsel %vm331, %v330, %v327
  %s333 = scalar_lea.vmem %s0, 909
  %s334 = smov 48
  %v335 = vld [vmem:[%s333] ss:$16 sm:%s334]
  %vm336 = vcmask 1045508
  %v337 = vsel %vm336, %v335, %v332
  %s338 = scalar_lea.vmem %s0, 909
  %s339 = smov 192
  %v340 = vld [vmem:[%s338] ss:$16 sm:%s339]
  %vm341 = vcmask 1047558
  %v342 = vsel %vm341, %v340, %v337
  %343 = vrot.lane.b32.xlu0 %v342, 78
  %v344 = vpop.permute.xlu0 %343
  %vm345 = vcmask 687728
  %s346 = scalar_lea.vmem %s1, 56
  %347 = vst.msk [vmem:[%s346] sm:$0xff] %vm345, %v344
  %s348 = scalar_lea.vmem %s0, 12
  %s349 = smov 3
  %v350 = vld [vmem:[%s348] ss:$16 sm:%s349]
  %s351 = scalar_lea.vmem %s0, 12
  %s352 = smov 12
  %v353 = vld [vmem:[%s351] ss:$16 sm:%s352]
  %vm354 = vcmask 1043458
  %v355 = vsel %vm354, %v353, %v350
  %s356 = scalar_lea.vmem %s0, 12
  %s357 = smov 48
  %v358 = vld [vmem:[%s356] ss:$16 sm:%s357]
  %vm359 = vcmask 1045508
  %v360 = vsel %vm359, %v358, %v355
  %s361 = scalar_lea.vmem %s0, 12
  %s362 = smov 192
  %v363 = vld [vmem:[%s361] ss:$16 sm:%s362]
  %vm364 = vcmask 1047558
  %v365 = vsel %vm364, %v363, %v360
  %366 = vrot.lane.b32.xlu0 %v365, 72
  %v367 = vpop.permute.xlu0 %366
  %vm368 = vcmask 638528
  %369 = vst.msk [vmem:[%s1] sm:$0xff] %vm368, %v367
  %s370 = scalar_lea.vmem %s0, 524
  %s371 = smov 3
  %v372 = vld [vmem:[%s370] ss:$16 sm:%s371]
  %s373 = scalar_lea.vmem %s0, 524
  %s374 = smov 12
  %v375 = vld [vmem:[%s373] ss:$16 sm:%s374]
  %vm376 = vcmask 1043458
  %v377 = vsel %vm376, %v375, %v372
  %s378 = scalar_lea.vmem %s0, 524
  %s379 = smov 48
  %v380 = vld [vmem:[%s378] ss:$16 sm:%s379]
  %vm381 = vcmask 1045508
  %v382 = vsel %vm381, %v380, %v377
  %s383 = scalar_lea.vmem %s0, 524
  %s384 = smov 192
  %v385 = vld [vmem:[%s383] ss:$16 sm:%s384]
  %vm386 = vcmask 1047558
  %v387 = vsel %vm386, %v385, %v382
  %388 = vrot.lane.b32.xlu0 %v387, 72
  %v389 = vpop.permute.xlu0 %388
  %vm390 = vcmask 638528
  %s391 = scalar_lea.vmem %s1, 32
  %392 = vst.msk [vmem:[%s391] sm:$0xff] %vm390, %v389
  %s393 = scalar_lea.vmem %s0, 140
  %s394 = smov 3
  %v395 = vld [vmem:[%s393] ss:$16 sm:%s394]
  %s396 = scalar_lea.vmem %s0, 140
  %s397 = smov 12
  %v398 = vld [vmem:[%s396] ss:$16 sm:%s397]
  %vm399 = vcmask 1043458
  %v400 = vsel %vm399, %v398, %v395
  %s401 = scalar_lea.vmem %s0, 140
  %s402 = smov 48
  %v403 = vld [vmem:[%s401] ss:$16 sm:%s402]
  %vm404 = vcmask 1045508
  %v405 = vsel %vm404, %v403, %v400
  %s406 = scalar_lea.vmem %s0, 140
  %s407 = smov 192
  %v408 = vld [vmem:[%s406] ss:$16 sm:%s407]
  %vm409 = vcmask 1047558
  %v410 = vsel %vm409, %v408, %v405
  %411 = vrot.lane.b32.xlu0 %v410, 72
  %v412 = vpop.permute.xlu0 %411
  %vm413 = vcmask 638528
  %s414 = scalar_lea.vmem %s1, 8
  %415 = vst.msk [vmem:[%s414] sm:$0xff] %vm413, %v412
  %s416 = scalar_lea.vmem %s0, 652
  %s417 = smov 3
  %v418 = vld [vmem:[%s416] ss:$16 sm:%s417]
  %s419 = scalar_lea.vmem %s0, 652
  %s420 = smov 12
  %v421 = vld [vmem:[%s419] ss:$16 sm:%s420]
  %vm422 = vcmask 1043458
  %v423 = vsel %vm422, %v421, %v418
  %s424 = scalar_lea.vmem %s0, 652
  %s425 = smov 48
  %v426 = vld [vmem:[%s424] ss:$16 sm:%s425]
  %vm427 = vcmask 1045508
  %v428 = vsel %vm427, %v426, %v423
  %s429 = scalar_lea.vmem %s0, 652
  %s430 = smov 192
  %v431 = vld [vmem:[%s429] ss:$16 sm:%s430]
  %vm432 = vcmask 1047558
  %v433 = vsel %vm432, %v431, %v428
  %434 = vrot.lane.b32.xlu0 %v433, 72
  %v435 = vpop.permute.xlu0 %434
  %vm436 = vcmask 638528
  %s437 = scalar_lea.vmem %s1, 40
  %438 = vst.msk [vmem:[%s437] sm:$0xff] %vm436, %v435
  %s439 = scalar_lea.vmem %s0, 268
  %s440 = smov 3
  %v441 = vld [vmem:[%s439] ss:$16 sm:%s440]
  %s442 = scalar_lea.vmem %s0, 268
  %s443 = smov 12
  %v444 = vld [vmem:[%s442] ss:$16 sm:%s443]
  %vm445 = vcmask 1043458
  %v446 = vsel %vm445, %v444, %v441
  %s447 = scalar_lea.vmem %s0, 268
  %s448 = smov 48
  %v449 = vld [vmem:[%s447] ss:$16 sm:%s448]
  %vm450 = vcmask 1045508
  %v451 = vsel %vm450, %v449, %v446
  %s452 = scalar_lea.vmem %s0, 268
  %s453 = smov 192
  %v454 = vld [vmem:[%s452] ss:$16 sm:%s453]
  %vm455 = vcmask 1047558
  %v456 = vsel %vm455, %v454, %v451
  %457 = vrot.lane.b32.xlu0 %v456, 72
  %v458 = vpop.permute.xlu0 %457
  %vm459 = vcmask 638528
  %s460 = scalar_lea.vmem %s1, 16
  %461 = vst.msk [vmem:[%s460] sm:$0xff] %vm459, %v458
  %s462 = scalar_lea.vmem %s0, 780
  %s463 = smov 3
  %v464 = vld [vmem:[%s462] ss:$16 sm:%s463]
  %s465 = scalar_lea.vmem %s0, 780
  %s466 = smov 12
  %v467 = vld [vmem:[%s465] ss:$16 sm:%s466]
  %vm468 = vcmask 1043458
  %v469 = vsel %vm468, %v467, %v464
  %s470 = scalar_lea.vmem %s0, 780
  %s471 = smov 48
  %v472 = vld [vmem:[%s470] ss:$16 sm:%s471]
  %vm473 = vcmask 1045508
  %v474 = vsel %vm473, %v472, %v469
  %s475 = scalar_lea.vmem %s0, 780
  %s476 = smov 192
  %v477 = vld [vmem:[%s475] ss:$16 sm:%s476]
  %vm478 = vcmask 1047558
  %v479 = vsel %vm478, %v477, %v474
  %480 = vrot.lane.b32.xlu0 %v479, 72
  %v481 = vpop.permute.xlu0 %480
  %vm482 = vcmask 638528
  %s483 = scalar_lea.vmem %s1, 48
  %484 = vst.msk [vmem:[%s483] sm:$0xff] %vm482, %v481
  %s485 = scalar_lea.vmem %s0, 396
  %s486 = smov 3
  %v487 = vld [vmem:[%s485] ss:$16 sm:%s486]
  %s488 = scalar_lea.vmem %s0, 396
  %s489 = smov 12
  %v490 = vld [vmem:[%s488] ss:$16 sm:%s489]
  %vm491 = vcmask 1043458
  %v492 = vsel %vm491, %v490, %v487
  %s493 = scalar_lea.vmem %s0, 396
  %s494 = smov 48
  %v495 = vld [vmem:[%s493] ss:$16 sm:%s494]
  %vm496 = vcmask 1045508
  %v497 = vsel %vm496, %v495, %v492
  %s498 = scalar_lea.vmem %s0, 396
  %s499 = smov 192
  %v500 = vld [vmem:[%s498] ss:$16 sm:%s499]
  %vm501 = vcmask 1047558
  %v502 = vsel %vm501, %v500, %v497
  %503 = vrot.lane.b32.xlu0 %v502, 72
  %v504 = vpop.permute.xlu0 %503
  %vm505 = vcmask 638528
  %s506 = scalar_lea.vmem %s1, 24
  %507 = vst.msk [vmem:[%s506] sm:$0xff] %vm505, %v504
  %s508 = scalar_lea.vmem %s0, 908
  %s509 = smov 3
  %v510 = vld [vmem:[%s508] ss:$16 sm:%s509]
  %s511 = scalar_lea.vmem %s0, 908
  %s512 = smov 12
  %v513 = vld [vmem:[%s511] ss:$16 sm:%s512]
  %vm514 = vcmask 1043458
  %v515 = vsel %vm514, %v513, %v510
  %s516 = scalar_lea.vmem %s0, 908
  %s517 = smov 48
  %v518 = vld [vmem:[%s516] ss:$16 sm:%s517]
  %vm519 = vcmask 1045508
  %v520 = vsel %vm519, %v518, %v515
  %s521 = scalar_lea.vmem %s0, 908
  %s522 = smov 192
  %v523 = vld [vmem:[%s521] ss:$16 sm:%s522]
  %vm524 = vcmask 1047558
  %v525 = vsel %vm524, %v523, %v520
  %526 = vrot.lane.b32.xlu0 %v525, 72
  %v527 = vpop.permute.xlu0 %526
  %vm528 = vcmask 638528
  %s529 = scalar_lea.vmem %s1, 56
  %530 = vst.msk [vmem:[%s529] sm:$0xff] %vm528, %v527
  %s531 = scalar_lea.vmem %s0, 11
  %s532 = smov 3
  %v533 = vld [vmem:[%s531] ss:$16 sm:%s532]
  %s534 = scalar_lea.vmem %s0, 11
  %s535 = smov 12
  %v536 = vld [vmem:[%s534] ss:$16 sm:%s535]
  %vm537 = vcmask 1043458
  %v538 = vsel %vm537, %v536, %v533
  %s539 = scalar_lea.vmem %s0, 11
  %s540 = smov 48
  %v541 = vld [vmem:[%s539] ss:$16 sm:%s540]
  %vm542 = vcmask 1045508
  %v543 = vsel %vm542, %v541, %v538
  %s544 = scalar_lea.vmem %s0, 11
  %s545 = smov 192
  %v546 = vld [vmem:[%s544] ss:$16 sm:%s545]
  %vm547 = vcmask 1047558
  %v548 = vsel %vm547, %v546, %v543
  %549 = vrot.lane.b32.xlu0 %v548, 66
  %v550 = vpop.permute.xlu0 %549
  %vm551 = vcmask 589328
  %552 = vst.msk [vmem:[%s1] sm:$0xff] %vm551, %v550
  %s553 = scalar_lea.vmem %s0, 523
  %s554 = smov 3
  %v555 = vld [vmem:[%s553] ss:$16 sm:%s554]
  %s556 = scalar_lea.vmem %s0, 523
  %s557 = smov 12
  %v558 = vld [vmem:[%s556] ss:$16 sm:%s557]
  %vm559 = vcmask 1043458
  %v560 = vsel %vm559, %v558, %v555
  %s561 = scalar_lea.vmem %s0, 523
  %s562 = smov 48
  %v563 = vld [vmem:[%s561] ss:$16 sm:%s562]
  %vm564 = vcmask 1045508
  %v565 = vsel %vm564, %v563, %v560
  %s566 = scalar_lea.vmem %s0, 523
  %s567 = smov 192
  %v568 = vld [vmem:[%s566] ss:$16 sm:%s567]
  %vm569 = vcmask 1047558
  %v570 = vsel %vm569, %v568, %v565
  %571 = vrot.lane.b32.xlu0 %v570, 66
  %v572 = vpop.permute.xlu0 %571
  %vm573 = vcmask 589328
  %s574 = scalar_lea.vmem %s1, 32
  %575 = vst.msk [vmem:[%s574] sm:$0xff] %vm573, %v572
  %s576 = scalar_lea.vmem %s0, 139
  %s577 = smov 3
  %v578 = vld [vmem:[%s576] ss:$16 sm:%s577]
  %s579 = scalar_lea.vmem %s0, 139
  %s580 = smov 12
  %v581 = vld [vmem:[%s579] ss:$16 sm:%s580]
  %vm582 = vcmask 1043458
  %v583 = vsel %vm582, %v581, %v578
  %s584 = scalar_lea.vmem %s0, 139
  %s585 = smov 48
  %v586 = vld [vmem:[%s584] ss:$16 sm:%s585]
  %vm587 = vcmask 1045508
  %v588 = vsel %vm587, %v586, %v583
  %s589 = scalar_lea.vmem %s0, 139
  %s590 = smov 192
  %v591 = vld [vmem:[%s589] ss:$16 sm:%s590]
  %vm592 = vcmask 1047558
  %v593 = vsel %vm592, %v591, %v588
  %594 = vrot.lane.b32.xlu0 %v593, 66
  %v595 = vpop.permute.xlu0 %594
  %vm596 = vcmask 589328
  %s597 = scalar_lea.vmem %s1, 8
  %598 = vst.msk [vmem:[%s597] sm:$0xff] %vm596, %v595
  %s599 = scalar_lea.vmem %s0, 651
  %s600 = smov 3
  %v601 = vld [vmem:[%s599] ss:$16 sm:%s600]
  %s602 = scalar_lea.vmem %s0, 651
  %s603 = smov 12
  %v604 = vld [vmem:[%s602] ss:$16 sm:%s603]
  %vm605 = vcmask 1043458
  %v606 = vsel %vm605, %v604, %v601
  %s607 = scalar_lea.vmem %s0, 651
  %s608 = smov 48
  %v609 = vld [vmem:[%s607] ss:$16 sm:%s608]
  %vm610 = vcmask 1045508
  %v611 = vsel %vm610, %v609, %v606
  %s612 = scalar_lea.vmem %s0, 651
  %s613 = smov 192
  %v614 = vld [vmem:[%s612] ss:$16 sm:%s613]
  %vm615 = vcmask 1047558
  %v616 = vsel %vm615, %v614, %v611
  %617 = vrot.lane.b32.xlu0 %v616, 66
  %v618 = vpop.permute.xlu0 %617
  %vm619 = vcmask 589328
  %s620 = scalar_lea.vmem %s1, 40
  %621 = vst.msk [vmem:[%s620] sm:$0xff] %vm619, %v618
  %s622 = scalar_lea.vmem %s0, 267
  %s623 = smov 3
  %v624 = vld [vmem:[%s622] ss:$16 sm:%s623]
  %s625 = scalar_lea.vmem %s0, 267
  %s626 = smov 12
  %v627 = vld [vmem:[%s625] ss:$16 sm:%s626]
  %vm628 = vcmask 1043458
  %v629 = vsel %vm628, %v627, %v624
  %s630 = scalar_lea.vmem %s0, 267
  %s631 = smov 48
  %v632 = vld [vmem:[%s630] ss:$16 sm:%s631]
  %vm633 = vcmask 1045508
  %v634 = vsel %vm633, %v632, %v629
  %s635 = scalar_lea.vmem %s0, 267
  %s636 = smov 192
  %v637 = vld [vmem:[%s635] ss:$16 sm:%s636]
  %vm638 = vcmask 1047558
  %v639 = vsel %vm638, %v637, %v634
  %640 = vrot.lane.b32.xlu0 %v639, 66
  %v641 = vpop.permute.xlu0 %640
  %vm642 = vcmask 589328
  %s643 = scalar_lea.vmem %s1, 16
  %644 = vst.msk [vmem:[%s643] sm:$0xff] %vm642, %v641
  %s645 = scalar_lea.vmem %s0, 779
  %s646 = smov 3
  %v647 = vld [vmem:[%s645] ss:$16 sm:%s646]
  %s648 = scalar_lea.vmem %s0, 779
  %s649 = smov 12
  %v650 = vld [vmem:[%s648] ss:$16 sm:%s649]
  %vm651 = vcmask 1043458
  %v652 = vsel %vm651, %v650, %v647
  %s653 = scalar_lea.vmem %s0, 779
  %s654 = smov 48
  %v655 = vld [vmem:[%s653] ss:$16 sm:%s654]
  %vm656 = vcmask 1045508
  %v657 = vsel %vm656, %v655, %v652
  %s658 = scalar_lea.vmem %s0, 779
  %s659 = smov 192
  %v660 = vld [vmem:[%s658] ss:$16 sm:%s659]
  %vm661 = vcmask 1047558
  %v662 = vsel %vm661, %v660, %v657
  %663 = vrot.lane.b32.xlu0 %v662, 66
  %v664 = vpop.permute.xlu0 %663
  %vm665 = vcmask 589328
  %s666 = scalar_lea.vmem %s1, 48
  %667 = vst.msk [vmem:[%s666] sm:$0xff] %vm665, %v664
  %s668 = scalar_lea.vmem %s0, 395
  %s669 = smov 3
  %v670 = vld [vmem:[%s668] ss:$16 sm:%s669]
  %s671 = scalar_lea.vmem %s0, 395
  %s672 = smov 12
  %v673 = vld [vmem:[%s671] ss:$16 sm:%s672]
  %vm674 = vcmask 1043458
  %v675 = vsel %vm674, %v673, %v670
  %s676 = scalar_lea.vmem %s0, 395
  %s677 = smov 48
  %v678 = vld [vmem:[%s676] ss:$16 sm:%s677]
  %vm679 = vcmask 1045508
  %v680 = vsel %vm679, %v678, %v675
  %s681 = scalar_lea.vmem %s0, 395
  %s682 = smov 192
  %v683 = vld [vmem:[%s681] ss:$16 sm:%s682]
  %vm684 = vcmask 1047558
  %v685 = vsel %vm684, %v683, %v680
  %686 = vrot.lane.b32.xlu0 %v685, 66
  %v687 = vpop.permute.xlu0 %686
  %vm688 = vcmask 589328
  %s689 = scalar_lea.vmem %s1, 24
  %690 = vst.msk [vmem:[%s689] sm:$0xff] %vm688, %v687
  %s691 = scalar_lea.vmem %s0, 907
  %s692 = smov 3
  %v693 = vld [vmem:[%s691] ss:$16 sm:%s692]
  %s694 = scalar_lea.vmem %s0, 907
  %s695 = smov 12
  %v696 = vld [vmem:[%s694] ss:$16 sm:%s695]
  %vm697 = vcmask 1043458
  %v698 = vsel %vm697, %v696, %v693
  %s699 = scalar_lea.vmem %s0, 907
  %s700 = smov 48
  %v701 = vld [vmem:[%s699] ss:$16 sm:%s700]
  %vm702 = vcmask 1045508
  %v703 = vsel %vm702, %v701, %v698
  %s704 = scalar_lea.vmem %s0, 907
  %s705 = smov 192
  %v706 = vld [vmem:[%s704] ss:$16 sm:%s705]
  %vm707 = vcmask 1047558
  %v708 = vsel %vm707, %v706, %v703
  %709 = vrot.lane.b32.xlu0 %v708, 66
  %v710 = vpop.permute.xlu0 %709
  %vm711 = vcmask 589328
  %s712 = scalar_lea.vmem %s1, 56
  %713 = vst.msk [vmem:[%s712] sm:$0xff] %vm711, %v710
  %s714 = scalar_lea.vmem %s0, 10
  %s715 = smov 3
  %v716 = vld [vmem:[%s714] ss:$16 sm:%s715]
  %s717 = scalar_lea.vmem %s0, 10
  %s718 = smov 12
  %v719 = vld [vmem:[%s717] ss:$16 sm:%s718]
  %vm720 = vcmask 1043458
  %v721 = vsel %vm720, %v719, %v716
  %s722 = scalar_lea.vmem %s0, 10
  %s723 = smov 48
  %v724 = vld [vmem:[%s722] ss:$16 sm:%s723]
  %vm725 = vcmask 1045508
  %v726 = vsel %vm725, %v724, %v721
  %s727 = scalar_lea.vmem %s0, 10
  %s728 = smov 192
  %v729 = vld [vmem:[%s727] ss:$16 sm:%s728]
  %vm730 = vcmask 1047558
  %v731 = vsel %vm730, %v729, %v726
  %732 = vrot.lane.b32.xlu0 %v731, 60
  %v733 = vpop.permute.xlu0 %732
  %vm734 = vcmask 540128
  %735 = vst.msk [vmem:[%s1] sm:$0xff] %vm734, %v733
  %s736 = scalar_lea.vmem %s0, 522
  %s737 = smov 3
  %v738 = vld [vmem:[%s736] ss:$16 sm:%s737]
  %s739 = scalar_lea.vmem %s0, 522
  %s740 = smov 12
  %v741 = vld [vmem:[%s739] ss:$16 sm:%s740]
  %vm742 = vcmask 1043458
  %v743 = vsel %vm742, %v741, %v738
  %s744 = scalar_lea.vmem %s0, 522
  %s745 = smov 48
  %v746 = vld [vmem:[%s744] ss:$16 sm:%s745]
  %vm747 = vcmask 1045508
  %v748 = vsel %vm747, %v746, %v743
  %s749 = scalar_lea.vmem %s0, 522
  %s750 = smov 192
  %v751 = vld [vmem:[%s749] ss:$16 sm:%s750]
  %vm752 = vcmask 1047558
  %v753 = vsel %vm752, %v751, %v748
  %754 = vrot.lane.b32.xlu0 %v753, 60
  %v755 = vpop.permute.xlu0 %754
  %vm756 = vcmask 540128
  %s757 = scalar_lea.vmem %s1, 32
  %758 = vst.msk [vmem:[%s757] sm:$0xff] %vm756, %v755
  %s759 = scalar_lea.vmem %s0, 138
  %s760 = smov 3
  %v761 = vld [vmem:[%s759] ss:$16 sm:%s760]
  %s762 = scalar_lea.vmem %s0, 138
  %s763 = smov 12
  %v764 = vld [vmem:[%s762] ss:$16 sm:%s763]
  %vm765 = vcmask 1043458
  %v766 = vsel %vm765, %v764, %v761
  %s767 = scalar_lea.vmem %s0, 138
  %s768 = smov 48
  %v769 = vld [vmem:[%s767] ss:$16 sm:%s768]
  %vm770 = vcmask 1045508
  %v771 = vsel %vm770, %v769, %v766
  %s772 = scalar_lea.vmem %s0, 138
  %s773 = smov 192
  %v774 = vld [vmem:[%s772] ss:$16 sm:%s773]
  %vm775 = vcmask 1047558
  %v776 = vsel %vm775, %v774, %v771
  %777 = vrot.lane.b32.xlu0 %v776, 60
  %v778 = vpop.permute.xlu0 %777
  %vm779 = vcmask 540128
  %s780 = scalar_lea.vmem %s1, 8
  %781 = vst.msk [vmem:[%s780] sm:$0xff] %vm779, %v778
  %s782 = scalar_lea.vmem %s0, 650
  %s783 = smov 3
  %v784 = vld [vmem:[%s782] ss:$16 sm:%s783]
  %s785 = scalar_lea.vmem %s0, 650
  %s786 = smov 12
  %v787 = vld [vmem:[%s785] ss:$16 sm:%s786]
  %vm788 = vcmask 1043458
  %v789 = vsel %vm788, %v787, %v784
  %s790 = scalar_lea.vmem %s0, 650
  %s791 = smov 48
  %v792 = vld [vmem:[%s790] ss:$16 sm:%s791]
  %vm793 = vcmask 1045508
  %v794 = vsel %vm793, %v792, %v789
  %s795 = scalar_lea.vmem %s0, 650
  %s796 = smov 192
  %v797 = vld [vmem:[%s795] ss:$16 sm:%s796]
  %vm798 = vcmask 1047558
  %v799 = vsel %vm798, %v797, %v794
  %800 = vrot.lane.b32.xlu0 %v799, 60
  %v801 = vpop.permute.xlu0 %800
  %vm802 = vcmask 540128
  %s803 = scalar_lea.vmem %s1, 40
  %804 = vst.msk [vmem:[%s803] sm:$0xff] %vm802, %v801
  %s805 = scalar_lea.vmem %s0, 266
  %s806 = smov 3
  %v807 = vld [vmem:[%s805] ss:$16 sm:%s806]
  %s808 = scalar_lea.vmem %s0, 266
  %s809 = smov 12
  %v810 = vld [vmem:[%s808] ss:$16 sm:%s809]
  %vm811 = vcmask 1043458
  %v812 = vsel %vm811, %v810, %v807
  %s813 = scalar_lea.vmem %s0, 266
  %s814 = smov 48
  %v815 = vld [vmem:[%s813] ss:$16 sm:%s814]
  %vm816 = vcmask 1045508
  %v817 = vsel %vm816, %v815, %v812
  %s818 = scalar_lea.vmem %s0, 266
  %s819 = smov 192
  %v820 = vld [vmem:[%s818] ss:$16 sm:%s819]
  %vm821 = vcmask 1047558
  %v822 = vsel %vm821, %v820, %v817
  %823 = vrot.lane.b32.xlu0 %v822, 60
  %v824 = vpop.permute.xlu0 %823
  %vm825 = vcmask 540128
  %s826 = scalar_lea.vmem %s1, 16
  %827 = vst.msk [vmem:[%s826] sm:$0xff] %vm825, %v824
  %s828 = scalar_lea.vmem %s0, 778
  %s829 = smov 3
  %v830 = vld [vmem:[%s828] ss:$16 sm:%s829]
  %s831 = scalar_lea.vmem %s0, 778
  %s832 = smov 12
  %v833 = vld [vmem:[%s831] ss:$16 sm:%s832]
  %vm834 = vcmask 1043458
  %v835 = vsel %vm834, %v833, %v830
  %s836 = scalar_lea.vmem %s0, 778
  %s837 = smov 48
  %v838 = vld [vmem:[%s836] ss:$16 sm:%s837]
  %vm839 = vcmask 1045508
  %v840 = vsel %vm839, %v838, %v835
  %s841 = scalar_lea.vmem %s0, 778
  %s842 = smov 192
  %v843 = vld [vmem:[%s841] ss:$16 sm:%s842]
  %vm844 = vcmask 1047558
  %v845 = vsel %vm844, %v843, %v840
  %846 = vrot.lane.b32.xlu0 %v845, 60
  %v847 = vpop.permute.xlu0 %846
  %vm848 = vcmask 540128
  %s849 = scalar_lea.vmem %s1, 48
  %850 = vst.msk [vmem:[%s849] sm:$0xff] %vm848, %v847
  %s851 = scalar_lea.vmem %s0, 394
  %s852 = smov 3
  %v853 = vld [vmem:[%s851] ss:$16 sm:%s852]
  %s854 = scalar_lea.vmem %s0, 394
  %s855 = smov 12
  %v856 = vld [vmem:[%s854] ss:$16 sm:%s855]
  %vm857 = vcmask 1043458
  %v858 = vsel %vm857, %v856, %v853
  %s859 = scalar_lea.vmem %s0, 394
  %s860 = smov 48
  %v861 = vld [vmem:[%s859] ss:$16 sm:%s860]
  %vm862 = vcmask 1045508
  %v863 = vsel %vm862, %v861, %v858
  %s864 = scalar_lea.vmem %s0, 394
  %s865 = smov 192
  %v866 = vld [vmem:[%s864] ss:$16 sm:%s865]
  %vm867 = vcmask 1047558
  %v868 = vsel %vm867, %v866, %v863
  %869 = vrot.lane.b32.xlu0 %v868, 60
  %v870 = vpop.permute.xlu0 %869
  %vm871 = vcmask 540128
  %s872 = scalar_lea.vmem %s1, 24
  %873 = vst.msk [vmem:[%s872] sm:$0xff] %vm871, %v870
  %s874 = scalar_lea.vmem %s0, 906
  %s875 = smov 3
  %v876 = vld [vmem:[%s874] ss:$16 sm:%s875]
  %s877 = scalar_lea.vmem %s0, 906
  %s878 = smov 12
  %v879 = vld [vmem:[%s877] ss:$16 sm:%s878]
  %vm880 = vcmask 1043458
  %v881 = vsel %vm880, %v879, %v876
  %s882 = scalar_lea.vmem %s0, 906
  %s883 = smov 48
  %v884 = vld [vmem:[%s882] ss:$16 sm:%s883]
  %vm885 = vcmask 1045508
  %v886 = vsel %vm885, %v884, %v881
  %s887 = scalar_lea.vmem %s0, 906
  %s888 = smov 192
  %v889 = vld [vmem:[%s887] ss:$16 sm:%s888]
  %vm890 = vcmask 1047558
  %v891 = vsel %vm890, %v889, %v886
  %892 = vrot.lane.b32.xlu0 %v891, 60
  %v893 = vpop.permute.xlu0 %892
  %vm894 = vcmask 540128
  %s895 = scalar_lea.vmem %s1, 56
  %896 = vst.msk [vmem:[%s895] sm:$0xff] %vm894, %v893
  %s897 = scalar_lea.vmem %s0, 9
  %s898 = smov 3
  %v899 = vld [vmem:[%s897] ss:$16 sm:%s898]
  %s900 = scalar_lea.vmem %s0, 9
  %s901 = smov 12
  %v902 = vld [vmem:[%s900] ss:$16 sm:%s901]
  %vm903 = vcmask 1043458
  %v904 = vsel %vm903, %v902, %v899
  %s905 = scalar_lea.vmem %s0, 9
  %s906 = smov 48
  %v907 = vld [vmem:[%s905] ss:$16 sm:%s906]
  %vm908 = vcmask 1045508
  %v909 = vsel %vm908, %v907, %v904
  %s910 = scalar_lea.vmem %s0, 9
  %s911 = smov 192
  %v912 = vld [vmem:[%s910] ss:$16 sm:%s911]
  %vm913 = vcmask 1047558
  %v914 = vsel %vm913, %v912, %v909
  %915 = vrot.lane.b32.xlu0 %v914, 54
  %v916 = vpop.permute.xlu0 %915
  %vm917 = vcmask 490928
  %918 = vst.msk [vmem:[%s1] sm:$0xff] %vm917, %v916
  %s919 = scalar_lea.vmem %s0, 521
  %s920 = smov 3
  %v921 = vld [vmem:[%s919] ss:$16 sm:%s920]
  %s922 = scalar_lea.vmem %s0, 521
  %s923 = smov 12
  %v924 = vld [vmem:[%s922] ss:$16 sm:%s923]
  %vm925 = vcmask 1043458
  %v926 = vsel %vm925, %v924, %v921
  %s927 = scalar_lea.vmem %s0, 521
  %s928 = smov 48
  %v929 = vld [vmem:[%s927] ss:$16 sm:%s928]
  %vm930 = vcmask 1045508
  %v931 = vsel %vm930, %v929, %v926
  %s932 = scalar_lea.vmem %s0, 521
  %s933 = smov 192
  %v934 = vld [vmem:[%s932] ss:$16 sm:%s933]
  %vm935 = vcmask 1047558
  %v936 = vsel %vm935, %v934, %v931
  %937 = vrot.lane.b32.xlu0 %v936, 54
  %v938 = vpop.permute.xlu0 %937
  %vm939 = vcmask 490928
  %s940 = scalar_lea.vmem %s1, 32
  %941 = vst.msk [vmem:[%s940] sm:$0xff] %vm939, %v938
  %s942 = scalar_lea.vmem %s0, 137
  %s943 = smov 3
  %v944 = vld [vmem:[%s942] ss:$16 sm:%s943]
  %s945 = scalar_lea.vmem %s0, 137
  %s946 = smov 12
  %v947 = vld [vmem:[%s945] ss:$16 sm:%s946]
  %vm948 = vcmask 1043458
  %v949 = vsel %vm948, %v947, %v944
  %s950 = scalar_lea.vmem %s0, 137
  %s951 = smov 48
  %v952 = vld [vmem:[%s950] ss:$16 sm:%s951]
  %vm953 = vcmask 1045508
  %v954 = vsel %vm953, %v952, %v949
  %s955 = scalar_lea.vmem %s0, 137
  %s956 = smov 192
  %v957 = vld [vmem:[%s955] ss:$16 sm:%s956]
  %vm958 = vcmask 1047558
  %v959 = vsel %vm958, %v957, %v954
  %960 = vrot.lane.b32.xlu0 %v959, 54
  %v961 = vpop.permute.xlu0 %960
  %vm962 = vcmask 490928
  %s963 = scalar_lea.vmem %s1, 8
  %964 = vst.msk [vmem:[%s963] sm:$0xff] %vm962, %v961
  %s965 = scalar_lea.vmem %s0, 649
  %s966 = smov 3
  %v967 = vld [vmem:[%s965] ss:$16 sm:%s966]
  %s968 = scalar_lea.vmem %s0, 649
  %s969 = smov 12
  %v970 = vld [vmem:[%s968] ss:$16 sm:%s969]
  %vm971 = vcmask 1043458
  %v972 = vsel %vm971, %v970, %v967
  %s973 = scalar_lea.vmem %s0, 649
  %s974 = smov 48
  %v975 = vld [vmem:[%s973] ss:$16 sm:%s974]
  %vm976 = vcmask 1045508
  %v977 = vsel %vm976, %v975, %v972
  %s978 = scalar_lea.vmem %s0, 649
  %s979 = smov 192
  %v980 = vld [vmem:[%s978] ss:$16 sm:%s979]
  %vm981 = vcmask 1047558
  %v982 = vsel %vm981, %v980, %v977
  %983 = vrot.lane.b32.xlu0 %v982, 54
  %v984 = vpop.permute.xlu0 %983
  %vm985 = vcmask 490928
  %s986 = scalar_lea.vmem %s1, 40
  %987 = vst.msk [vmem:[%s986] sm:$0xff] %vm985, %v984
  %s988 = scalar_lea.vmem %s0, 265
  %s989 = smov 3
  %v990 = vld [vmem:[%s988] ss:$16 sm:%s989]
  %s991 = scalar_lea.vmem %s0, 265
  %s992 = smov 12
  %v993 = vld [vmem:[%s991] ss:$16 sm:%s992]
  %vm994 = vcmask 1043458
  %v995 = vsel %vm994, %v993, %v990
  %s996 = scalar_lea.vmem %s0, 265
  %s997 = smov 48
  %v998 = vld [vmem:[%s996] ss:$16 sm:%s997]
  %vm999 = vcmask 1045508
  %v1000 = vsel %vm999, %v998, %v995
  %s1001 = scalar_lea.vmem %s0, 265
  %s1002 = smov 192
  %v1003 = vld [vmem:[%s1001] ss:$16 sm:%s1002]
  %vm1004 = vcmask 1047558
  %v1005 = vsel %vm1004, %v1003, %v1000
  %1006 = vrot.lane.b32.xlu0 %v1005, 54
  %v1007 = vpop.permute.xlu0 %1006
  %vm1008 = vcmask 490928
  %s1009 = scalar_lea.vmem %s1, 16
  %1010 = vst.msk [vmem:[%s1009] sm:$0xff] %vm1008, %v1007
  %s1011 = scalar_lea.vmem %s0, 777
  %s1012 = smov 3
  %v1013 = vld [vmem:[%s1011] ss:$16 sm:%s1012]
  %s1014 = scalar_lea.vmem %s0, 777
  %s1015 = smov 12
  %v1016 = vld [vmem:[%s1014] ss:$16 sm:%s1015]
  %vm1017 = vcmask 1043458
  %v1018 = vsel %vm1017, %v1016, %v1013
  %s1019 = scalar_lea.vmem %s0, 777
  %s1020 = smov 48
  %v1021 = vld [vmem:[%s1019] ss:$16 sm:%s1020]
  %vm1022 = vcmask 1045508
  %v1023 = vsel %vm1022, %v1021, %v1018
  %s1024 = scalar_lea.vmem %s0, 777
  %s1025 = smov 192
  %v1026 = vld [vmem:[%s1024] ss:$16 sm:%s1025]
  %vm1027 = vcmask 1047558
  %v1028 = vsel %vm1027, %v1026, %v1023
  %1029 = vrot.lane.b32.xlu0 %v1028, 54
  %v1030 = vpop.permute.xlu0 %1029
  %vm1031 = vcmask 490928
  %s1032 = scalar_lea.vmem %s1, 48
  %1033 = vst.msk [vmem:[%s1032] sm:$0xff] %vm1031, %v1030
  %s1034 = scalar_lea.vmem %s0, 393
  %s1035 = smov 3
  %v1036 = vld [vmem:[%s1034] ss:$16 sm:%s1035]
  %s1037 = scalar_lea.vmem %s0, 393
  %s1038 = smov 12
  %v1039 = vld [vmem:[%s1037] ss:$16 sm:%s1038]
  %vm1040 = vcmask 1043458
  %v1041 = vsel %vm1040, %v1039, %v1036
  %s1042 = scalar_lea.vmem %s0, 393
  %s1043 = smov 48
  %v1044 = vld [vmem:[%s1042] ss:$16 sm:%s1043]
  %vm1045 = vcmask 1045508
  %v1046 = vsel %vm1045, %v1044, %v1041
  %s1047 = scalar_lea.vmem %s0, 393
  %s1048 = smov 192
  %v1049 = vld [vmem:[%s1047] ss:$16 sm:%s1048]
  %vm1050 = vcmask 1047558
  %v1051 = vsel %vm1050, %v1049, %v1046
  %1052 = vrot.lane.b32.xlu0 %v1051, 54
  %v1053 = vpop.permute.xlu0 %1052
  %vm1054 = vcmask 490928
  %s1055 = scalar_lea.vmem %s1, 24
  %1056 = vst.msk [vmem:[%s1055] sm:$0xff] %vm1054, %v1053
  %s1057 = scalar_lea.vmem %s0, 905
  %s1058 = smov 3
  %v1059 = vld [vmem:[%s1057] ss:$16 sm:%s1058]
  %s1060 = scalar_lea.vmem %s0, 905
  %s1061 = smov 12
  %v1062 = vld [vmem:[%s1060] ss:$16 sm:%s1061]
  %vm1063 = vcmask 1043458
  %v1064 = vsel %vm1063, %v1062, %v1059
  %s1065 = scalar_lea.vmem %s0, 905
  %s1066 = smov 48
  %v1067 = vld [vmem:[%s1065] ss:$16 sm:%s1066]
  %vm1068 = vcmask 1045508
  %v1069 = vsel %vm1068, %v1067, %v1064
  %s1070 = scalar_lea.vmem %s0, 905
  %s1071 = smov 192
  %v1072 = vld [vmem:[%s1070] ss:$16 sm:%s1071]
  %vm1073 = vcmask 1047558
  %v1074 = vsel %vm1073, %v1072, %v1069
  %1075 = vrot.lane.b32.xlu0 %v1074, 54
  %v1076 = vpop.permute.xlu0 %1075
  %vm1077 = vcmask 490928
  %s1078 = scalar_lea.vmem %s1, 56
  %1079 = vst.msk [vmem:[%s1078] sm:$0xff] %vm1077, %v1076
  %s1080 = scalar_lea.vmem %s0, 8
  %s1081 = smov 3
  %v1082 = vld [vmem:[%s1080] ss:$16 sm:%s1081]
  %s1083 = scalar_lea.vmem %s0, 8
  %s1084 = smov 12
  %v1085 = vld [vmem:[%s1083] ss:$16 sm:%s1084]
  %vm1086 = vcmask 1043458
  %v1087 = vsel %vm1086, %v1085, %v1082
  %s1088 = scalar_lea.vmem %s0, 8
  %s1089 = smov 48
  %v1090 = vld [vmem:[%s1088] ss:$16 sm:%s1089]
  %vm1091 = vcmask 1045508
  %v1092 = vsel %vm1091, %v1090, %v1087
  %s1093 = scalar_lea.vmem %s0, 8
  %s1094 = smov 192
  %v1095 = vld [vmem:[%s1093] ss:$16 sm:%s1094]
  %vm1096 = vcmask 1047558
  %v1097 = vsel %vm1096, %v1095, %v1092
  %1098 = vrot.lane.b32.xlu0 %v1097, 48
  %v1099 = vpop.permute.xlu0 %1098
  %vm1100 = vcmask 441728
  %1101 = vst.msk [vmem:[%s1] sm:$0xff] %vm1100, %v1099
  %s1102 = scalar_lea.vmem %s0, 520
  %s1103 = smov 3
  %v1104 = vld [vmem:[%s1102] ss:$16 sm:%s1103]
  %s1105 = scalar_lea.vmem %s0, 520
  %s1106 = smov 12
  %v1107 = vld [vmem:[%s1105] ss:$16 sm:%s1106]
  %vm1108 = vcmask 1043458
  %v1109 = vsel %vm1108, %v1107, %v1104
  %s1110 = scalar_lea.vmem %s0, 520
  %s1111 = smov 48
  %v1112 = vld [vmem:[%s1110] ss:$16 sm:%s1111]
  %vm1113 = vcmask 1045508
  %v1114 = vsel %vm1113, %v1112, %v1109
  %s1115 = scalar_lea.vmem %s0, 520
  %s1116 = smov 192
  %v1117 = vld [vmem:[%s1115] ss:$16 sm:%s1116]
  %vm1118 = vcmask 1047558
  %v1119 = vsel %vm1118, %v1117, %v1114
  %1120 = vrot.lane.b32.xlu0 %v1119, 48
  %v1121 = vpop.permute.xlu0 %1120
  %vm1122 = vcmask 441728
  %s1123 = scalar_lea.vmem %s1, 32
  %1124 = vst.msk [vmem:[%s1123] sm:$0xff] %vm1122, %v1121
  %s1125 = scalar_lea.vmem %s0, 136
  %s1126 = smov 3
  %v1127 = vld [vmem:[%s1125] ss:$16 sm:%s1126]
  %s1128 = scalar_lea.vmem %s0, 136
  %s1129 = smov 12
  %v1130 = vld [vmem:[%s1128] ss:$16 sm:%s1129]
  %vm1131 = vcmask 1043458
  %v1132 = vsel %vm1131, %v1130, %v1127
  %s1133 = scalar_lea.vmem %s0, 136
  %s1134 = smov 48
  %v1135 = vld [vmem:[%s1133] ss:$16 sm:%s1134]
  %vm1136 = vcmask 1045508
  %v1137 = vsel %vm1136, %v1135, %v1132
  %s1138 = scalar_lea.vmem %s0, 136
  %s1139 = smov 192
  %v1140 = vld [vmem:[%s1138] ss:$16 sm:%s1139]
  %vm1141 = vcmask 1047558
  %v1142 = vsel %vm1141, %v1140, %v1137
  %1143 = vrot.lane.b32.xlu0 %v1142, 48
  %v1144 = vpop.permute.xlu0 %1143
  %vm1145 = vcmask 441728
  %s1146 = scalar_lea.vmem %s1, 8
  %1147 = vst.msk [vmem:[%s1146] sm:$0xff] %vm1145, %v1144
  %s1148 = scalar_lea.vmem %s0, 648
  %s1149 = smov 3
  %v1150 = vld [vmem:[%s1148] ss:$16 sm:%s1149]
  %s1151 = scalar_lea.vmem %s0, 648
  %s1152 = smov 12
  %v1153 = vld [vmem:[%s1151] ss:$16 sm:%s1152]
  %vm1154 = vcmask 1043458
  %v1155 = vsel %vm1154, %v1153, %v1150
  %s1156 = scalar_lea.vmem %s0, 648
  %s1157 = smov 48
  %v1158 = vld [vmem:[%s1156] ss:$16 sm:%s1157]
  %vm1159 = vcmask 1045508
  %v1160 = vsel %vm1159, %v1158, %v1155
  %s1161 = scalar_lea.vmem %s0, 648
  %s1162 = smov 192
  %v1163 = vld [vmem:[%s1161] ss:$16 sm:%s1162]
  %vm1164 = vcmask 1047558
  %v1165 = vsel %vm1164, %v1163, %v1160
  %1166 = vrot.lane.b32.xlu0 %v1165, 48
  %v1167 = vpop.permute.xlu0 %1166
  %vm1168 = vcmask 441728
  %s1169 = scalar_lea.vmem %s1, 40
  %1170 = vst.msk [vmem:[%s1169] sm:$0xff] %vm1168, %v1167
  %s1171 = scalar_lea.vmem %s0, 264
  %s1172 = smov 3
  %v1173 = vld [vmem:[%s1171] ss:$16 sm:%s1172]
  %s1174 = scalar_lea.vmem %s0, 264
  %s1175 = smov 12
  %v1176 = vld [vmem:[%s1174] ss:$16 sm:%s1175]
  %vm1177 = vcmask 1043458
  %v1178 = vsel %vm1177, %v1176, %v1173
  %s1179 = scalar_lea.vmem %s0, 264
  %s1180 = smov 48
  %v1181 = vld [vmem:[%s1179] ss:$16 sm:%s1180]
  %vm1182 = vcmask 1045508
  %v1183 = vsel %vm1182, %v1181, %v1178
  %s1184 = scalar_lea.vmem %s0, 264
  %s1185 = smov 192
  %v1186 = vld [vmem:[%s1184] ss:$16 sm:%s1185]
  %vm1187 = vcmask 1047558
  %v1188 = vsel %vm1187, %v1186, %v1183
  %1189 = vrot.lane.b32.xlu0 %v1188, 48
  %v1190 = vpop.permute.xlu0 %1189
  %vm1191 = vcmask 441728
  %s1192 = scalar_lea.vmem %s1, 16
  %1193 = vst.msk [vmem:[%s1192] sm:$0xff] %vm1191, %v1190
  %s1194 = scalar_lea.vmem %s0, 776
  %s1195 = smov 3
  %v1196 = vld [vmem:[%s1194] ss:$16 sm:%s1195]
  %s1197 = scalar_lea.vmem %s0, 776
  %s1198 = smov 12
  %v1199 = vld [vmem:[%s1197] ss:$16 sm:%s1198]
  %vm1200 = vcmask 1043458
  %v1201 = vsel %vm1200, %v1199, %v1196
  %s1202 = scalar_lea.vmem %s0, 776
  %s1203 = smov 48
  %v1204 = vld [vmem:[%s1202] ss:$16 sm:%s1203]
  %vm1205 = vcmask 1045508
  %v1206 = vsel %vm1205, %v1204, %v1201
  %s1207 = scalar_lea.vmem %s0, 776
  %s1208 = smov 192
  %v1209 = vld [vmem:[%s1207] ss:$16 sm:%s1208]
  %vm1210 = vcmask 1047558
  %v1211 = vsel %vm1210, %v1209, %v1206
  %1212 = vrot.lane.b32.xlu0 %v1211, 48
  %v1213 = vpop.permute.xlu0 %1212
  %vm1214 = vcmask 441728
  %s1215 = scalar_lea.vmem %s1, 48
  %1216 = vst.msk [vmem:[%s1215] sm:$0xff] %vm1214, %v1213
  %s1217 = scalar_lea.vmem %s0, 392
  %s1218 = smov 3
  %v1219 = vld [vmem:[%s1217] ss:$16 sm:%s1218]
  %s1220 = scalar_lea.vmem %s0, 392
  %s1221 = smov 12
  %v1222 = vld [vmem:[%s1220] ss:$16 sm:%s1221]
  %vm1223 = vcmask 1043458
  %v1224 = vsel %vm1223, %v1222, %v1219
  %s1225 = scalar_lea.vmem %s0, 392
  %s1226 = smov 48
  %v1227 = vld [vmem:[%s1225] ss:$16 sm:%s1226]
  %vm1228 = vcmask 1045508
  %v1229 = vsel %vm1228, %v1227, %v1224
  %s1230 = scalar_lea.vmem %s0, 392
  %s1231 = smov 192
  %v1232 = vld [vmem:[%s1230] ss:$16 sm:%s1231]
  %vm1233 = vcmask 1047558
  %v1234 = vsel %vm1233, %v1232, %v1229
  %1235 = vrot.lane.b32.xlu0 %v1234, 48
  %v1236 = vpop.permute.xlu0 %1235
  %vm1237 = vcmask 441728
  %s1238 = scalar_lea.vmem %s1, 24
  %1239 = vst.msk [vmem:[%s1238] sm:$0xff] %vm1237, %v1236
  %s1240 = scalar_lea.vmem %s0, 904
  %s1241 = smov 3
  %v1242 = vld [vmem:[%s1240] ss:$16 sm:%s1241]
  %s1243 = scalar_lea.vmem %s0, 904
  %s1244 = smov 12
  %v1245 = vld [vmem:[%s1243] ss:$16 sm:%s1244]
  %vm1246 = vcmask 1043458
  %v1247 = vsel %vm1246, %v1245, %v1242
  %s1248 = scalar_lea.vmem %s0, 904
  %s1249 = smov 48
  %v1250 = vld [vmem:[%s1248] ss:$16 sm:%s1249]
  %vm1251 = vcmask 1045508
  %v1252 = vsel %vm1251, %v1250, %v1247
  %s1253 = scalar_lea.vmem %s0, 904
  %s1254 = smov 192
  %v1255 = vld [vmem:[%s1253] ss:$16 sm:%s1254]
  %vm1256 = vcmask 1047558
  %v1257 = vsel %vm1256, %v1255, %v1252
  %1258 = vrot.lane.b32.xlu0 %v1257, 48
  %v1259 = vpop.permute.xlu0 %1258
  %vm1260 = vcmask 441728
  %s1261 = scalar_lea.vmem %s1, 56
  %1262 = vst.msk [vmem:[%s1261] sm:$0xff] %vm1260, %v1259
  %s1263 = scalar_lea.vmem %s0, 7
  %s1264 = smov 3
  %v1265 = vld [vmem:[%s1263] ss:$16 sm:%s1264]
  %s1266 = scalar_lea.vmem %s0, 7
  %s1267 = smov 12
  %v1268 = vld [vmem:[%s1266] ss:$16 sm:%s1267]
  %vm1269 = vcmask 1043458
  %v1270 = vsel %vm1269, %v1268, %v1265
  %s1271 = scalar_lea.vmem %s0, 7
  %s1272 = smov 48
  %v1273 = vld [vmem:[%s1271] ss:$16 sm:%s1272]
  %vm1274 = vcmask 1045508
  %v1275 = vsel %vm1274, %v1273, %v1270
  %s1276 = scalar_lea.vmem %s0, 7
  %s1277 = smov 192
  %v1278 = vld [vmem:[%s1276] ss:$16 sm:%s1277]
  %vm1279 = vcmask 1047558
  %v1280 = vsel %vm1279, %v1278, %v1275
  %1281 = vrot.lane.b32.xlu0 %v1280, 42
  %v1282 = vpop.permute.xlu0 %1281
  %vm1283 = vcmask 392528
  %1284 = vst.msk [vmem:[%s1] sm:$0xff] %vm1283, %v1282
  %s1285 = scalar_lea.vmem %s0, 519
  %s1286 = smov 3
  %v1287 = vld [vmem:[%s1285] ss:$16 sm:%s1286]
  %s1288 = scalar_lea.vmem %s0, 519
  %s1289 = smov 12
  %v1290 = vld [vmem:[%s1288] ss:$16 sm:%s1289]
  %vm1291 = vcmask 1043458
  %v1292 = vsel %vm1291, %v1290, %v1287
  %s1293 = scalar_lea.vmem %s0, 519
  %s1294 = smov 48
  %v1295 = vld [vmem:[%s1293] ss:$16 sm:%s1294]
  %vm1296 = vcmask 1045508
  %v1297 = vsel %vm1296, %v1295, %v1292
  %s1298 = scalar_lea.vmem %s0, 519
  %s1299 = smov 192
  %v1300 = vld [vmem:[%s1298] ss:$16 sm:%s1299]
  %vm1301 = vcmask 1047558
  %v1302 = vsel %vm1301, %v1300, %v1297
  %1303 = vrot.lane.b32.xlu0 %v1302, 42
  %v1304 = vpop.permute.xlu0 %1303
  %vm1305 = vcmask 392528
  %s1306 = scalar_lea.vmem %s1, 32
  %1307 = vst.msk [vmem:[%s1306] sm:$0xff] %vm1305, %v1304
  %s1308 = scalar_lea.vmem %s0, 135
  %s1309 = smov 3
  %v1310 = vld [vmem:[%s1308] ss:$16 sm:%s1309]
  %s1311 = scalar_lea.vmem %s0, 135
  %s1312 = smov 12
  %v1313 = vld [vmem:[%s1311] ss:$16 sm:%s1312]
  %vm1314 = vcmask 1043458
  %v1315 = vsel %vm1314, %v1313, %v1310
  %s1316 = scalar_lea.vmem %s0, 135
  %s1317 = smov 48
  %v1318 = vld [vmem:[%s1316] ss:$16 sm:%s1317]
  %vm1319 = vcmask 1045508
  %v1320 = vsel %vm1319, %v1318, %v1315
  %s1321 = scalar_lea.vmem %s0, 135
  %s1322 = smov 192
  %v1323 = vld [vmem:[%s1321] ss:$16 sm:%s1322]
  %vm1324 = vcmask 1047558
  %v1325 = vsel %vm1324, %v1323, %v1320
  %1326 = vrot.lane.b32.xlu0 %v1325, 42
  %v1327 = vpop.permute.xlu0 %1326
  %vm1328 = vcmask 392528
  %s1329 = scalar_lea.vmem %s1, 8
  %1330 = vst.msk [vmem:[%s1329] sm:$0xff] %vm1328, %v1327
  %s1331 = scalar_lea.vmem %s0, 647
  %s1332 = smov 3
  %v1333 = vld [vmem:[%s1331] ss:$16 sm:%s1332]
  %s1334 = scalar_lea.vmem %s0, 647
  %s1335 = smov 12
  %v1336 = vld [vmem:[%s1334] ss:$16 sm:%s1335]
  %vm1337 = vcmask 1043458
  %v1338 = vsel %vm1337, %v1336, %v1333
  %s1339 = scalar_lea.vmem %s0, 647
  %s1340 = smov 48
  %v1341 = vld [vmem:[%s1339] ss:$16 sm:%s1340]
  %vm1342 = vcmask 1045508
  %v1343 = vsel %vm1342, %v1341, %v1338
  %s1344 = scalar_lea.vmem %s0, 647
  %s1345 = smov 192
  %v1346 = vld [vmem:[%s1344] ss:$16 sm:%s1345]
  %vm1347 = vcmask 1047558
  %v1348 = vsel %vm1347, %v1346, %v1343
  %1349 = vrot.lane.b32.xlu0 %v1348, 42
  %v1350 = vpop.permute.xlu0 %1349
  %vm1351 = vcmask 392528
  %s1352 = scalar_lea.vmem %s1, 40
  %1353 = vst.msk [vmem:[%s1352] sm:$0xff] %vm1351, %v1350
  %s1354 = scalar_lea.vmem %s0, 263
  %s1355 = smov 3
  %v1356 = vld [vmem:[%s1354] ss:$16 sm:%s1355]
  %s1357 = scalar_lea.vmem %s0, 263
  %s1358 = smov 12
  %v1359 = vld [vmem:[%s1357] ss:$16 sm:%s1358]
  %vm1360 = vcmask 1043458
  %v1361 = vsel %vm1360, %v1359, %v1356
  %s1362 = scalar_lea.vmem %s0, 263
  %s1363 = smov 48
  %v1364 = vld [vmem:[%s1362] ss:$16 sm:%s1363]
  %vm1365 = vcmask 1045508
  %v1366 = vsel %vm1365, %v1364, %v1361
  %s1367 = scalar_lea.vmem %s0, 263
  %s1368 = smov 192
  %v1369 = vld [vmem:[%s1367] ss:$16 sm:%s1368]
  %vm1370 = vcmask 1047558
  %v1371 = vsel %vm1370, %v1369, %v1366
  %1372 = vrot.lane.b32.xlu0 %v1371, 42
  %v1373 = vpop.permute.xlu0 %1372
  %vm1374 = vcmask 392528
  %s1375 = scalar_lea.vmem %s1, 16
  %1376 = vst.msk [vmem:[%s1375] sm:$0xff] %vm1374, %v1373
  %s1377 = scalar_lea.vmem %s0, 775
  %s1378 = smov 3
  %v1379 = vld [vmem:[%s1377] ss:$16 sm:%s1378]
  %s1380 = scalar_lea.vmem %s0, 775
  %s1381 = smov 12
  %v1382 = vld [vmem:[%s1380] ss:$16 sm:%s1381]
  %vm1383 = vcmask 1043458
  %v1384 = vsel %vm1383, %v1382, %v1379
  %s1385 = scalar_lea.vmem %s0, 775
  %s1386 = smov 48
  %v1387 = vld [vmem:[%s1385] ss:$16 sm:%s1386]
  %vm1388 = vcmask 1045508
  %v1389 = vsel %vm1388, %v1387, %v1384
  %s1390 = scalar_lea.vmem %s0, 775
  %s1391 = smov 192
  %v1392 = vld [vmem:[%s1390] ss:$16 sm:%s1391]
  %vm1393 = vcmask 1047558
  %v1394 = vsel %vm1393, %v1392, %v1389
  %1395 = vrot.lane.b32.xlu0 %v1394, 42
  %v1396 = vpop.permute.xlu0 %1395
  %vm1397 = vcmask 392528
  %s1398 = scalar_lea.vmem %s1, 48
  %1399 = vst.msk [vmem:[%s1398] sm:$0xff] %vm1397, %v1396
  %s1400 = scalar_lea.vmem %s0, 391
  %s1401 = smov 3
  %v1402 = vld [vmem:[%s1400] ss:$16 sm:%s1401]
  %s1403 = scalar_lea.vmem %s0, 391
  %s1404 = smov 12
  %v1405 = vld [vmem:[%s1403] ss:$16 sm:%s1404]
  %vm1406 = vcmask 1043458
  %v1407 = vsel %vm1406, %v1405, %v1402
  %s1408 = scalar_lea.vmem %s0, 391
  %s1409 = smov 48
  %v1410 = vld [vmem:[%s1408] ss:$16 sm:%s1409]
  %vm1411 = vcmask 1045508
  %v1412 = vsel %vm1411, %v1410, %v1407
  %s1413 = scalar_lea.vmem %s0, 391
  %s1414 = smov 192
  %v1415 = vld [vmem:[%s1413] ss:$16 sm:%s1414]
  %vm1416 = vcmask 1047558
  %v1417 = vsel %vm1416, %v1415, %v1412
  %1418 = vrot.lane.b32.xlu0 %v1417, 42
  %v1419 = vpop.permute.xlu0 %1418
  %vm1420 = vcmask 392528
  %s1421 = scalar_lea.vmem %s1, 24
  %1422 = vst.msk [vmem:[%s1421] sm:$0xff] %vm1420, %v1419
  %s1423 = scalar_lea.vmem %s0, 903
  %s1424 = smov 3
  %v1425 = vld [vmem:[%s1423] ss:$16 sm:%s1424]
  %s1426 = scalar_lea.vmem %s0, 903
  %s1427 = smov 12
  %v1428 = vld [vmem:[%s1426] ss:$16 sm:%s1427]
  %vm1429 = vcmask 1043458
  %v1430 = vsel %vm1429, %v1428, %v1425
  %s1431 = scalar_lea.vmem %s0, 903
  %s1432 = smov 48
  %v1433 = vld [vmem:[%s1431] ss:$16 sm:%s1432]
  %vm1434 = vcmask 1045508
  %v1435 = vsel %vm1434, %v1433, %v1430
  %s1436 = scalar_lea.vmem %s0, 903
  %s1437 = smov 192
  %v1438 = vld [vmem:[%s1436] ss:$16 sm:%s1437]
  %vm1439 = vcmask 1047558
  %v1440 = vsel %vm1439, %v1438, %v1435
  %1441 = vrot.lane.b32.xlu0 %v1440, 42
  %v1442 = vpop.permute.xlu0 %1441
  %vm1443 = vcmask 392528
  %s1444 = scalar_lea.vmem %s1, 56
  %1445 = vst.msk [vmem:[%s1444] sm:$0xff] %vm1443, %v1442
  %s1446 = scalar_lea.vmem %s0, 6
  %s1447 = smov 3
  %v1448 = vld [vmem:[%s1446] ss:$16 sm:%s1447]
  %s1449 = scalar_lea.vmem %s0, 6
  %s1450 = smov 12
  %v1451 = vld [vmem:[%s1449] ss:$16 sm:%s1450]
  %vm1452 = vcmask 1043458
  %v1453 = vsel %vm1452, %v1451, %v1448
  %s1454 = scalar_lea.vmem %s0, 6
  %s1455 = smov 48
  %v1456 = vld [vmem:[%s1454] ss:$16 sm:%s1455]
  %vm1457 = vcmask 1045508
  %v1458 = vsel %vm1457, %v1456, %v1453
  %s1459 = scalar_lea.vmem %s0, 6
  %s1460 = smov 192
  %v1461 = vld [vmem:[%s1459] ss:$16 sm:%s1460]
  %vm1462 = vcmask 1047558
  %v1463 = vsel %vm1462, %v1461, %v1458
  %1464 = vrot.lane.b32.xlu0 %v1463, 36
  %v1465 = vpop.permute.xlu0 %1464
  %vm1466 = vcmask 343328
  %1467 = vst.msk [vmem:[%s1] sm:$0xff] %vm1466, %v1465
  %s1468 = scalar_lea.vmem %s0, 518
  %s1469 = smov 3
  %v1470 = vld [vmem:[%s1468] ss:$16 sm:%s1469]
  %s1471 = scalar_lea.vmem %s0, 518
  %s1472 = smov 12
  %v1473 = vld [vmem:[%s1471] ss:$16 sm:%s1472]
  %vm1474 = vcmask 1043458
  %v1475 = vsel %vm1474, %v1473, %v1470
  %s1476 = scalar_lea.vmem %s0, 518
  %s1477 = smov 48
  %v1478 = vld [vmem:[%s1476] ss:$16 sm:%s1477]
  %vm1479 = vcmask 1045508
  %v1480 = vsel %vm1479, %v1478, %v1475
  %s1481 = scalar_lea.vmem %s0, 518
  %s1482 = smov 192
  %v1483 = vld [vmem:[%s1481] ss:$16 sm:%s1482]
  %vm1484 = vcmask 1047558
  %v1485 = vsel %vm1484, %v1483, %v1480
  %1486 = vrot.lane.b32.xlu0 %v1485, 36
  %v1487 = vpop.permute.xlu0 %1486
  %vm1488 = vcmask 343328
  %s1489 = scalar_lea.vmem %s1, 32
  %1490 = vst.msk [vmem:[%s1489] sm:$0xff] %vm1488, %v1487
  %s1491 = scalar_lea.vmem %s0, 134
  %s1492 = smov 3
  %v1493 = vld [vmem:[%s1491] ss:$16 sm:%s1492]
  %s1494 = scalar_lea.vmem %s0, 134
  %s1495 = smov 12
  %v1496 = vld [vmem:[%s1494] ss:$16 sm:%s1495]
  %vm1497 = vcmask 1043458
  %v1498 = vsel %vm1497, %v1496, %v1493
  %s1499 = scalar_lea.vmem %s0, 134
  %s1500 = smov 48
  %v1501 = vld [vmem:[%s1499] ss:$16 sm:%s1500]
  %vm1502 = vcmask 1045508
  %v1503 = vsel %vm1502, %v1501, %v1498
  %s1504 = scalar_lea.vmem %s0, 134
  %s1505 = smov 192
  %v1506 = vld [vmem:[%s1504] ss:$16 sm:%s1505]
  %vm1507 = vcmask 1047558
  %v1508 = vsel %vm1507, %v1506, %v1503
  %1509 = vrot.lane.b32.xlu0 %v1508, 36
  %v1510 = vpop.permute.xlu0 %1509
  %vm1511 = vcmask 343328
  %s1512 = scalar_lea.vmem %s1, 8
  %1513 = vst.msk [vmem:[%s1512] sm:$0xff] %vm1511, %v1510
  %s1514 = scalar_lea.vmem %s0, 646
  %s1515 = smov 3
  %v1516 = vld [vmem:[%s1514] ss:$16 sm:%s1515]
  %s1517 = scalar_lea.vmem %s0, 646
  %s1518 = smov 12
  %v1519 = vld [vmem:[%s1517] ss:$16 sm:%s1518]
  %vm1520 = vcmask 1043458
  %v1521 = vsel %vm1520, %v1519, %v1516
  %s1522 = scalar_lea.vmem %s0, 646
  %s1523 = smov 48
  %v1524 = vld [vmem:[%s1522] ss:$16 sm:%s1523]
  %vm1525 = vcmask 1045508
  %v1526 = vsel %vm1525, %v1524, %v1521
  %s1527 = scalar_lea.vmem %s0, 646
  %s1528 = smov 192
  %v1529 = vld [vmem:[%s1527] ss:$16 sm:%s1528]
  %vm1530 = vcmask 1047558
  %v1531 = vsel %vm1530, %v1529, %v1526
  %1532 = vrot.lane.b32.xlu0 %v1531, 36
  %v1533 = vpop.permute.xlu0 %1532
  %vm1534 = vcmask 343328
  %s1535 = scalar_lea.vmem %s1, 40
  %1536 = vst.msk [vmem:[%s1535] sm:$0xff] %vm1534, %v1533
  %s1537 = scalar_lea.vmem %s0, 262
  %s1538 = smov 3
  %v1539 = vld [vmem:[%s1537] ss:$16 sm:%s1538]
  %s1540 = scalar_lea.vmem %s0, 262
  %s1541 = smov 12
  %v1542 = vld [vmem:[%s1540] ss:$16 sm:%s1541]
  %vm1543 = vcmask 1043458
  %v1544 = vsel %vm1543, %v1542, %v1539
  %s1545 = scalar_lea.vmem %s0, 262
  %s1546 = smov 48
  %v1547 = vld [vmem:[%s1545] ss:$16 sm:%s1546]
  %vm1548 = vcmask 1045508
  %v1549 = vsel %vm1548, %v1547, %v1544
  %s1550 = scalar_lea.vmem %s0, 262
  %s1551 = smov 192
  %v1552 = vld [vmem:[%s1550] ss:$16 sm:%s1551]
  %vm1553 = vcmask 1047558
  %v1554 = vsel %vm1553, %v1552, %v1549
  %1555 = vrot.lane.b32.xlu0 %v1554, 36
  %v1556 = vpop.permute.xlu0 %1555
  %vm1557 = vcmask 343328
  %s1558 = scalar_lea.vmem %s1, 16
  %1559 = vst.msk [vmem:[%s1558] sm:$0xff] %vm1557, %v1556
  %s1560 = scalar_lea.vmem %s0, 774
  %s1561 = smov 3
  %v1562 = vld [vmem:[%s1560] ss:$16 sm:%s1561]
  %s1563 = scalar_lea.vmem %s0, 774
  %s1564 = smov 12
  %v1565 = vld [vmem:[%s1563] ss:$16 sm:%s1564]
  %vm1566 = vcmask 1043458
  %v1567 = vsel %vm1566, %v1565, %v1562
  %s1568 = scalar_lea.vmem %s0, 774
  %s1569 = smov 48
  %v1570 = vld [vmem:[%s1568] ss:$16 sm:%s1569]
  %vm1571 = vcmask 1045508
  %v1572 = vsel %vm1571, %v1570, %v1567
  %s1573 = scalar_lea.vmem %s0, 774
  %s1574 = smov 192
  %v1575 = vld [vmem:[%s1573] ss:$16 sm:%s1574]
  %vm1576 = vcmask 1047558
  %v1577 = vsel %vm1576, %v1575, %v1572
  %1578 = vrot.lane.b32.xlu0 %v1577, 36
  %v1579 = vpop.permute.xlu0 %1578
  %vm1580 = vcmask 343328
  %s1581 = scalar_lea.vmem %s1, 48
  %1582 = vst.msk [vmem:[%s1581] sm:$0xff] %vm1580, %v1579
  %s1583 = scalar_lea.vmem %s0, 390
  %s1584 = smov 3
  %v1585 = vld [vmem:[%s1583] ss:$16 sm:%s1584]
  %s1586 = scalar_lea.vmem %s0, 390
  %s1587 = smov 12
  %v1588 = vld [vmem:[%s1586] ss:$16 sm:%s1587]
  %vm1589 = vcmask 1043458
  %v1590 = vsel %vm1589, %v1588, %v1585
  %s1591 = scalar_lea.vmem %s0, 390
  %s1592 = smov 48
  %v1593 = vld [vmem:[%s1591] ss:$16 sm:%s1592]
  %vm1594 = vcmask 1045508
  %v1595 = vsel %vm1594, %v1593, %v1590
  %s1596 = scalar_lea.vmem %s0, 390
  %s1597 = smov 192
  %v1598 = vld [vmem:[%s1596] ss:$16 sm:%s1597]
  %vm1599 = vcmask 1047558
  %v1600 = vsel %vm1599, %v1598, %v1595
  %1601 = vrot.lane.b32.xlu0 %v1600, 36
  %v1602 = vpop.permute.xlu0 %1601
  %vm1603 = vcmask 343328
  %s1604 = scalar_lea.vmem %s1, 24
  %1605 = vst.msk [vmem:[%s1604] sm:$0xff] %vm1603, %v1602
  %s1606 = scalar_lea.vmem %s0, 902
  %s1607 = smov 3
  %v1608 = vld [vmem:[%s1606] ss:$16 sm:%s1607]
  %s1609 = scalar_lea.vmem %s0, 902
  %s1610 = smov 12
  %v1611 = vld [vmem:[%s1609] ss:$16 sm:%s1610]
  %vm1612 = vcmask 1043458
  %v1613 = vsel %vm1612, %v1611, %v1608
  %s1614 = scalar_lea.vmem %s0, 902
  %s1615 = smov 48
  %v1616 = vld [vmem:[%s1614] ss:$16 sm:%s1615]
  %vm1617 = vcmask 1045508
  %v1618 = vsel %vm1617, %v1616, %v1613
  %s1619 = scalar_lea.vmem %s0, 902
  %s1620 = smov 192
  %v1621 = vld [vmem:[%s1619] ss:$16 sm:%s1620]
  %vm1622 = vcmask 1047558
  %v1623 = vsel %vm1622, %v1621, %v1618
  %1624 = vrot.lane.b32.xlu0 %v1623, 36
  %v1625 = vpop.permute.xlu0 %1624
  %vm1626 = vcmask 343328
  %s1627 = scalar_lea.vmem %s1, 56
  %1628 = vst.msk [vmem:[%s1627] sm:$0xff] %vm1626, %v1625
  %s1629 = scalar_lea.vmem %s0, 5
  %s1630 = smov 3
  %v1631 = vld [vmem:[%s1629] ss:$16 sm:%s1630]
  %s1632 = scalar_lea.vmem %s0, 5
  %s1633 = smov 12
  %v1634 = vld [vmem:[%s1632] ss:$16 sm:%s1633]
  %vm1635 = vcmask 1043458
  %v1636 = vsel %vm1635, %v1634, %v1631
  %s1637 = scalar_lea.vmem %s0, 5
  %s1638 = smov 48
  %v1639 = vld [vmem:[%s1637] ss:$16 sm:%s1638]
  %vm1640 = vcmask 1045508
  %v1641 = vsel %vm1640, %v1639, %v1636
  %s1642 = scalar_lea.vmem %s0, 5
  %s1643 = smov 192
  %v1644 = vld [vmem:[%s1642] ss:$16 sm:%s1643]
  %vm1645 = vcmask 1047558
  %v1646 = vsel %vm1645, %v1644, %v1641
  %1647 = vrot.lane.b32.xlu0 %v1646, 30
  %v1648 = vpop.permute.xlu0 %1647
  %vm1649 = vcmask 294128
  %1650 = vst.msk [vmem:[%s1] sm:$0xff] %vm1649, %v1648
  %s1651 = scalar_lea.vmem %s0, 517
  %s1652 = smov 3
  %v1653 = vld [vmem:[%s1651] ss:$16 sm:%s1652]
  %s1654 = scalar_lea.vmem %s0, 517
  %s1655 = smov 12
  %v1656 = vld [vmem:[%s1654] ss:$16 sm:%s1655]
  %vm1657 = vcmask 1043458
  %v1658 = vsel %vm1657, %v1656, %v1653
  %s1659 = scalar_lea.vmem %s0, 517
  %s1660 = smov 48
  %v1661 = vld [vmem:[%s1659] ss:$16 sm:%s1660]
  %vm1662 = vcmask 1045508
  %v1663 = vsel %vm1662, %v1661, %v1658
  %s1664 = scalar_lea.vmem %s0, 517
  %s1665 = smov 192
  %v1666 = vld [vmem:[%s1664] ss:$16 sm:%s1665]
  %vm1667 = vcmask 1047558
  %v1668 = vsel %vm1667, %v1666, %v1663
  %1669 = vrot.lane.b32.xlu0 %v1668, 30
  %v1670 = vpop.permute.xlu0 %1669
  %vm1671 = vcmask 294128
  %s1672 = scalar_lea.vmem %s1, 32
  %1673 = vst.msk [vmem:[%s1672] sm:$0xff] %vm1671, %v1670
  %s1674 = scalar_lea.vmem %s0, 133
  %s1675 = smov 3
  %v1676 = vld [vmem:[%s1674] ss:$16 sm:%s1675]
  %s1677 = scalar_lea.vmem %s0, 133
  %s1678 = smov 12
  %v1679 = vld [vmem:[%s1677] ss:$16 sm:%s1678]
  %vm1680 = vcmask 1043458
  %v1681 = vsel %vm1680, %v1679, %v1676
  %s1682 = scalar_lea.vmem %s0, 133
  %s1683 = smov 48
  %v1684 = vld [vmem:[%s1682] ss:$16 sm:%s1683]
  %vm1685 = vcmask 1045508
  %v1686 = vsel %vm1685, %v1684, %v1681
  %s1687 = scalar_lea.vmem %s0, 133
  %s1688 = smov 192
  %v1689 = vld [vmem:[%s1687] ss:$16 sm:%s1688]
  %vm1690 = vcmask 1047558
  %v1691 = vsel %vm1690, %v1689, %v1686
  %1692 = vrot.lane.b32.xlu0 %v1691, 30
  %v1693 = vpop.permute.xlu0 %1692
  %vm1694 = vcmask 294128
  %s1695 = scalar_lea.vmem %s1, 8
  %1696 = vst.msk [vmem:[%s1695] sm:$0xff] %vm1694, %v1693
  %s1697 = scalar_lea.vmem %s0, 645
  %s1698 = smov 3
  %v1699 = vld [vmem:[%s1697] ss:$16 sm:%s1698]
  %s1700 = scalar_lea.vmem %s0, 645
  %s1701 = smov 12
  %v1702 = vld [vmem:[%s1700] ss:$16 sm:%s1701]
  %vm1703 = vcmask 1043458
  %v1704 = vsel %vm1703, %v1702, %v1699
  %s1705 = scalar_lea.vmem %s0, 645
  %s1706 = smov 48
  %v1707 = vld [vmem:[%s1705] ss:$16 sm:%s1706]
  %vm1708 = vcmask 1045508
  %v1709 = vsel %vm1708, %v1707, %v1704
  %s1710 = scalar_lea.vmem %s0, 645
  %s1711 = smov 192
  %v1712 = vld [vmem:[%s1710] ss:$16 sm:%s1711]
  %vm1713 = vcmask 1047558
  %v1714 = vsel %vm1713, %v1712, %v1709
  %1715 = vrot.lane.b32.xlu0 %v1714, 30
  %v1716 = vpop.permute.xlu0 %1715
  %vm1717 = vcmask 294128
  %s1718 = scalar_lea.vmem %s1, 40
  %1719 = vst.msk [vmem:[%s1718] sm:$0xff] %vm1717, %v1716
  %s1720 = scalar_lea.vmem %s0, 261
  %s1721 = smov 3
  %v1722 = vld [vmem:[%s1720] ss:$16 sm:%s1721]
  %s1723 = scalar_lea.vmem %s0, 261
  %s1724 = smov 12
  %v1725 = vld [vmem:[%s1723] ss:$16 sm:%s1724]
  %vm1726 = vcmask 1043458
  %v1727 = vsel %vm1726, %v1725, %v1722
  %s1728 = scalar_lea.vmem %s0, 261
  %s1729 = smov 48
  %v1730 = vld [vmem:[%s1728] ss:$16 sm:%s1729]
  %vm1731 = vcmask 1045508
  %v1732 = vsel %vm1731, %v1730, %v1727
  %s1733 = scalar_lea.vmem %s0, 261
  %s1734 = smov 192
  %v1735 = vld [vmem:[%s1733] ss:$16 sm:%s1734]
  %vm1736 = vcmask 1047558
  %v1737 = vsel %vm1736, %v1735, %v1732
  %1738 = vrot.lane.b32.xlu0 %v1737, 30
  %v1739 = vpop.permute.xlu0 %1738
  %vm1740 = vcmask 294128
  %s1741 = scalar_lea.vmem %s1, 16
  %1742 = vst.msk [vmem:[%s1741] sm:$0xff] %vm1740, %v1739
  %s1743 = scalar_lea.vmem %s0, 773
  %s1744 = smov 3
  %v1745 = vld [vmem:[%s1743] ss:$16 sm:%s1744]
  %s1746 = scalar_lea.vmem %s0, 773
  %s1747 = smov 12
  %v1748 = vld [vmem:[%s1746] ss:$16 sm:%s1747]
  %vm1749 = vcmask 1043458
  %v1750 = vsel %vm1749, %v1748, %v1745
  %s1751 = scalar_lea.vmem %s0, 773
  %s1752 = smov 48
  %v1753 = vld [vmem:[%s1751] ss:$16 sm:%s1752]
  %vm1754 = vcmask 1045508
  %v1755 = vsel %vm1754, %v1753, %v1750
  %s1756 = scalar_lea.vmem %s0, 773
  %s1757 = smov 192
  %v1758 = vld [vmem:[%s1756] ss:$16 sm:%s1757]
  %vm1759 = vcmask 1047558
  %v1760 = vsel %vm1759, %v1758, %v1755
  %1761 = vrot.lane.b32.xlu0 %v1760, 30
  %v1762 = vpop.permute.xlu0 %1761
  %vm1763 = vcmask 294128
  %s1764 = scalar_lea.vmem %s1, 48
  %1765 = vst.msk [vmem:[%s1764] sm:$0xff] %vm1763, %v1762
  %s1766 = scalar_lea.vmem %s0, 389
  %s1767 = smov 3
  %v1768 = vld [vmem:[%s1766] ss:$16 sm:%s1767]
  %s1769 = scalar_lea.vmem %s0, 389
  %s1770 = smov 12
  %v1771 = vld [vmem:[%s1769] ss:$16 sm:%s1770]
  %vm1772 = vcmask 1043458
  %v1773 = vsel %vm1772, %v1771, %v1768
  %s1774 = scalar_lea.vmem %s0, 389
  %s1775 = smov 48
  %v1776 = vld [vmem:[%s1774] ss:$16 sm:%s1775]
  %vm1777 = vcmask 1045508
  %v1778 = vsel %vm1777, %v1776, %v1773
  %s1779 = scalar_lea.vmem %s0, 389
  %s1780 = smov 192
  %v1781 = vld [vmem:[%s1779] ss:$16 sm:%s1780]
  %vm1782 = vcmask 1047558
  %v1783 = vsel %vm1782, %v1781, %v1778
  %1784 = vrot.lane.b32.xlu0 %v1783, 30
  %v1785 = vpop.permute.xlu0 %1784
  %vm1786 = vcmask 294128
  %s1787 = scalar_lea.vmem %s1, 24
  %1788 = vst.msk [vmem:[%s1787] sm:$0xff] %vm1786, %v1785
  %s1789 = scalar_lea.vmem %s0, 901
  %s1790 = smov 3
  %v1791 = vld [vmem:[%s1789] ss:$16 sm:%s1790]
  %s1792 = scalar_lea.vmem %s0, 901
  %s1793 = smov 12
  %v1794 = vld [vmem:[%s1792] ss:$16 sm:%s1793]
  %vm1795 = vcmask 1043458
  %v1796 = vsel %vm1795, %v1794, %v1791
  %s1797 = scalar_lea.vmem %s0, 901
  %s1798 = smov 48
  %v1799 = vld [vmem:[%s1797] ss:$16 sm:%s1798]
  %vm1800 = vcmask 1045508
  %v1801 = vsel %vm1800, %v1799, %v1796
  %s1802 = scalar_lea.vmem %s0, 901
  %s1803 = smov 192
  %v1804 = vld [vmem:[%s1802] ss:$16 sm:%s1803]
  %vm1805 = vcmask 1047558
  %v1806 = vsel %vm1805, %v1804, %v1801
  %1807 = vrot.lane.b32.xlu0 %v1806, 30
  %v1808 = vpop.permute.xlu0 %1807
  %vm1809 = vcmask 294128
  %s1810 = scalar_lea.vmem %s1, 56
  %1811 = vst.msk [vmem:[%s1810] sm:$0xff] %vm1809, %v1808
  %s1812 = scalar_lea.vmem %s0, 4
  %s1813 = smov 3
  %v1814 = vld [vmem:[%s1812] ss:$16 sm:%s1813]
  %s1815 = scalar_lea.vmem %s0, 4
  %s1816 = smov 12
  %v1817 = vld [vmem:[%s1815] ss:$16 sm:%s1816]
  %vm1818 = vcmask 1043458
  %v1819 = vsel %vm1818, %v1817, %v1814
  %s1820 = scalar_lea.vmem %s0, 4
  %s1821 = smov 48
  %v1822 = vld [vmem:[%s1820] ss:$16 sm:%s1821]
  %vm1823 = vcmask 1045508
  %v1824 = vsel %vm1823, %v1822, %v1819
  %s1825 = scalar_lea.vmem %s0, 4
  %s1826 = smov 192
  %v1827 = vld [vmem:[%s1825] ss:$16 sm:%s1826]
  %vm1828 = vcmask 1047558
  %v1829 = vsel %vm1828, %v1827, %v1824
  %1830 = vrot.lane.b32.xlu0 %v1829, 24
  %v1831 = vpop.permute.xlu0 %1830
  %vm1832 = vcmask 244928
  %1833 = vst.msk [vmem:[%s1] sm:$0xff] %vm1832, %v1831
  %s1834 = scalar_lea.vmem %s0, 516
  %s1835 = smov 3
  %v1836 = vld [vmem:[%s1834] ss:$16 sm:%s1835]
  %s1837 = scalar_lea.vmem %s0, 516
  %s1838 = smov 12
  %v1839 = vld [vmem:[%s1837] ss:$16 sm:%s1838]
  %vm1840 = vcmask 1043458
  %v1841 = vsel %vm1840, %v1839, %v1836
  %s1842 = scalar_lea.vmem %s0, 516
  %s1843 = smov 48
  %v1844 = vld [vmem:[%s1842] ss:$16 sm:%s1843]
  %vm1845 = vcmask 1045508
  %v1846 = vsel %vm1845, %v1844, %v1841
  %s1847 = scalar_lea.vmem %s0, 516
  %s1848 = smov 192
  %v1849 = vld [vmem:[%s1847] ss:$16 sm:%s1848]
  %vm1850 = vcmask 1047558
  %v1851 = vsel %vm1850, %v1849, %v1846
  %1852 = vrot.lane.b32.xlu0 %v1851, 24
  %v1853 = vpop.permute.xlu0 %1852
  %vm1854 = vcmask 244928
  %s1855 = scalar_lea.vmem %s1, 32
  %1856 = vst.msk [vmem:[%s1855] sm:$0xff] %vm1854, %v1853
  %s1857 = scalar_lea.vmem %s0, 132
  %s1858 = smov 3
  %v1859 = vld [vmem:[%s1857] ss:$16 sm:%s1858]
  %s1860 = scalar_lea.vmem %s0, 132
  %s1861 = smov 12
  %v1862 = vld [vmem:[%s1860] ss:$16 sm:%s1861]
  %vm1863 = vcmask 1043458
  %v1864 = vsel %vm1863, %v1862, %v1859
  %s1865 = scalar_lea.vmem %s0, 132
  %s1866 = smov 48
  %v1867 = vld [vmem:[%s1865] ss:$16 sm:%s1866]
  %vm1868 = vcmask 1045508
  %v1869 = vsel %vm1868, %v1867, %v1864
  %s1870 = scalar_lea.vmem %s0, 132
  %s1871 = smov 192
  %v1872 = vld [vmem:[%s1870] ss:$16 sm:%s1871]
  %vm1873 = vcmask 1047558
  %v1874 = vsel %vm1873, %v1872, %v1869
  %1875 = vrot.lane.b32.xlu0 %v1874, 24
  %v1876 = vpop.permute.xlu0 %1875
  %vm1877 = vcmask 244928
  %s1878 = scalar_lea.vmem %s1, 8
  %1879 = vst.msk [vmem:[%s1878] sm:$0xff] %vm1877, %v1876
  %s1880 = scalar_lea.vmem %s0, 644
  %s1881 = smov 3
  %v1882 = vld [vmem:[%s1880] ss:$16 sm:%s1881]
  %s1883 = scalar_lea.vmem %s0, 644
  %s1884 = smov 12
  %v1885 = vld [vmem:[%s1883] ss:$16 sm:%s1884]
  %vm1886 = vcmask 1043458
  %v1887 = vsel %vm1886, %v1885, %v1882
  %s1888 = scalar_lea.vmem %s0, 644
  %s1889 = smov 48
  %v1890 = vld [vmem:[%s1888] ss:$16 sm:%s1889]
  %vm1891 = vcmask 1045508
  %v1892 = vsel %vm1891, %v1890, %v1887
  %s1893 = scalar_lea.vmem %s0, 644
  %s1894 = smov 192
  %v1895 = vld [vmem:[%s1893] ss:$16 sm:%s1894]
  %vm1896 = vcmask 1047558
  %v1897 = vsel %vm1896, %v1895, %v1892
  %1898 = vrot.lane.b32.xlu0 %v1897, 24
  %v1899 = vpop.permute.xlu0 %1898
  %vm1900 = vcmask 244928
  %s1901 = scalar_lea.vmem %s1, 40
  %1902 = vst.msk [vmem:[%s1901] sm:$0xff] %vm1900, %v1899
  %s1903 = scalar_lea.vmem %s0, 260
  %s1904 = smov 3
  %v1905 = vld [vmem:[%s1903] ss:$16 sm:%s1904]
  %s1906 = scalar_lea.vmem %s0, 260
  %s1907 = smov 12
  %v1908 = vld [vmem:[%s1906] ss:$16 sm:%s1907]
  %vm1909 = vcmask 1043458
  %v1910 = vsel %vm1909, %v1908, %v1905
  %s1911 = scalar_lea.vmem %s0, 260
  %s1912 = smov 48
  %v1913 = vld [vmem:[%s1911] ss:$16 sm:%s1912]
  %vm1914 = vcmask 1045508
  %v1915 = vsel %vm1914, %v1913, %v1910
  %s1916 = scalar_lea.vmem %s0, 260
  %s1917 = smov 192
  %v1918 = vld [vmem:[%s1916] ss:$16 sm:%s1917]
  %vm1919 = vcmask 1047558
  %v1920 = vsel %vm1919, %v1918, %v1915
  %1921 = vrot.lane.b32.xlu0 %v1920, 24
  %v1922 = vpop.permute.xlu0 %1921
  %vm1923 = vcmask 244928
  %s1924 = scalar_lea.vmem %s1, 16
  %1925 = vst.msk [vmem:[%s1924] sm:$0xff] %vm1923, %v1922
  %s1926 = scalar_lea.vmem %s0, 772
  %s1927 = smov 3
  %v1928 = vld [vmem:[%s1926] ss:$16 sm:%s1927]
  %s1929 = scalar_lea.vmem %s0, 772
  %s1930 = smov 12
  %v1931 = vld [vmem:[%s1929] ss:$16 sm:%s1930]
  %vm1932 = vcmask 1043458
  %v1933 = vsel %vm1932, %v1931, %v1928
  %s1934 = scalar_lea.vmem %s0, 772
  %s1935 = smov 48
  %v1936 = vld [vmem:[%s1934] ss:$16 sm:%s1935]
  %vm1937 = vcmask 1045508
  %v1938 = vsel %vm1937, %v1936, %v1933
  %s1939 = scalar_lea.vmem %s0, 772
  %s1940 = smov 192
  %v1941 = vld [vmem:[%s1939] ss:$16 sm:%s1940]
  %vm1942 = vcmask 1047558
  %v1943 = vsel %vm1942, %v1941, %v1938
  %1944 = vrot.lane.b32.xlu0 %v1943, 24
  %v1945 = vpop.permute.xlu0 %1944
  %vm1946 = vcmask 244928
  %s1947 = scalar_lea.vmem %s1, 48
  %1948 = vst.msk [vmem:[%s1947] sm:$0xff] %vm1946, %v1945
  %s1949 = scalar_lea.vmem %s0, 388
  %s1950 = smov 3
  %v1951 = vld [vmem:[%s1949] ss:$16 sm:%s1950]
  %s1952 = scalar_lea.vmem %s0, 388
  %s1953 = smov 12
  %v1954 = vld [vmem:[%s1952] ss:$16 sm:%s1953]
  %vm1955 = vcmask 1043458
  %v1956 = vsel %vm1955, %v1954, %v1951
  %s1957 = scalar_lea.vmem %s0, 388
  %s1958 = smov 48
  %v1959 = vld [vmem:[%s1957] ss:$16 sm:%s1958]
  %vm1960 = vcmask 1045508
  %v1961 = vsel %vm1960, %v1959, %v1956
  %s1962 = scalar_lea.vmem %s0, 388
  %s1963 = smov 192
  %v1964 = vld [vmem:[%s1962] ss:$16 sm:%s1963]
  %vm1965 = vcmask 1047558
  %v1966 = vsel %vm1965, %v1964, %v1961
  %1967 = vrot.lane.b32.xlu0 %v1966, 24
  %v1968 = vpop.permute.xlu0 %1967
  %vm1969 = vcmask 244928
  %s1970 = scalar_lea.vmem %s1, 24
  %1971 = vst.msk [vmem:[%s1970] sm:$0xff] %vm1969, %v1968
  %s1972 = scalar_lea.vmem %s0, 900
  %s1973 = smov 3
  %v1974 = vld [vmem:[%s1972] ss:$16 sm:%s1973]
  %s1975 = scalar_lea.vmem %s0, 900
  %s1976 = smov 12
  %v1977 = vld [vmem:[%s1975] ss:$16 sm:%s1976]
  %vm1978 = vcmask 1043458
  %v1979 = vsel %vm1978, %v1977, %v1974
  %s1980 = scalar_lea.vmem %s0, 900
  %s1981 = smov 48
  %v1982 = vld [vmem:[%s1980] ss:$16 sm:%s1981]
  %vm1983 = vcmask 1045508
  %v1984 = vsel %vm1983, %v1982, %v1979
  %s1985 = scalar_lea.vmem %s0, 900
  %s1986 = smov 192
  %v1987 = vld [vmem:[%s1985] ss:$16 sm:%s1986]
  %vm1988 = vcmask 1047558
  %v1989 = vsel %vm1988, %v1987, %v1984
  %1990 = vrot.lane.b32.xlu0 %v1989, 24
  %v1991 = vpop.permute.xlu0 %1990
  %vm1992 = vcmask 244928
  %s1993 = scalar_lea.vmem %s1, 56
  %1994 = vst.msk [vmem:[%s1993] sm:$0xff] %vm1992, %v1991
  %s1995 = scalar_lea.vmem %s0, 3
  %s1996 = smov 3
  %v1997 = vld [vmem:[%s1995] ss:$16 sm:%s1996]
  %s1998 = scalar_lea.vmem %s0, 3
  %s1999 = smov 12
  %v2000 = vld [vmem:[%s1998] ss:$16 sm:%s1999]
  %vm2001 = vcmask 1043458
  %v2002 = vsel %vm2001, %v2000, %v1997
  %s2003 = scalar_lea.vmem %s0, 3
  %s2004 = smov 48
  %v2005 = vld [vmem:[%s2003] ss:$16 sm:%s2004]
  %vm2006 = vcmask 1045508
  %v2007 = vsel %vm2006, %v2005, %v2002
  %s2008 = scalar_lea.vmem %s0, 3
  %s2009 = smov 192
  %v2010 = vld [vmem:[%s2008] ss:$16 sm:%s2009]
  %vm2011 = vcmask 1047558
  %v2012 = vsel %vm2011, %v2010, %v2007
  %2013 = vrot.lane.b32.xlu0 %v2012, 18
  %v2014 = vpop.permute.xlu0 %2013
  %vm2015 = vcmask 195728
  %2016 = vst.msk [vmem:[%s1] sm:$0xff] %vm2015, %v2014
  %s2017 = scalar_lea.vmem %s0, 515
  %s2018 = smov 3
  %v2019 = vld [vmem:[%s2017] ss:$16 sm:%s2018]
  %s2020 = scalar_lea.vmem %s0, 515
  %s2021 = smov 12
  %v2022 = vld [vmem:[%s2020] ss:$16 sm:%s2021]
  %vm2023 = vcmask 1043458
  %v2024 = vsel %vm2023, %v2022, %v2019
  %s2025 = scalar_lea.vmem %s0, 515
  %s2026 = smov 48
  %v2027 = vld [vmem:[%s2025] ss:$16 sm:%s2026]
  %vm2028 = vcmask 1045508
  %v2029 = vsel %vm2028, %v2027, %v2024
  %s2030 = scalar_lea.vmem %s0, 515
  %s2031 = smov 192
  %v2032 = vld [vmem:[%s2030] ss:$16 sm:%s2031]
  %vm2033 = vcmask 1047558
  %v2034 = vsel %vm2033, %v2032, %v2029
  %2035 = vrot.lane.b32.xlu0 %v2034, 18
  %v2036 = vpop.permute.xlu0 %2035
  %vm2037 = vcmask 195728
  %s2038 = scalar_lea.vmem %s1, 32
  %2039 = vst.msk [vmem:[%s2038] sm:$0xff] %vm2037, %v2036
  %s2040 = scalar_lea.vmem %s0, 131
  %s2041 = smov 3
  %v2042 = vld [vmem:[%s2040] ss:$16 sm:%s2041]
  %s2043 = scalar_lea.vmem %s0, 131
  %s2044 = smov 12
  %v2045 = vld [vmem:[%s2043] ss:$16 sm:%s2044]
  %vm2046 = vcmask 1043458
  %v2047 = vsel %vm2046, %v2045, %v2042
  %s2048 = scalar_lea.vmem %s0, 131
  %s2049 = smov 48
  %v2050 = vld [vmem:[%s2048] ss:$16 sm:%s2049]
  %vm2051 = vcmask 1045508
  %v2052 = vsel %vm2051, %v2050, %v2047
  %s2053 = scalar_lea.vmem %s0, 131
  %s2054 = smov 192
  %v2055 = vld [vmem:[%s2053] ss:$16 sm:%s2054]
  %vm2056 = vcmask 1047558
  %v2057 = vsel %vm2056, %v2055, %v2052
  %2058 = vrot.lane.b32.xlu0 %v2057, 18
  %v2059 = vpop.permute.xlu0 %2058
  %vm2060 = vcmask 195728
  %s2061 = scalar_lea.vmem %s1, 8
  %2062 = vst.msk [vmem:[%s2061] sm:$0xff] %vm2060, %v2059
  %s2063 = scalar_lea.vmem %s0, 643
  %s2064 = smov 3
  %v2065 = vld [vmem:[%s2063] ss:$16 sm:%s2064]
  %s2066 = scalar_lea.vmem %s0, 643
  %s2067 = smov 12
  %v2068 = vld [vmem:[%s2066] ss:$16 sm:%s2067]
  %vm2069 = vcmask 1043458
  %v2070 = vsel %vm2069, %v2068, %v2065
  %s2071 = scalar_lea.vmem %s0, 643
  %s2072 = smov 48
  %v2073 = vld [vmem:[%s2071] ss:$16 sm:%s2072]
  %vm2074 = vcmask 1045508
  %v2075 = vsel %vm2074, %v2073, %v2070
  %s2076 = scalar_lea.vmem %s0, 643
  %s2077 = smov 192
  %v2078 = vld [vmem:[%s2076] ss:$16 sm:%s2077]
  %vm2079 = vcmask 1047558
  %v2080 = vsel %vm2079, %v2078, %v2075
  %2081 = vrot.lane.b32.xlu0 %v2080, 18
  %v2082 = vpop.permute.xlu0 %2081
  %vm2083 = vcmask 195728
  %s2084 = scalar_lea.vmem %s1, 40
  %2085 = vst.msk [vmem:[%s2084] sm:$0xff] %vm2083, %v2082
  %s2086 = scalar_lea.vmem %s0, 259
  %s2087 = smov 3
  %v2088 = vld [vmem:[%s2086] ss:$16 sm:%s2087]
  %s2089 = scalar_lea.vmem %s0, 259
  %s2090 = smov 12
  %v2091 = vld [vmem:[%s2089] ss:$16 sm:%s2090]
  %vm2092 = vcmask 1043458
  %v2093 = vsel %vm2092, %v2091, %v2088
  %s2094 = scalar_lea.vmem %s0, 259
  %s2095 = smov 48
  %v2096 = vld [vmem:[%s2094] ss:$16 sm:%s2095]
  %vm2097 = vcmask 1045508
  %v2098 = vsel %vm2097, %v2096, %v2093
  %s2099 = scalar_lea.vmem %s0, 259
  %s2100 = smov 192
  %v2101 = vld [vmem:[%s2099] ss:$16 sm:%s2100]
  %vm2102 = vcmask 1047558
  %v2103 = vsel %vm2102, %v2101, %v2098
  %2104 = vrot.lane.b32.xlu0 %v2103, 18
  %v2105 = vpop.permute.xlu0 %2104
  %vm2106 = vcmask 195728
  %s2107 = scalar_lea.vmem %s1, 16
  %2108 = vst.msk [vmem:[%s2107] sm:$0xff] %vm2106, %v2105
  %s2109 = scalar_lea.vmem %s0, 771
  %s2110 = smov 3
  %v2111 = vld [vmem:[%s2109] ss:$16 sm:%s2110]
  %s2112 = scalar_lea.vmem %s0, 771
  %s2113 = smov 12
  %v2114 = vld [vmem:[%s2112] ss:$16 sm:%s2113]
  %vm2115 = vcmask 1043458
  %v2116 = vsel %vm2115, %v2114, %v2111
  %s2117 = scalar_lea.vmem %s0, 771
  %s2118 = smov 48
  %v2119 = vld [vmem:[%s2117] ss:$16 sm:%s2118]
  %vm2120 = vcmask 1045508
  %v2121 = vsel %vm2120, %v2119, %v2116
  %s2122 = scalar_lea.vmem %s0, 771
  %s2123 = smov 192
  %v2124 = vld [vmem:[%s2122] ss:$16 sm:%s2123]
  %vm2125 = vcmask 1047558
  %v2126 = vsel %vm2125, %v2124, %v2121
  %2127 = vrot.lane.b32.xlu0 %v2126, 18
  %v2128 = vpop.permute.xlu0 %2127
  %vm2129 = vcmask 195728
  %s2130 = scalar_lea.vmem %s1, 48
  %2131 = vst.msk [vmem:[%s2130] sm:$0xff] %vm2129, %v2128
  %s2132 = scalar_lea.vmem %s0, 387
  %s2133 = smov 3
  %v2134 = vld [vmem:[%s2132] ss:$16 sm:%s2133]
  %s2135 = scalar_lea.vmem %s0, 387
  %s2136 = smov 12
  %v2137 = vld [vmem:[%s2135] ss:$16 sm:%s2136]
  %vm2138 = vcmask 1043458
  %v2139 = vsel %vm2138, %v2137, %v2134
  %s2140 = scalar_lea.vmem %s0, 387
  %s2141 = smov 48
  %v2142 = vld [vmem:[%s2140] ss:$16 sm:%s2141]
  %vm2143 = vcmask 1045508
  %v2144 = vsel %vm2143, %v2142, %v2139
  %s2145 = scalar_lea.vmem %s0, 387
  %s2146 = smov 192
  %v2147 = vld [vmem:[%s2145] ss:$16 sm:%s2146]
  %vm2148 = vcmask 1047558
  %v2149 = vsel %vm2148, %v2147, %v2144
  %2150 = vrot.lane.b32.xlu0 %v2149, 18
  %v2151 = vpop.permute.xlu0 %2150
  %vm2152 = vcmask 195728
  %s2153 = scalar_lea.vmem %s1, 24
  %2154 = vst.msk [vmem:[%s2153] sm:$0xff] %vm2152, %v2151
  %s2155 = scalar_lea.vmem %s0, 899
  %s2156 = smov 3
  %v2157 = vld [vmem:[%s2155] ss:$16 sm:%s2156]
  %s2158 = scalar_lea.vmem %s0, 899
  %s2159 = smov 12
  %v2160 = vld [vmem:[%s2158] ss:$16 sm:%s2159]
  %vm2161 = vcmask 1043458
  %v2162 = vsel %vm2161, %v2160, %v2157
  %s2163 = scalar_lea.vmem %s0, 899
  %s2164 = smov 48
  %v2165 = vld [vmem:[%s2163] ss:$16 sm:%s2164]
  %vm2166 = vcmask 1045508
  %v2167 = vsel %vm2166, %v2165, %v2162
  %s2168 = scalar_lea.vmem %s0, 899
  %s2169 = smov 192
  %v2170 = vld [vmem:[%s2168] ss:$16 sm:%s2169]
  %vm2171 = vcmask 1047558
  %v2172 = vsel %vm2171, %v2170, %v2167
  %2173 = vrot.lane.b32.xlu0 %v2172, 18
  %v2174 = vpop.permute.xlu0 %2173
  %vm2175 = vcmask 195728
  %s2176 = scalar_lea.vmem %s1, 56
  %2177 = vst.msk [vmem:[%s2176] sm:$0xff] %vm2175, %v2174
  %s2178 = scalar_lea.vmem %s0, 2
  %s2179 = smov 3
  %v2180 = vld [vmem:[%s2178] ss:$16 sm:%s2179]
  %s2181 = scalar_lea.vmem %s0, 2
  %s2182 = smov 12
  %v2183 = vld [vmem:[%s2181] ss:$16 sm:%s2182]
  %vm2184 = vcmask 1043458
  %v2185 = vsel %vm2184, %v2183, %v2180
  %s2186 = scalar_lea.vmem %s0, 2
  %s2187 = smov 48
  %v2188 = vld [vmem:[%s2186] ss:$16 sm:%s2187]
  %vm2189 = vcmask 1045508
  %v2190 = vsel %vm2189, %v2188, %v2185
  %s2191 = scalar_lea.vmem %s0, 2
  %s2192 = smov 192
  %v2193 = vld [vmem:[%s2191] ss:$16 sm:%s2192]
  %vm2194 = vcmask 1047558
  %v2195 = vsel %vm2194, %v2193, %v2190
  %2196 = vrot.lane.b32.xlu0 %v2195, 12
  %v2197 = vpop.permute.xlu0 %2196
  %vm2198 = vcmask 146528
  %2199 = vst.msk [vmem:[%s1] sm:$0xff] %vm2198, %v2197
  %s2200 = scalar_lea.vmem %s0, 514
  %s2201 = smov 3
  %v2202 = vld [vmem:[%s2200] ss:$16 sm:%s2201]
  %s2203 = scalar_lea.vmem %s0, 514
  %s2204 = smov 12
  %v2205 = vld [vmem:[%s2203] ss:$16 sm:%s2204]
  %vm2206 = vcmask 1043458
  %v2207 = vsel %vm2206, %v2205, %v2202
  %s2208 = scalar_lea.vmem %s0, 514
  %s2209 = smov 48
  %v2210 = vld [vmem:[%s2208] ss:$16 sm:%s2209]
  %vm2211 = vcmask 1045508
  %v2212 = vsel %vm2211, %v2210, %v2207
  %s2213 = scalar_lea.vmem %s0, 514
  %s2214 = smov 192
  %v2215 = vld [vmem:[%s2213] ss:$16 sm:%s2214]
  %vm2216 = vcmask 1047558
  %v2217 = vsel %vm2216, %v2215, %v2212
  %2218 = vrot.lane.b32.xlu0 %v2217, 12
  %v2219 = vpop.permute.xlu0 %2218
  %vm2220 = vcmask 146528
  %s2221 = scalar_lea.vmem %s1, 32
  %2222 = vst.msk [vmem:[%s2221] sm:$0xff] %vm2220, %v2219
  %s2223 = scalar_lea.vmem %s0, 130
  %s2224 = smov 3
  %v2225 = vld [vmem:[%s2223] ss:$16 sm:%s2224]
  %s2226 = scalar_lea.vmem %s0, 130
  %s2227 = smov 12
  %v2228 = vld [vmem:[%s2226] ss:$16 sm:%s2227]
  %vm2229 = vcmask 1043458
  %v2230 = vsel %vm2229, %v2228, %v2225
  %s2231 = scalar_lea.vmem %s0, 130
  %s2232 = smov 48
  %v2233 = vld [vmem:[%s2231] ss:$16 sm:%s2232]
  %vm2234 = vcmask 1045508
  %v2235 = vsel %vm2234, %v2233, %v2230
  %s2236 = scalar_lea.vmem %s0, 130
  %s2237 = smov 192
  %v2238 = vld [vmem:[%s2236] ss:$16 sm:%s2237]
  %vm2239 = vcmask 1047558
  %v2240 = vsel %vm2239, %v2238, %v2235
  %2241 = vrot.lane.b32.xlu0 %v2240, 12
  %v2242 = vpop.permute.xlu0 %2241
  %vm2243 = vcmask 146528
  %s2244 = scalar_lea.vmem %s1, 8
  %2245 = vst.msk [vmem:[%s2244] sm:$0xff] %vm2243, %v2242
  %s2246 = scalar_lea.vmem %s0, 642
  %s2247 = smov 3
  %v2248 = vld [vmem:[%s2246] ss:$16 sm:%s2247]
  %s2249 = scalar_lea.vmem %s0, 642
  %s2250 = smov 12
  %v2251 = vld [vmem:[%s2249] ss:$16 sm:%s2250]
  %vm2252 = vcmask 1043458
  %v2253 = vsel %vm2252, %v2251, %v2248
  %s2254 = scalar_lea.vmem %s0, 642
  %s2255 = smov 48
  %v2256 = vld [vmem:[%s2254] ss:$16 sm:%s2255]
  %vm2257 = vcmask 1045508
  %v2258 = vsel %vm2257, %v2256, %v2253
  %s2259 = scalar_lea.vmem %s0, 642
  %s2260 = smov 192
  %v2261 = vld [vmem:[%s2259] ss:$16 sm:%s2260]
  %vm2262 = vcmask 1047558
  %v2263 = vsel %vm2262, %v2261, %v2258
  %2264 = vrot.lane.b32.xlu0 %v2263, 12
  %v2265 = vpop.permute.xlu0 %2264
  %vm2266 = vcmask 146528
  %s2267 = scalar_lea.vmem %s1, 40
  %2268 = vst.msk [vmem:[%s2267] sm:$0xff] %vm2266, %v2265
  %s2269 = scalar_lea.vmem %s0, 258
  %s2270 = smov 3
  %v2271 = vld [vmem:[%s2269] ss:$16 sm:%s2270]
  %s2272 = scalar_lea.vmem %s0, 258
  %s2273 = smov 12
  %v2274 = vld [vmem:[%s2272] ss:$16 sm:%s2273]
  %vm2275 = vcmask 1043458
  %v2276 = vsel %vm2275, %v2274, %v2271
  %s2277 = scalar_lea.vmem %s0, 258
  %s2278 = smov 48
  %v2279 = vld [vmem:[%s2277] ss:$16 sm:%s2278]
  %vm2280 = vcmask 1045508
  %v2281 = vsel %vm2280, %v2279, %v2276
  %s2282 = scalar_lea.vmem %s0, 258
  %s2283 = smov 192
  %v2284 = vld [vmem:[%s2282] ss:$16 sm:%s2283]
  %vm2285 = vcmask 1047558
  %v2286 = vsel %vm2285, %v2284, %v2281
  %2287 = vrot.lane.b32.xlu0 %v2286, 12
  %v2288 = vpop.permute.xlu0 %2287
  %vm2289 = vcmask 146528
  %s2290 = scalar_lea.vmem %s1, 16
  %2291 = vst.msk [vmem:[%s2290] sm:$0xff] %vm2289, %v2288
  %s2292 = scalar_lea.vmem %s0, 770
  %s2293 = smov 3
  %v2294 = vld [vmem:[%s2292] ss:$16 sm:%s2293]
  %s2295 = scalar_lea.vmem %s0, 770
  %s2296 = smov 12
  %v2297 = vld [vmem:[%s2295] ss:$16 sm:%s2296]
  %vm2298 = vcmask 1043458
  %v2299 = vsel %vm2298, %v2297, %v2294
  %s2300 = scalar_lea.vmem %s0, 770
  %s2301 = smov 48
  %v2302 = vld [vmem:[%s2300] ss:$16 sm:%s2301]
  %vm2303 = vcmask 1045508
  %v2304 = vsel %vm2303, %v2302, %v2299
  %s2305 = scalar_lea.vmem %s0, 770
  %s2306 = smov 192
  %v2307 = vld [vmem:[%s2305] ss:$16 sm:%s2306]
  %vm2308 = vcmask 1047558
  %v2309 = vsel %vm2308, %v2307, %v2304
  %2310 = vrot.lane.b32.xlu0 %v2309, 12
  %v2311 = vpop.permute.xlu0 %2310
  %vm2312 = vcmask 146528
  %s2313 = scalar_lea.vmem %s1, 48
  %2314 = vst.msk [vmem:[%s2313] sm:$0xff] %vm2312, %v2311
  %s2315 = scalar_lea.vmem %s0, 386
  %s2316 = smov 3
  %v2317 = vld [vmem:[%s2315] ss:$16 sm:%s2316]
  %s2318 = scalar_lea.vmem %s0, 386
  %s2319 = smov 12
  %v2320 = vld [vmem:[%s2318] ss:$16 sm:%s2319]
  %vm2321 = vcmask 1043458
  %v2322 = vsel %vm2321, %v2320, %v2317
  %s2323 = scalar_lea.vmem %s0, 386
  %s2324 = smov 48
  %v2325 = vld [vmem:[%s2323] ss:$16 sm:%s2324]
  %vm2326 = vcmask 1045508
  %v2327 = vsel %vm2326, %v2325, %v2322
  %s2328 = scalar_lea.vmem %s0, 386
  %s2329 = smov 192
  %v2330 = vld [vmem:[%s2328] ss:$16 sm:%s2329]
  %vm2331 = vcmask 1047558
  %v2332 = vsel %vm2331, %v2330, %v2327
  %2333 = vrot.lane.b32.xlu0 %v2332, 12
  %v2334 = vpop.permute.xlu0 %2333
  %vm2335 = vcmask 146528
  %s2336 = scalar_lea.vmem %s1, 24
  %2337 = vst.msk [vmem:[%s2336] sm:$0xff] %vm2335, %v2334
  %s2338 = scalar_lea.vmem %s0, 898
  %s2339 = smov 3
  %v2340 = vld [vmem:[%s2338] ss:$16 sm:%s2339]
  %s2341 = scalar_lea.vmem %s0, 898
  %s2342 = smov 12
  %v2343 = vld [vmem:[%s2341] ss:$16 sm:%s2342]
  %vm2344 = vcmask 1043458
  %v2345 = vsel %vm2344, %v2343, %v2340
  %s2346 = scalar_lea.vmem %s0, 898
  %s2347 = smov 48
  %v2348 = vld [vmem:[%s2346] ss:$16 sm:%s2347]
  %vm2349 = vcmask 1045508
  %v2350 = vsel %vm2349, %v2348, %v2345
  %s2351 = scalar_lea.vmem %s0, 898
  %s2352 = smov 192
  %v2353 = vld [vmem:[%s2351] ss:$16 sm:%s2352]
  %vm2354 = vcmask 1047558
  %v2355 = vsel %vm2354, %v2353, %v2350
  %2356 = vrot.lane.b32.xlu0 %v2355, 12
  %v2357 = vpop.permute.xlu0 %2356
  %vm2358 = vcmask 146528
  %s2359 = scalar_lea.vmem %s1, 56
  %2360 = vst.msk [vmem:[%s2359] sm:$0xff] %vm2358, %v2357
  %s2361 = scalar_lea.vmem %s0, 1
  %s2362 = smov 3
  %v2363 = vld [vmem:[%s2361] ss:$16 sm:%s2362]
  %s2364 = scalar_lea.vmem %s0, 1
  %s2365 = smov 12
  %v2366 = vld [vmem:[%s2364] ss:$16 sm:%s2365]
  %vm2367 = vcmask 1043458
  %v2368 = vsel %vm2367, %v2366, %v2363
  %s2369 = scalar_lea.vmem %s0, 1
  %s2370 = smov 48
  %v2371 = vld [vmem:[%s2369] ss:$16 sm:%s2370]
  %vm2372 = vcmask 1045508
  %v2373 = vsel %vm2372, %v2371, %v2368
  %s2374 = scalar_lea.vmem %s0, 1
  %s2375 = smov 192
  %v2376 = vld [vmem:[%s2374] ss:$16 sm:%s2375]
  %vm2377 = vcmask 1047558
  %v2378 = vsel %vm2377, %v2376, %v2373
  %2379 = vrot.lane.b32.xlu0 %v2378, 6
  %v2380 = vpop.permute.xlu0 %2379
  %vm2381 = vcmask 97328
  %2382 = vst.msk [vmem:[%s1] sm:$0xff] %vm2381, %v2380
  %s2383 = scalar_lea.vmem %s0, 513
  %s2384 = smov 3
  %v2385 = vld [vmem:[%s2383] ss:$16 sm:%s2384]
  %s2386 = scalar_lea.vmem %s0, 513
  %s2387 = smov 12
  %v2388 = vld [vmem:[%s2386] ss:$16 sm:%s2387]
  %vm2389 = vcmask 1043458
  %v2390 = vsel %vm2389, %v2388, %v2385
  %s2391 = scalar_lea.vmem %s0, 513
  %s2392 = smov 48
  %v2393 = vld [vmem:[%s2391] ss:$16 sm:%s2392]
  %vm2394 = vcmask 1045508
  %v2395 = vsel %vm2394, %v2393, %v2390
  %s2396 = scalar_lea.vmem %s0, 513
  %s2397 = smov 192
  %v2398 = vld [vmem:[%s2396] ss:$16 sm:%s2397]
  %vm2399 = vcmask 1047558
  %v2400 = vsel %vm2399, %v2398, %v2395
  %2401 = vrot.lane.b32.xlu0 %v2400, 6
  %v2402 = vpop.permute.xlu0 %2401
  %vm2403 = vcmask 97328
  %s2404 = scalar_lea.vmem %s1, 32
  %2405 = vst.msk [vmem:[%s2404] sm:$0xff] %vm2403, %v2402
  %s2406 = scalar_lea.vmem %s0, 129
  %s2407 = smov 3
  %v2408 = vld [vmem:[%s2406] ss:$16 sm:%s2407]
  %s2409 = scalar_lea.vmem %s0, 129
  %s2410 = smov 12
  %v2411 = vld [vmem:[%s2409] ss:$16 sm:%s2410]
  %vm2412 = vcmask 1043458
  %v2413 = vsel %vm2412, %v2411, %v2408
  %s2414 = scalar_lea.vmem %s0, 129
  %s2415 = smov 48
  %v2416 = vld [vmem:[%s2414] ss:$16 sm:%s2415]
  %vm2417 = vcmask 1045508
  %v2418 = vsel %vm2417, %v2416, %v2413
  %s2419 = scalar_lea.vmem %s0, 129
  %s2420 = smov 192
  %v2421 = vld [vmem:[%s2419] ss:$16 sm:%s2420]
  %vm2422 = vcmask 1047558
  %v2423 = vsel %vm2422, %v2421, %v2418
  %2424 = vrot.lane.b32.xlu0 %v2423, 6
  %v2425 = vpop.permute.xlu0 %2424
  %vm2426 = vcmask 97328
  %s2427 = scalar_lea.vmem %s1, 8
  %2428 = vst.msk [vmem:[%s2427] sm:$0xff] %vm2426, %v2425
  %s2429 = scalar_lea.vmem %s0, 641
  %s2430 = smov 3
  %v2431 = vld [vmem:[%s2429] ss:$16 sm:%s2430]
  %s2432 = scalar_lea.vmem %s0, 641
  %s2433 = smov 12
  %v2434 = vld [vmem:[%s2432] ss:$16 sm:%s2433]
  %vm2435 = vcmask 1043458
  %v2436 = vsel %vm2435, %v2434, %v2431
  %s2437 = scalar_lea.vmem %s0, 641
  %s2438 = smov 48
  %v2439 = vld [vmem:[%s2437] ss:$16 sm:%s2438]
  %vm2440 = vcmask 1045508
  %v2441 = vsel %vm2440, %v2439, %v2436
  %s2442 = scalar_lea.vmem %s0, 641
  %s2443 = smov 192
  %v2444 = vld [vmem:[%s2442] ss:$16 sm:%s2443]
  %vm2445 = vcmask 1047558
  %v2446 = vsel %vm2445, %v2444, %v2441
  %2447 = vrot.lane.b32.xlu0 %v2446, 6
  %v2448 = vpop.permute.xlu0 %2447
  %vm2449 = vcmask 97328
  %s2450 = scalar_lea.vmem %s1, 40
  %2451 = vst.msk [vmem:[%s2450] sm:$0xff] %vm2449, %v2448
  %s2452 = scalar_lea.vmem %s0, 257
  %s2453 = smov 3
  %v2454 = vld [vmem:[%s2452] ss:$16 sm:%s2453]
  %s2455 = scalar_lea.vmem %s0, 257
  %s2456 = smov 12
  %v2457 = vld [vmem:[%s2455] ss:$16 sm:%s2456]
  %vm2458 = vcmask 1043458
  %v2459 = vsel %vm2458, %v2457, %v2454
  %s2460 = scalar_lea.vmem %s0, 257
  %s2461 = smov 48
  %v2462 = vld [vmem:[%s2460] ss:$16 sm:%s2461]
  %vm2463 = vcmask 1045508
  %v2464 = vsel %vm2463, %v2462, %v2459
  %s2465 = scalar_lea.vmem %s0, 257
  %s2466 = smov 192
  %v2467 = vld [vmem:[%s2465] ss:$16 sm:%s2466]
  %vm2468 = vcmask 1047558
  %v2469 = vsel %vm2468, %v2467, %v2464
  %2470 = vrot.lane.b32.xlu0 %v2469, 6
  %v2471 = vpop.permute.xlu0 %2470
  %vm2472 = vcmask 97328
  %s2473 = scalar_lea.vmem %s1, 16
  %2474 = vst.msk [vmem:[%s2473] sm:$0xff] %vm2472, %v2471
  %s2475 = scalar_lea.vmem %s0, 769
  %s2476 = smov 3
  %v2477 = vld [vmem:[%s2475] ss:$16 sm:%s2476]
  %s2478 = scalar_lea.vmem %s0, 769
  %s2479 = smov 12
  %v2480 = vld [vmem:[%s2478] ss:$16 sm:%s2479]
  %vm2481 = vcmask 1043458
  %v2482 = vsel %vm2481, %v2480, %v2477
  %s2483 = scalar_lea.vmem %s0, 769
  %s2484 = smov 48
  %v2485 = vld [vmem:[%s2483] ss:$16 sm:%s2484]
  %vm2486 = vcmask 1045508
  %v2487 = vsel %vm2486, %v2485, %v2482
  %s2488 = scalar_lea.vmem %s0, 769
  %s2489 = smov 192
  %v2490 = vld [vmem:[%s2488] ss:$16 sm:%s2489]
  %vm2491 = vcmask 1047558
  %v2492 = vsel %vm2491, %v2490, %v2487
  %2493 = vrot.lane.b32.xlu0 %v2492, 6
  %v2494 = vpop.permute.xlu0 %2493
  %vm2495 = vcmask 97328
  %s2496 = scalar_lea.vmem %s1, 48
  %2497 = vst.msk [vmem:[%s2496] sm:$0xff] %vm2495, %v2494
  %s2498 = scalar_lea.vmem %s0, 385
  %s2499 = smov 3
  %v2500 = vld [vmem:[%s2498] ss:$16 sm:%s2499]
  %s2501 = scalar_lea.vmem %s0, 385
  %s2502 = smov 12
  %v2503 = vld [vmem:[%s2501] ss:$16 sm:%s2502]
  %vm2504 = vcmask 1043458
  %v2505 = vsel %vm2504, %v2503, %v2500
  %s2506 = scalar_lea.vmem %s0, 385
  %s2507 = smov 48
  %v2508 = vld [vmem:[%s2506] ss:$16 sm:%s2507]
  %vm2509 = vcmask 1045508
  %v2510 = vsel %vm2509, %v2508, %v2505
  %s2511 = scalar_lea.vmem %s0, 385
  %s2512 = smov 192
  %v2513 = vld [vmem:[%s2511] ss:$16 sm:%s2512]
  %vm2514 = vcmask 1047558
  %v2515 = vsel %vm2514, %v2513, %v2510
  %2516 = vrot.lane.b32.xlu0 %v2515, 6
  %v2517 = vpop.permute.xlu0 %2516
  %vm2518 = vcmask 97328
  %s2519 = scalar_lea.vmem %s1, 24
  %2520 = vst.msk [vmem:[%s2519] sm:$0xff] %vm2518, %v2517
  %s2521 = scalar_lea.vmem %s0, 897
  %s2522 = smov 3
  %v2523 = vld [vmem:[%s2521] ss:$16 sm:%s2522]
  %s2524 = scalar_lea.vmem %s0, 897
  %s2525 = smov 12
  %v2526 = vld [vmem:[%s2524] ss:$16 sm:%s2525]
  %vm2527 = vcmask 1043458
  %v2528 = vsel %vm2527, %v2526, %v2523
  %s2529 = scalar_lea.vmem %s0, 897
  %s2530 = smov 48
  %v2531 = vld [vmem:[%s2529] ss:$16 sm:%s2530]
  %vm2532 = vcmask 1045508
  %v2533 = vsel %vm2532, %v2531, %v2528
  %s2534 = scalar_lea.vmem %s0, 897
  %s2535 = smov 192
  %v2536 = vld [vmem:[%s2534] ss:$16 sm:%s2535]
  %vm2537 = vcmask 1047558
  %v2538 = vsel %vm2537, %v2536, %v2533
  %2539 = vrot.lane.b32.xlu0 %v2538, 6
  %v2540 = vpop.permute.xlu0 %2539
  %vm2541 = vcmask 97328
  %s2542 = scalar_lea.vmem %s1, 56
  %2543 = vst.msk [vmem:[%s2542] sm:$0xff] %vm2541, %v2540

// kernel: tile.18
$region0: #{tile.18}
  #allocation0 [shape = 's32[1]{0}', space=sflag, size = 0x4, scoped, tag = 'scoped memory for tile.18']
  %s0 = inlined_call_operand.vmem [shape: f32[4], index: 0, kind: input, shape index: {}]
  %s1 = inlined_call_operand.vmem [shape: f32[16,4], index: 1, kind: output, shape index: {}]
  // Predicated region
  $region2: #{tile.18} parent=0 // pred_check
    _
  $region3: #{tile.18} parent=0 // pred_check_branch
    %3 = sbr.rel (0) target = $region5
  $region4: #{tile.18} parent=0 // pred_region
    _
  $region5: #{tile.18} parent=0 // pred_fallthru
    _
  %v4 = vld [vmem:[%s0] ss:$0 sm:$0xff]
  %5 = vst [vmem:[%s1] sm:$0xff] %v4
  %s6 = scalar_lea.vmem %s1, 8
  %7 = vst [vmem:[%s6] sm:$0xff] %v4

// kernel: tile.23
$region0: #{tile.23}
  #allocation0 [shape = 's32[1]{0}', space=sflag, size = 0x4, scoped, tag = 'scoped memory for tile.23']
  %s0 = inlined_call_operand.vmem [shape: f32[6], index: 0, kind: input, shape index: {}]
  %s1 = inlined_call_operand.vmem [shape: f32[14,6], index: 1, kind: output, shape index: {}]
  // Predicated region
  $region2: #{tile.23} parent=0 // pred_check
    _
  $region3: #{tile.23} parent=0 // pred_check_branch
    %3 = sbr.rel (0) target = $region5
  $region4: #{tile.23} parent=0 // pred_region
    _
  $region5: #{tile.23} parent=0 // pred_fallthru
    _
  %v4 = vld [vmem:[%s0] ss:$0 sm:$0xff]
  %5 = vst [vmem:[%s1] sm:$0xff] %v4
  %s6 = scalar_lea.vmem %s1, 8
  %7 = vst [vmem:[%s6] sm:$0xff] %v4

// kernel: tile.28
$region0: #{tile.28}
  #allocation0 [shape = 's32[1]{0}', space=sflag, size = 0x4, scoped, tag = 'scoped memory for tile.28']
  %s0 = inlined_call_operand.vmem [shape: f32[4], index: 0, kind: input, shape index: {}]
  %s1 = inlined_call_operand.vmem [shape: f32[12,4], index: 1, kind: output, shape index: {}]
  // Predicated region
  $region2: #{tile.28} parent=0 // pred_check
    _
  $region3: #{tile.28} parent=0 // pred_check_branch
    %3 = sbr.rel (0) target = $region5
  $region4: #{tile.28} parent=0 // pred_region
    _
  $region5: #{tile.28} parent=0 // pred_fallthru
    _
  %v4 = vld [vmem:[%s0] ss:$0 sm:$0xff]
  %5 = vst [vmem:[%s1] sm:$0xff] %v4
  %s6 = scalar_lea.vmem %s1, 8
  %7 = vst [vmem:[%s6] sm:$0xff] %v4

// kernel: tile.29
$region0: #{tile.29}
  %s0 = inlined_call_operand.vmem [shape: f32[12,4], index: 0, kind: input, shape index: {}]
  %s1 = inlined_call_operand.vmem [shape: f32[1,48], index: 1, kind: output, shape index: {}]
  $region1: #{tile.29} parent=0
    #allocation0 [shape = 'u8[4096]{0}', space=vmem, size = 0x1000, scoped, tag = 'scoped mem for output reshape']
    %v2 = vld [vmem:[%s0] sm:$0x1]
    %vm3 = vcmask 31744
    %4 = vst.msk [vmem:[#allocation0] sm:$0x1] %vm3, %v2
    %s5 = scalar_lea.vmem %s0, 11
    %v6 = vld [vmem:[%s5] sm:$0x1]
    %7 = vrot.lane.b32.xlu0 %v6, 44
    %v8 = vpop.permute.xlu0 %7
    %vm9 = vcmask 392544
    %10 = vst.msk [vmem:[#allocation0] sm:$0x1] %vm9, %v8
    %s11 = scalar_lea.vmem %s0, 10
    %v12 = vld [vmem:[%s11] sm:$0x1]
    %13 = vrot.lane.b32.xlu0 %v12, 40
    %v14 = vpop.permute.xlu0 %13
    %vm15 = vcmask 359744
    %16 = vst.msk [vmem:[#allocation0] sm:$0x1] %vm15, %v14
    %s17 = scalar_lea.vmem %s0, 9
    %v18 = vld [vmem:[%s17] sm:$0x1]
    %19 = vrot.lane.b32.xlu0 %v18, 36
    %v20 = vpop.permute.xlu0 %19
    %vm21 = vcmask 326944
    %22 = vst.msk [vmem:[#allocation0] sm:$0x1] %vm21, %v20
    %s23 = scalar_lea.vmem %s0, 8
    %v24 = vld [vmem:[%s23] sm:$0x1]
    %25 = vrot.lane.b32.xlu0 %v24, 32
    %v26 = vpop.permute.xlu0 %25
    %vm27 = vcmask 294144
    %28 = vst.msk [vmem:[#allocation0] sm:$0x1] %vm27, %v26
    %s29 = scalar_lea.vmem %s0, 7
    %v30 = vld [vmem:[%s29] sm:$0x1]
    %31 = vrot.lane.b32.xlu0 %v30, 28
    %v32 = vpop.permute.xlu0 %31
    %vm33 = vcmask 261344
    %34 = vst.msk [vmem:[#allocation0] sm:$0x1] %vm33, %v32
    %s35 = scalar_lea.vmem %s0, 6
    %v36 = vld [vmem:[%s35] sm:$0x1]
    %37 = vrot.lane.b32.xlu0 %v36, 24
    %v38 = vpop.permute.xlu0 %37
    %vm39 = vcmask 228544
    %40 = vst.msk [vmem:[#allocation0] sm:$0x1] %vm39, %v38
    %s41 = scalar_lea.vmem %s0, 5
    %v42 = vld [vmem:[%s41] sm:$0x1]
    %43 = vrot.lane.b32.xlu0 %v42, 20
    %v44 = vpop.permute.xlu0 %43
    %vm45 = vcmask 195744
    %46 = vst.msk [vmem:[#allocation0] sm:$0x1] %vm45, %v44
    %s47 = scalar_lea.vmem %s0, 4
    %v48 = vld [vmem:[%s47] sm:$0x1]
    %49 = vrot.lane.b32.xlu0 %v48, 16
    %v50 = vpop.permute.xlu0 %49
    %vm51 = vcmask 162944
    %52 = vst.msk [vmem:[#allocation0] sm:$0x1] %vm51, %v50
    %s53 = scalar_lea.vmem %s0, 3
    %v54 = vld [vmem:[%s53] sm:$0x1]
    %55 = vrot.lane.b32.xlu0 %v54, 12
    %v56 = vpop.permute.xlu0 %55
    %vm57 = vcmask 130144
    %58 = vst.msk [vmem:[#allocation0] sm:$0x1] %vm57, %v56
    %s59 = scalar_lea.vmem %s0, 2
    %v60 = vld [vmem:[%s59] sm:$0x1]
    %61 = vrot.lane.b32.xlu0 %v60, 8
    %v62 = vpop.permute.xlu0 %61
    %vm63 = vcmask 97344
    %64 = vst.msk [vmem:[#allocation0] sm:$0x1] %vm63, %v62
    %s65 = scalar_lea.vmem %s0, 1
    %v66 = vld [vmem:[%s65] sm:$0x1]
    %67 = vrot.lane.b32.xlu0 %v66, 4
    %v68 = vpop.permute.xlu0 %67
    %vm69 = vcmask 64544
    %70 = vst.msk [vmem:[#allocation0] sm:$0x1] %vm69, %v68
    %s72 = sshll.u32 1, 1
    %s73 = ssub.s32 %s72, 1
    %v75 = vld [vmem:[#allocation0] sm:%s73]
    %s76 = sshll.u32 1, 1
    %s77 = ssub.s32 %s76, 1
    %78 = vst [vmem:[%s1] sm:%s77] %v75

// kernel: up_forward.1
$region0: #{up_forward.1}
  #allocation0 [shape = 'u32[]', space=smem, size = 0x4, offset = 0x4, fixed_abs, tag = 'smem constant byte address 0x4 - core index']
  #allocation1 [shape = 'u32[144,128]{1,0:T(1,128)}', space=vmem, size = 0x12000, scoped, tag = 'internal scratch']
  %s0 = inlined_call_operand.vmem [shape: bf16[16,192], index: 0, kind: input, shape index: {}]
  %s1 = inlined_call_operand.vmem [shape: bf16[4,192,84], index: 1, kind: input, shape index: {}]
  %s2 = inlined_call_operand.vmem [shape: f32[1,84], index: 2, kind: input, shape index: {}]
  %s3 = inlined_call_operand.vmem [shape: bf16[3,84,48], index: 3, kind: input, shape index: {}]
  %s4 = inlined_call_operand.vmem [shape: f32[1,48], index: 4, kind: input, shape index: {}]
  %s5 = inlined_call_operand.vmem [shape: f32[2,16,48], index: 5, kind: output, shape index: {}]
  %s6 = sld [smem:[#allocation0]]
  $region30: #{up_forward.1} parent=0
    _
  %s8 = ssub.s32 1, %s6
  %s9 = scalar_select 0, %s8, %s6
  // Predicated region
  $region2: #{up_forward.1} parent=0 // pred_check
    _
  $region3: #{up_forward.1} parent=0 // pred_check_branch
    %11 = sbr.rel (0) target = $region5
  $region4: #{up_forward.1} parent=0 // pred_region
    _
  $region5: #{up_forward.1} parent=0 // pred_fallthru
    _
  // Predicated region
  $region6: #{up_forward.1} parent=0 // pred_check
    _
  $region7: #{up_forward.1} parent=0 // pred_check_branch
    %13 = sbr.rel (0) target = $region9
  $region8: #{up_forward.1} parent=0 // pred_region
    _
  $region9: #{up_forward.1} parent=0 // pred_fallthru
    _
  // Predicated region
  $region10: #{up_forward.1} parent=0 // pred_check
    _
  $region11: #{up_forward.1} parent=0 // pred_check_branch
    %15 = sbr.rel (0) target = $region13
  $region12: #{up_forward.1} parent=0 // pred_region
    _
  $region13: #{up_forward.1} parent=0 // pred_fallthru
    _
  // Predicated region
  $region14: #{up_forward.1} parent=0 // pred_check
    _
  $region15: #{up_forward.1} parent=0 // pred_check_branch
    %17 = sbr.rel (0) target = $region17
  $region16: #{up_forward.1} parent=0 // pred_region
    _
  $region17: #{up_forward.1} parent=0 // pred_fallthru
    _
  // Predicated region
  $region18: #{up_forward.1} parent=0 // pred_check
    _
  $region19: #{up_forward.1} parent=0 // pred_check_branch
    %19 = sbr.rel (0) target = $region21
  $region20: #{up_forward.1} parent=0 // pred_region
    _
  $region21: #{up_forward.1} parent=0 // pred_fallthru
    _
  %v21 = vld [vmem:[%s0] sm:$0xff]
  %v22 = vld [vmem:[%s0 + $0x8] sm:$0xff]
  %v23 = vld [vmem:[%s2] sm:$0x1]
  %v25 = vlaneseq
  %v26 = vshrl.u32 %v25, 7
  %v27 = vsub.s32 0, %v26
  %v28 = vrot.slane %v23, %v27
  %v30 = vld [vmem:[%s4] sm:$0x1]
  %v32 = vlaneseq
  %v33 = vshrl.u32 %v32, 7
  %v34 = vsub.s32 0, %v33
  %v35 = vrot.slane %v30, %v34
  %v37 = vld [vmem:[%s1] sm:$0xf]
  %v38 = vld [vmem:[%s1 + $0x4] sm:$0xf]
  %v39 = vld [vmem:[%s1 + $0x8] sm:$0xf]
  %v40 = vld [vmem:[%s1 + $0xc] sm:$0xf]
  %v41 = vld [vmem:[%s1 + $0x10] sm:$0xf]
  %v42 = vld [vmem:[%s1 + $0x14] sm:$0xf]
  %v43 = vld [vmem:[%s1 + $0x18] sm:$0xf]
  %v44 = vld [vmem:[%s1 + $0x1c] sm:$0xf]
  %v45 = vld [vmem:[%s1 + $0x20] sm:$0xf]
  %v46 = vld [vmem:[%s1 + $0x24] sm:$0xf]
  %v47 = vld [vmem:[%s1 + $0x28] sm:$0xf]
  %v48 = vld [vmem:[%s1 + $0x2c] sm:$0xf]
  %v49 = vld [vmem:[%s1 + $0x30] sm:$0xf]
  %v50 = vld [vmem:[%s1 + $0x34] sm:$0xf]
  %v51 = vld [vmem:[%s1 + $0x38] sm:$0xf]
  %v52 = vld [vmem:[%s1 + $0x3c] sm:$0xf]
  %v53 = vld [vmem:[%s1 + $0x40] sm:$0xf]
  %v54 = vld [vmem:[%s1 + $0x44] sm:$0xf]
  %v55 = vld [vmem:[%s1 + $0x48] sm:$0xf]
  %v56 = vld [vmem:[%s1 + $0x4c] sm:$0xf]
  %v57 = vld [vmem:[%s1 + $0x50] sm:$0xf]
  %v58 = vld [vmem:[%s1 + $0x54] sm:$0xf]
  %v59 = vld [vmem:[%s1 + $0x58] sm:$0xf]
  %v60 = vld [vmem:[%s1 + $0x5c] sm:$0xf]
  %v63 = vunpack.c.l.b16 %v21
  %v64 = vunpack.c.h.b16 %v21
  %v65 = vunpack.c.l.b16 %v22
  %v66 = vunpack.c.h.b16 %v22
  %v67 = vpack.c.b16 %v65, %v63
  %v68 = vpack.c.b16 %v66, %v64
  %v94 = vunpack.c.l.b16 %v37
  %v95 = vunpack.c.l.b16 %v38
  %v96 = vunpack.c.l.b16 %v39
  %v97 = vunpack.c.l.b16 %v40
  %v98 = vunpack.c.l.b16 %v41
  %v99 = vunpack.c.l.b16 %v42
  %v100 = vunpack.c.l.b16 %v43
  %v101 = vunpack.c.l.b16 %v44
  %v102 = vunpack.c.l.b16 %v45
  %v103 = vunpack.c.l.b16 %v46
  %v104 = vunpack.c.l.b16 %v47
  %v105 = vunpack.c.l.b16 %v48
  %v106 = vunpack.c.l.b16 %v49
  %v107 = vunpack.c.l.b16 %v50
  %v108 = vunpack.c.l.b16 %v51
  %v109 = vunpack.c.l.b16 %v52
  %v110 = vunpack.c.l.b16 %v53
  %v111 = vunpack.c.l.b16 %v54
  %v112 = vunpack.c.l.b16 %v55
  %v113 = vunpack.c.l.b16 %v56
  %v114 = vunpack.c.l.b16 %v57
  %v115 = vunpack.c.l.b16 %v58
  %v116 = vunpack.c.l.b16 %v59
  %v117 = vunpack.c.l.b16 %v60
  %v118 = vpack.c.b16 %v95, %v94
  %v119 = vpack.c.b16 %v97, %v96
  %v120 = vpack.c.b16 %v99, %v98
  %v121 = vpack.c.b16 %v101, %v100
  %v122 = vpack.c.b16 %v103, %v102
  %v123 = vpack.c.b16 %v105, %v104
  %v124 = vpack.c.b16 %v107, %v106
  %v125 = vpack.c.b16 %v109, %v108
  %v126 = vpack.c.b16 %v111, %v110
  %v127 = vpack.c.b16 %v113, %v112
  %v128 = vpack.c.b16 %v115, %v114
  %v129 = vpack.c.b16 %v117, %v116
  %vm142 = vcmask 523264
  %v144 = vsel %vm142, %v68, 0
  %146 = vmatprep.subr.bf16.mxu0 0
  %147 = vmatpush1.bf16.msra.mxu0 %v125
  %148 = vmatprep.subr.bf16.mxu0 0
  %149 = vmatpush1.bf16.msra.mxu0 %v124
  %150 = vmatprep.subr.bf16.mxu0 0
  %151 = vmatpush1.bf16.msra.mxu0 %v123
  %152 = vmatprep.subr.bf16.mxu0 0
  %153 = vmatpush1.bf16.msra.mxu0 %v122
  %154 = vmatprep.subr.bf16.mxu0 0
  %155 = vmatpush1.bf16.msra.mxu0 %v121
  %156 = vmatprep.subr.bf16.mxu0 0
  %157 = vmatpush1.bf16.msra.mxu0 %v120
  %158 = vmatprep.subr.bf16.mxu0 0
  %159 = vmatpush1.bf16.msra.mxu0 %v119
  %160 = vmatprep.subr.bf16.mxu0 0
  %161 = vmatpush1.bf16.msra.mxu0 %v118
  %162 = vmatprep.subr.bf16.mxu0 0
  %163 = vmatpush2.bf16.msra.mxu0 0
  %164 = vmatprep.subr.bf16.mxu0 0
  %165 = vmatpush2.bf16.msra.mxu0 0
  %166 = vmatprep.subr.bf16.mxu0 0
  %167 = vmatpush2.bf16.msra.mxu0 0
  %168 = vmatprep.subr.bf16.mxu0 0
  %169 = vmatpush2.bf16.msra.mxu0 0
  %170 = vmatprep.subr.bf16.mxu0 0
  %171 = vmatpush2.bf16.msra.mxu0 %v129
  %172 = vmatprep.subr.bf16.mxu0 0
  %173 = vmatpush2.bf16.msra.mxu0 %v128
  %174 = vmatprep.subr.bf16.mxu0 0
  %175 = vmatpush2.bf16.msra.mxu0 %v127
  %176 = vmatprep.subr.bf16.mxu0 0
  %177 = vmatpush2.bf16.msra.mxu0 %v126
  %178 = vmatprep.mubr.bf16.mxu0 %v144
  %179 = vmatmul.mubr.bf16.gmra.mxu0 %v67
  %v180 = vpop.f32.mrf.mxu0
  %v181 = vadd.f32 0.0, %v180
  %v182 = vpop.f32.mrf.mxu0
  %v183 = vpop.f32.mrf.mxu0
  %v184 = vadd.f32 0.0, %v183
  %v185 = vpop.f32.mrf.mxu0
  %186 = vdwg.mxu0
  %v187 = vadd.f32 %v28, %v181
  %v188 = vadd.f32 %v28, %v184
  %s189 = scalar_lea.vmem %s1, 96
  %v190 = vld [vmem:[%s189] sm:$0xf]
  %v191 = vld [vmem:[%s189 + $0x4] sm:$0xf]
  %v192 = vld [vmem:[%s189 + $0x8] sm:$0xf]
  %v193 = vld [vmem:[%s189 + $0xc] sm:$0xf]
  %v194 = vld [vmem:[%s189 + $0x10] sm:$0xf]
  %v195 = vld [vmem:[%s189 + $0x14] sm:$0xf]
  %v196 = vld [vmem:[%s189 + $0x18] sm:$0xf]
  %v197 = vld [vmem:[%s189 + $0x1c] sm:$0xf]
  %v198 = vld [vmem:[%s189 + $0x20] sm:$0xf]
  %v199 = vld [vmem:[%s189 + $0x24] sm:$0xf]
  %v200 = vld [vmem:[%s189 + $0x28] sm:$0xf]
  %v201 = vld [vmem:[%s189 + $0x2c] sm:$0xf]
  %v202 = vld [vmem:[%s189 + $0x30] sm:$0xf]
  %v203 = vld [vmem:[%s189 + $0x34] sm:$0xf]
  %v204 = vld [vmem:[%s189 + $0x38] sm:$0xf]
  %v205 = vld [vmem:[%s189 + $0x3c] sm:$0xf]
  %v206 = vld [vmem:[%s189 + $0x40] sm:$0xf]
  %v207 = vld [vmem:[%s189 + $0x44] sm:$0xf]
  %v208 = vld [vmem:[%s189 + $0x48] sm:$0xf]
  %v209 = vld [vmem:[%s189 + $0x4c] sm:$0xf]
  %v210 = vld [vmem:[%s189 + $0x50] sm:$0xf]
  %v211 = vld [vmem:[%s189 + $0x54] sm:$0xf]
  %v212 = vld [vmem:[%s189 + $0x58] sm:$0xf]
  %v213 = vld [vmem:[%s189 + $0x5c] sm:$0xf]
  %v238 = vunpack.c.l.b16 %v190
  %v239 = vunpack.c.l.b16 %v191
  %v240 = vunpack.c.l.b16 %v192
  %v241 = vunpack.c.l.b16 %v193
  %v242 = vunpack.c.l.b16 %v194
  %v243 = vunpack.c.l.b16 %v195
  %v244 = vunpack.c.l.b16 %v196
  %v245 = vunpack.c.l.b16 %v197
  %v246 = vunpack.c.l.b16 %v198
  %v247 = vunpack.c.l.b16 %v199
  %v248 = vunpack.c.l.b16 %v200
  %v249 = vunpack.c.l.b16 %v201
  %v250 = vunpack.c.l.b16 %v202
  %v251 = vunpack.c.l.b16 %v203
  %v252 = vunpack.c.l.b16 %v204
  %v253 = vunpack.c.l.b16 %v205
  %v254 = vunpack.c.l.b16 %v206
  %v255 = vunpack.c.l.b16 %v207
  %v256 = vunpack.c.l.b16 %v208
  %v257 = vunpack.c.l.b16 %v209
  %v258 = vunpack.c.l.b16 %v210
  %v259 = vunpack.c.l.b16 %v211
  %v260 = vunpack.c.l.b16 %v212
  %v261 = vunpack.c.l.b16 %v213
  %v262 = vpack.c.b16 %v239, %v238
  %v263 = vpack.c.b16 %v241, %v240
  %v264 = vpack.c.b16 %v243, %v242
  %v265 = vpack.c.b16 %v245, %v244
  %v266 = vpack.c.b16 %v247, %v246
  %v267 = vpack.c.b16 %v249, %v248
  %v268 = vpack.c.b16 %v251, %v250
  %v269 = vpack.c.b16 %v253, %v252
  %v270 = vpack.c.b16 %v255, %v254
  %v271 = vpack.c.b16 %v257, %v256
  %v272 = vpack.c.b16 %v259, %v258
  %v273 = vpack.c.b16 %v261, %v260
  %286 = vmatprep.subr.bf16.mxu0 0
  %287 = vmatpush1.bf16.msra.mxu0 %v269
  %288 = vmatprep.subr.bf16.mxu0 0
  %289 = vmatpush1.bf16.msra.mxu0 %v268
  %290 = vmatprep.subr.bf16.mxu0 0
  %291 = vmatpush1.bf16.msra.mxu0 %v267
  %292 = vmatprep.subr.bf16.mxu0 0
  %293 = vmatpush1.bf16.msra.mxu0 %v266
  %294 = vmatprep.subr.bf16.mxu0 0
  %295 = vmatpush1.bf16.msra.mxu0 %v265
  %296 = vmatprep.subr.bf16.mxu0 0
  %297 = vmatpush1.bf16.msra.mxu0 %v264
  %298 = vmatprep.subr.bf16.mxu0 0
  %299 = vmatpush1.bf16.msra.mxu0 %v263
  %300 = vmatprep.subr.bf16.mxu0 0
  %301 = vmatpush1.bf16.msra.mxu0 %v262
  %302 = vmatprep.subr.bf16.mxu0 0
  %303 = vmatpush2.bf16.msra.mxu0 0
  %304 = vmatprep.subr.bf16.mxu0 0
  %305 = vmatpush2.bf16.msra.mxu0 0
  %306 = vmatprep.subr.bf16.mxu0 0
  %307 = vmatpush2.bf16.msra.mxu0 0
  %308 = vmatprep.subr.bf16.mxu0 0
  %309 = vmatpush2.bf16.msra.mxu0 0
  %310 = vmatprep.subr.bf16.mxu0 0
  %311 = vmatpush2.bf16.msra.mxu0 %v273
  %312 = vmatprep.subr.bf16.mxu0 0
  %313 = vmatpush2.bf16.msra.mxu0 %v272
  %314 = vmatprep.subr.bf16.mxu0 0
  %315 = vmatpush2.bf16.msra.mxu0 %v271
  %316 = vmatprep.subr.bf16.mxu0 0
  %317 = vmatpush2.bf16.msra.mxu0 %v270
  %318 = vmatprep.mubr.bf16.mxu0 %v144
  %319 = vmatmul.mubr.bf16.gmra.mxu0 %v67
  %v320 = vpop.f32.mrf.mxu0
  %v321 = vadd.f32 0.0, %v320
  %v322 = vpop.f32.mrf.mxu0
  %v323 = vpop.f32.mrf.mxu0
  %v324 = vadd.f32 0.0, %v323
  %v325 = vpop.f32.mrf.mxu0
  %326 = vdwg.mxu0
  %v327 = vrot.slane %v321, 1
  %v328 = vrot.slane %v324, 1
  %v329 = vlaneseq
  %v330 = vshrl.u32 %v329, 7
  %vm331 = vcmp.lt.s32.totalorder %v330, 7
  %v332 = vsel %vm331, %v327, %v328
  %v333 = vsel %vm331, %v328, %v327
  %v334 = vadd.f32 %v187, %v332
  %v335 = vadd.f32 %v188, %v333
  %v336 = vmax.f32 %v334, 0.0
  %v337 = vmax.f32 %v335, 0.0
  %s338 = scalar_lea.vmem %s1, 192
  %v339 = vld [vmem:[%s338] sm:$0xf]
  %v340 = vld [vmem:[%s338 + $0x4] sm:$0xf]
  %v341 = vld [vmem:[%s338 + $0x8] sm:$0xf]
  %v342 = vld [vmem:[%s338 + $0xc] sm:$0xf]
  %v343 = vld [vmem:[%s338 + $0x10] sm:$0xf]
  %v344 = vld [vmem:[%s338 + $0x14] sm:$0xf]
  %v345 = vld [vmem:[%s338 + $0x18] sm:$0xf]
  %v346 = vld [vmem:[%s338 + $0x1c] sm:$0xf]
  %v347 = vld [vmem:[%s338 + $0x20] sm:$0xf]
  %v348 = vld [vmem:[%s338 + $0x24] sm:$0xf]
  %v349 = vld [vmem:[%s338 + $0x28] sm:$0xf]
  %v350 = vld [vmem:[%s338 + $0x2c] sm:$0xf]
  %v351 = vld [vmem:[%s338 + $0x30] sm:$0xf]
  %v352 = vld [vmem:[%s338 + $0x34] sm:$0xf]
  %v353 = vld [vmem:[%s338 + $0x38] sm:$0xf]
  %v354 = vld [vmem:[%s338 + $0x3c] sm:$0xf]
  %v355 = vld [vmem:[%s338 + $0x40] sm:$0xf]
  %v356 = vld [vmem:[%s338 + $0x44] sm:$0xf]
  %v357 = vld [vmem:[%s338 + $0x48] sm:$0xf]
  %v358 = vld [vmem:[%s338 + $0x4c] sm:$0xf]
  %v359 = vld [vmem:[%s338 + $0x50] sm:$0xf]
  %v360 = vld [vmem:[%s338 + $0x54] sm:$0xf]
  %v361 = vld [vmem:[%s338 + $0x58] sm:$0xf]
  %v362 = vld [vmem:[%s338 + $0x5c] sm:$0xf]
  %v387 = vunpack.c.l.b16 %v339
  %v388 = vunpack.c.l.b16 %v340
  %v389 = vunpack.c.l.b16 %v341
  %v390 = vunpack.c.l.b16 %v342
  %v391 = vunpack.c.l.b16 %v343
  %v392 = vunpack.c.l.b16 %v344
  %v393 = vunpack.c.l.b16 %v345
  %v394 = vunpack.c.l.b16 %v346
  %v395 = vunpack.c.l.b16 %v347
  %v396 = vunpack.c.l.b16 %v348
  %v397 = vunpack.c.l.b16 %v349
  %v398 = vunpack.c.l.b16 %v350
  %v399 = vunpack.c.l.b16 %v351
  %v400 = vunpack.c.l.b16 %v352
  %v401 = vunpack.c.l.b16 %v353
  %v402 = vunpack.c.l.b16 %v354
  %v403 = vunpack.c.l.b16 %v355
  %v404 = vunpack.c.l.b16 %v356
  %v405 = vunpack.c.l.b16 %v357
  %v406 = vunpack.c.l.b16 %v358
  %v407 = vunpack.c.l.b16 %v359
  %v408 = vunpack.c.l.b16 %v360
  %v409 = vunpack.c.l.b16 %v361
  %v410 = vunpack.c.l.b16 %v362
  %v411 = vpack.c.b16 %v388, %v387
  %v412 = vpack.c.b16 %v390, %v389
  %v413 = vpack.c.b16 %v392, %v391
  %v414 = vpack.c.b16 %v394, %v393
  %v415 = vpack.c.b16 %v396, %v395
  %v416 = vpack.c.b16 %v398, %v397
  %v417 = vpack.c.b16 %v400, %v399
  %v418 = vpack.c.b16 %v402, %v401
  %v419 = vpack.c.b16 %v404, %v403
  %v420 = vpack.c.b16 %v406, %v405
  %v421 = vpack.c.b16 %v408, %v407
  %v422 = vpack.c.b16 %v410, %v409
  %435 = vmatprep.subr.bf16.mxu0 0
  %436 = vmatpush1.bf16.msra.mxu0 %v418
  %437 = vmatprep.subr.bf16.mxu0 0
  %438 = vmatpush1.bf16.msra.mxu0 %v417
  %439 = vmatprep.subr.bf16.mxu0 0
  %440 = vmatpush1.bf16.msra.mxu0 %v416
  %441 = vmatprep.subr.bf16.mxu0 0
  %442 = vmatpush1.bf16.msra.mxu0 %v415
  %443 = vmatprep.subr.bf16.mxu0 0
  %444 = vmatpush1.bf16.msra.mxu0 %v414
  %445 = vmatprep.subr.bf16.mxu0 0
  %446 = vmatpush1.bf16.msra.mxu0 %v413
  %447 = vmatprep.subr.bf16.mxu0 0
  %448 = vmatpush1.bf16.msra.mxu0 %v412
  %449 = vmatprep.subr.bf16.mxu0 0
  %450 = vmatpush1.bf16.msra.mxu0 %v411
  %451 = vmatprep.subr.bf16.mxu0 0
  %452 = vmatpush2.bf16.msra.mxu0 0
  %453 = vmatprep.subr.bf16.mxu0 0
  %454 = vmatpush2.bf16.msra.mxu0 0
  %455 = vmatprep.subr.bf16.mxu0 0
  %456 = vmatpush2.bf16.msra.mxu0 0
  %457 = vmatprep.subr.bf16.mxu0 0
  %458 = vmatpush2.bf16.msra.mxu0 0
  %459 = vmatprep.subr.bf16.mxu0 0
  %460 = vmatpush2.bf16.msra.mxu0 %v422
  %461 = vmatprep.subr.bf16.mxu0 0
  %462 = vmatpush2.bf16.msra.mxu0 %v421
  %463 = vmatprep.subr.bf16.mxu0 0
  %464 = vmatpush2.bf16.msra.mxu0 %v420
  %465 = vmatprep.subr.bf16.mxu0 0
  %466 = vmatpush2.bf16.msra.mxu0 %v419
  %467 = vmatprep.mubr.bf16.mxu0 %v144
  %468 = vmatmul.mubr.bf16.gmra.mxu0 %v67
  %v469 = vpop.f32.mrf.mxu0
  %v470 = vadd.f32 0.0, %v469
  %v471 = vpop.f32.mrf.mxu0
  %v472 = vpop.f32.mrf.mxu0
  %v473 = vadd.f32 0.0, %v472
  %v474 = vpop.f32.mrf.mxu0
  %475 = vdwg.mxu0
  %v476 = vadd.f32 %v28, %v470
  %v477 = vadd.f32 %v28, %v473
  %s478 = scalar_lea.vmem %s1, 288
  %v479 = vld [vmem:[%s478] sm:$0xf]
  %v480 = vld [vmem:[%s478 + $0x4] sm:$0xf]
  %v481 = vld [vmem:[%s478 + $0x8] sm:$0xf]
  %v482 = vld [vmem:[%s478 + $0xc] sm:$0xf]
  %v483 = vld [vmem:[%s478 + $0x10] sm:$0xf]
  %v484 = vld [vmem:[%s478 + $0x14] sm:$0xf]
  %v485 = vld [vmem:[%s478 + $0x18] sm:$0xf]
  %v486 = vld [vmem:[%s478 + $0x1c] sm:$0xf]
  %v487 = vld [vmem:[%s478 + $0x20] sm:$0xf]
  %v488 = vld [vmem:[%s478 + $0x24] sm:$0xf]
  %v489 = vld [vmem:[%s478 + $0x28] sm:$0xf]
  %v490 = vld [vmem:[%s478 + $0x2c] sm:$0xf]
  %v491 = vld [vmem:[%s478 + $0x30] sm:$0xf]
  %v492 = vld [vmem:[%s478 + $0x34] sm:$0xf]
  %v493 = vld [vmem:[%s478 + $0x38] sm:$0xf]
  %v494 = vld [vmem:[%s478 + $0x3c] sm:$0xf]
  %v495 = vld [vmem:[%s478 + $0x40] sm:$0xf]
  %v496 = vld [vmem:[%s478 + $0x44] sm:$0xf]
  %v497 = vld [vmem:[%s478 + $0x48] sm:$0xf]
  %v498 = vld [vmem:[%s478 + $0x4c] sm:$0xf]
  %v499 = vld [vmem:[%s478 + $0x50] sm:$0xf]
  %v500 = vld [vmem:[%s478 + $0x54] sm:$0xf]
  %v501 = vld [vmem:[%s478 + $0x58] sm:$0xf]
  %v502 = vld [vmem:[%s478 + $0x5c] sm:$0xf]
  %v527 = vunpack.c.l.b16 %v479
  %v528 = vunpack.c.l.b16 %v480
  %v529 = vunpack.c.l.b16 %v481
  %v530 = vunpack.c.l.b16 %v482
  %v531 = vunpack.c.l.b16 %v483
  %v532 = vunpack.c.l.b16 %v484
  %v533 = vunpack.c.l.b16 %v485
  %v534 = vunpack.c.l.b16 %v486
  %v535 = vunpack.c.l.b16 %v487
  %v536 = vunpack.c.l.b16 %v488
  %v537 = vunpack.c.l.b16 %v489
  %v538 = vunpack.c.l.b16 %v490
  %v539 = vunpack.c.l.b16 %v491
  %v540 = vunpack.c.l.b16 %v492
  %v541 = vunpack.c.l.b16 %v493
  %v542 = vunpack.c.l.b16 %v494
  %v543 = vunpack.c.l.b16 %v495
  %v544 = vunpack.c.l.b16 %v496
  %v545 = vunpack.c.l.b16 %v497
  %v546 = vunpack.c.l.b16 %v498
  %v547 = vunpack.c.l.b16 %v499
  %v548 = vunpack.c.l.b16 %v500
  %v549 = vunpack.c.l.b16 %v501
  %v550 = vunpack.c.l.b16 %v502
  %v551 = vpack.c.b16 %v528, %v527
  %v552 = vpack.c.b16 %v530, %v529
  %v553 = vpack.c.b16 %v532, %v531
  %v554 = vpack.c.b16 %v534, %v533
  %v555 = vpack.c.b16 %v536, %v535
  %v556 = vpack.c.b16 %v538, %v537
  %v557 = vpack.c.b16 %v540, %v539
  %v558 = vpack.c.b16 %v542, %v541
  %v559 = vpack.c.b16 %v544, %v543
  %v560 = vpack.c.b16 %v546, %v545
  %v561 = vpack.c.b16 %v548, %v547
  %v562 = vpack.c.b16 %v550, %v549
  %575 = vmatprep.subr.bf16.mxu0 0
  %576 = vmatpush1.bf16.msra.mxu0 %v558
  %577 = vmatprep.subr.bf16.mxu0 0
  %578 = vmatpush1.bf16.msra.mxu0 %v557
  %579 = vmatprep.subr.bf16.mxu0 0
  %580 = vmatpush1.bf16.msra.mxu0 %v556
  %581 = vmatprep.subr.bf16.mxu0 0
  %582 = vmatpush1.bf16.msra.mxu0 %v555
  %583 = vmatprep.subr.bf16.mxu0 0
  %584 = vmatpush1.bf16.msra.mxu0 %v554
  %585 = vmatprep.subr.bf16.mxu0 0
  %586 = vmatpush1.bf16.msra.mxu0 %v553
  %587 = vmatprep.subr.bf16.mxu0 0
  %588 = vmatpush1.bf16.msra.mxu0 %v552
  %589 = vmatprep.subr.bf16.mxu0 0
  %590 = vmatpush1.bf16.msra.mxu0 %v551
  %591 = vmatprep.subr.bf16.mxu0 0
  %592 = vmatpush2.bf16.msra.mxu0 0
  %593 = vmatprep.subr.bf16.mxu0 0
  %594 = vmatpush2.bf16.msra.mxu0 0
  %595 = vmatprep.subr.bf16.mxu0 0
  %596 = vmatpush2.bf16.msra.mxu0 0
  %597 = vmatprep.subr.bf16.mxu0 0
  %598 = vmatpush2.bf16.msra.mxu0 0
  %599 = vmatprep.subr.bf16.mxu0 0
  %600 = vmatpush2.bf16.msra.mxu0 %v562
  %601 = vmatprep.subr.bf16.mxu0 0
  %602 = vmatpush2.bf16.msra.mxu0 %v561
  %603 = vmatprep.subr.bf16.mxu0 0
  %604 = vmatpush2.bf16.msra.mxu0 %v560
  %605 = vmatprep.subr.bf16.mxu0 0
  %606 = vmatpush2.bf16.msra.mxu0 %v559
  %607 = vmatprep.mubr.bf16.mxu0 %v144
  %608 = vmatmul.mubr.bf16.gmra.mxu0 %v67
  %v609 = vpop.f32.mrf.mxu0
  %v610 = vadd.f32 0.0, %v609
  %v611 = vpop.f32.mrf.mxu0
  %v612 = vpop.f32.mrf.mxu0
  %v613 = vadd.f32 0.0, %v612
  %v614 = vpop.f32.mrf.mxu0
  %615 = vdwg.mxu0
  %v616 = vrot.slane %v610, 1
  %v617 = vrot.slane %v613, 1
  %v618 = vsel %vm331, %v616, %v617
  %v619 = vsel %vm331, %v617, %v616
  %v620 = vadd.f32 %v476, %v618
  %v621 = vadd.f32 %v477, %v619
  %v622 = vmax.f32 %v620, 0.0
  %v623 = vmax.f32 %v621, 0.0
  %v624 = vpack.c.bf16 %v337, %v336
  %v625 = vpack.c.bf16 %v623, %v622
  %v626 = vld [vmem:[%s3] sm:$0xf]
  %v627 = vld [vmem:[%s3 + $0x4] sm:$0xf]
  %v628 = vld [vmem:[%s3 + $0x8] sm:$0xf]
  %v629 = vld [vmem:[%s3 + $0xc] sm:$0xf]
  %v630 = vld [vmem:[%s3 + $0x10] sm:$0xf]
  %v631 = vld [vmem:[%s3 + $0x14] sm:$0xf]
  %v632 = vld [vmem:[%s3 + $0x18] sm:$0xf]
  %v633 = vld [vmem:[%s3 + $0x1c] sm:$0xf]
  %v634 = vld [vmem:[%s3 + $0x20] sm:$0xf]
  %v635 = vld [vmem:[%s3 + $0x24] sm:$0xf]
  %v636 = vld [vmem:[%s3 + $0x28] sm:$0x3]
  %v648 = vunpack.c.l.b16 %v626
  %v649 = vunpack.c.l.b16 %v627
  %v650 = vunpack.c.l.b16 %v628
  %v651 = vunpack.c.l.b16 %v629
  %v652 = vunpack.c.l.b16 %v630
  %v653 = vunpack.c.l.b16 %v631
  %v654 = vunpack.c.l.b16 %v632
  %v655 = vunpack.c.l.b16 %v633
  %v656 = vunpack.c.l.b16 %v634
  %v657 = vunpack.c.l.b16 %v635
  %v658 = vunpack.c.l.b16 %v636
  %v659 = vpack.c.b16 %v649, %v648
  %v660 = vpack.c.b16 %v651, %v650
  %v661 = vpack.c.b16 %v653, %v652
  %v662 = vpack.c.b16 %v655, %v654
  %v663 = vpack.c.b16 %v657, %v656
  %v664 = vpack.c.b16 %v658, %v658
  %vm670 = vcmask 687104
  %v672 = vsel %vm670, %v624, 0
  %vm674 = vcmask 1041408
  %v676 = vsel %vm674, %v664, 0
  %678 = vmatprep.subr.bf16.mxu0 0
  %679 = vmatpush1.bf16.msra.mxu0 0
  %680 = vmatprep.subr.bf16.mxu0 0
  %681 = vmatpush1.bf16.msra.mxu0 0
  %682 = vmatprep.subr.bf16.mxu0 0
  %683 = vmatpush1.bf16.msra.mxu0 %v676
  %684 = vmatprep.subr.bf16.mxu0 0
  %685 = vmatpush1.bf16.msra.mxu0 %v663
  %686 = vmatprep.subr.bf16.mxu0 0
  %687 = vmatpush1.bf16.msra.mxu0 %v662
  %688 = vmatprep.subr.bf16.mxu0 0
  %689 = vmatpush1.bf16.msra.mxu0 %v661
  %690 = vmatprep.subr.bf16.mxu0 0
  %691 = vmatpush1.bf16.msra.mxu0 %v660
  %692 = vmatprep.subr.bf16.mxu0 0
  %693 = vmatpush1.bf16.msra.mxu0 %v659
  %694 = vmatprep.subr.bf16.mxu0 0
  %695 = vmatpush2.bf16.msra.mxu0 0
  %696 = vmatprep.subr.bf16.mxu0 0
  %697 = vmatpush2.bf16.msra.mxu0 0
  %698 = vmatprep.subr.bf16.mxu0 0
  %699 = vmatpush2.bf16.msra.mxu0 0
  %700 = vmatprep.subr.bf16.mxu0 0
  %701 = vmatpush2.bf16.msra.mxu0 0
  %702 = vmatprep.subr.bf16.mxu0 0
  %703 = vmatpush2.bf16.msra.mxu0 0
  %704 = vmatprep.subr.bf16.mxu0 0
  %705 = vmatpush2.bf16.msra.mxu0 0
  %706 = vmatprep.subr.bf16.mxu0 0
  %707 = vmatpush2.bf16.msra.mxu0 0
  %708 = vmatprep.subr.bf16.mxu0 0
  %709 = vmatpush2.bf16.msra.mxu0 0
  %710 = vmatprep.mubr.bf16.mxu0 0
  %711 = vmatmul.mubr.bf16.gmra.mxu0 %v672
  %v712 = vpop.f32.mrf.mxu0
  %v713 = vadd.f32 0.0, %v712
  %v714 = vpop.f32.mrf.mxu0
  %v715 = vpop.f32.mrf.mxu0
  %v716 = vadd.f32 0.0, %v715
  %v717 = vpop.f32.mrf.mxu0
  %718 = vdwg.mxu0
  %s719 = scalar_lea.vmem %s3, 44
  %v720 = vld [vmem:[%s719] sm:$0xf]
  %v721 = vld [vmem:[%s719 + $0x4] sm:$0xf]
  %v722 = vld [vmem:[%s719 + $0x8] sm:$0xf]
  %v723 = vld [vmem:[%s719 + $0xc] sm:$0xf]
  %v724 = vld [vmem:[%s719 + $0x10] sm:$0xf]
  %v725 = vld [vmem:[%s719 + $0x14] sm:$0xf]
  %v726 = vld [vmem:[%s719 + $0x18] sm:$0xf]
  %v727 = vld [vmem:[%s719 + $0x1c] sm:$0xf]
  %v728 = vld [vmem:[%s719 + $0x20] sm:$0xf]
  %v729 = vld [vmem:[%s719 + $0x24] sm:$0xf]
  %v730 = vld [vmem:[%s719 + $0x28] sm:$0x3]
  %s731 = scalar_lea.vmem %s3, 88
  %v732 = vld [vmem:[%s731] sm:$0xf]
  %v733 = vld [vmem:[%s731 + $0x4] sm:$0xf]
  %v734 = vld [vmem:[%s731 + $0x8] sm:$0xf]
  %v735 = vld [vmem:[%s731 + $0xc] sm:$0xf]
  %v736 = vld [vmem:[%s731 + $0x10] sm:$0xf]
  %v737 = vld [vmem:[%s731 + $0x14] sm:$0xf]
  %v738 = vld [vmem:[%s731 + $0x18] sm:$0xf]
  %v739 = vld [vmem:[%s731 + $0x1c] sm:$0xf]
  %v740 = vld [vmem:[%s731 + $0x20] sm:$0xf]
  %v741 = vld [vmem:[%s731 + $0x24] sm:$0xf]
  %v742 = vld [vmem:[%s731 + $0x28] sm:$0x3]
  %v754 = vunpack.c.l.b16 %v732
  %v755 = vunpack.c.l.b16 %v733
  %v756 = vunpack.c.l.b16 %v734
  %v757 = vunpack.c.l.b16 %v735
  %v758 = vunpack.c.l.b16 %v736
  %v759 = vunpack.c.l.b16 %v737
  %v760 = vunpack.c.l.b16 %v738
  %v761 = vunpack.c.l.b16 %v739
  %v762 = vunpack.c.l.b16 %v740
  %v763 = vunpack.c.l.b16 %v741
  %v764 = vunpack.c.l.b16 %v742
  %v765 = vpack.c.b16 %v755, %v754
  %v766 = vpack.c.b16 %v757, %v756
  %v767 = vpack.c.b16 %v759, %v758
  %v768 = vpack.c.b16 %v761, %v760
  %v769 = vpack.c.b16 %v763, %v762
  %v770 = vpack.c.b16 %v764, %v764
  %v777 = vsel %vm674, %v770, 0
  %779 = vmatprep.subr.bf16.mxu0 0
  %780 = vmatpush1.bf16.msra.mxu0 0
  %781 = vmatprep.subr.bf16.mxu0 0
  %782 = vmatpush1.bf16.msra.mxu0 0
  %783 = vmatprep.subr.bf16.mxu0 0
  %784 = vmatpush1.bf16.msra.mxu0 %v777
  %785 = vmatprep.subr.bf16.mxu0 0
  %786 = vmatpush1.bf16.msra.mxu0 %v769
  %787 = vmatprep.subr.bf16.mxu0 0
  %788 = vmatpush1.bf16.msra.mxu0 %v768
  %789 = vmatprep.subr.bf16.mxu0 0
  %790 = vmatpush1.bf16.msra.mxu0 %v767
  %791 = vmatprep.subr.bf16.mxu0 0
  %792 = vmatpush1.bf16.msra.mxu0 %v766
  %793 = vmatprep.subr.bf16.mxu0 0
  %794 = vmatpush1.bf16.msra.mxu0 %v765
  %795 = vmatprep.subr.bf16.mxu0 0
  %796 = vmatpush2.bf16.msra.mxu0 0
  %797 = vmatprep.subr.bf16.mxu0 0
  %798 = vmatpush2.bf16.msra.mxu0 0
  %799 = vmatprep.subr.bf16.mxu0 0
  %800 = vmatpush2.bf16.msra.mxu0 0
  %801 = vmatprep.subr.bf16.mxu0 0
  %802 = vmatpush2.bf16.msra.mxu0 0
  %803 = vmatprep.subr.bf16.mxu0 0
  %804 = vmatpush2.bf16.msra.mxu0 0
  %805 = vmatprep.subr.bf16.mxu0 0
  %806 = vmatpush2.bf16.msra.mxu0 0
  %807 = vmatprep.subr.bf16.mxu0 0
  %808 = vmatpush2.bf16.msra.mxu0 0
  %809 = vmatprep.subr.bf16.mxu0 0
  %810 = vmatpush2.bf16.msra.mxu0 0
  %811 = vmatprep.mubr.bf16.mxu0 0
  %812 = vmatmul.mubr.bf16.gmra.mxu0 %v672
  %v813 = vpop.f32.mrf.mxu0
  %v814 = vadd.f32 0.0, %v813
  %v815 = vpop.f32.mrf.mxu0
  %v816 = vpop.f32.mrf.mxu0
  %v817 = vadd.f32 0.0, %v816
  %v818 = vpop.f32.mrf.mxu0
  %819 = vdwg.mxu0
  %v821 = vsel %vm670, %v625, 0
  %823 = vmatprep.subr.bf16.mxu0 0
  %824 = vmatpush1.bf16.msra.mxu0 0
  %825 = vmatprep.subr.bf16.mxu0 0
  %826 = vmatpush1.bf16.msra.mxu0 0
  %827 = vmatprep.subr.bf16.mxu0 0
  %828 = vmatpush1.bf16.msra.mxu0 %v676
  %829 = vmatprep.subr.bf16.mxu0 0
  %830 = vmatpush1.bf16.msra.mxu0 %v663
  %831 = vmatprep.subr.bf16.mxu0 0
  %832 = vmatpush1.bf16.msra.mxu0 %v662
  %833 = vmatprep.subr.bf16.mxu0 0
  %834 = vmatpush1.bf16.msra.mxu0 %v661
  %835 = vmatprep.subr.bf16.mxu0 0
  %836 = vmatpush1.bf16.msra.mxu0 %v660
  %837 = vmatprep.subr.bf16.mxu0 0
  %838 = vmatpush1.bf16.msra.mxu0 %v659
  %839 = vmatprep.subr.bf16.mxu0 0
  %840 = vmatpush2.bf16.msra.mxu0 0
  %841 = vmatprep.subr.bf16.mxu0 0
  %842 = vmatpush2.bf16.msra.mxu0 0
  %843 = vmatprep.subr.bf16.mxu0 0
  %844 = vmatpush2.bf16.msra.mxu0 0
  %845 = vmatprep.subr.bf16.mxu0 0
  %846 = vmatpush2.bf16.msra.mxu0 0
  %847 = vmatprep.subr.bf16.mxu0 0
  %848 = vmatpush2.bf16.msra.mxu0 0
  %849 = vmatprep.subr.bf16.mxu0 0
  %850 = vmatpush2.bf16.msra.mxu0 0
  %851 = vmatprep.subr.bf16.mxu0 0
  %852 = vmatpush2.bf16.msra.mxu0 0
  %853 = vmatprep.subr.bf16.mxu0 0
  %854 = vmatpush2.bf16.msra.mxu0 0
  %855 = vmatprep.mubr.bf16.mxu0 0
  %856 = vmatmul.mubr.bf16.gmra.mxu0 %v821
  %v857 = vpop.f32.mrf.mxu0
  %v858 = vadd.f32 0.0, %v857
  %v859 = vpop.f32.mrf.mxu0
  %v860 = vpop.f32.mrf.mxu0
  %v861 = vadd.f32 0.0, %v860
  %v862 = vpop.f32.mrf.mxu0
  %863 = vdwg.mxu0
  %v875 = vunpack.c.l.b16 %v720
  %v876 = vunpack.c.l.b16 %v721
  %v877 = vunpack.c.l.b16 %v722
  %v878 = vunpack.c.l.b16 %v723
  %v879 = vunpack.c.l.b16 %v724
  %v880 = vunpack.c.l.b16 %v725
  %v881 = vunpack.c.l.b16 %v726
  %v882 = vunpack.c.l.b16 %v727
  %v883 = vunpack.c.l.b16 %v728
  %v884 = vunpack.c.l.b16 %v729
  %v885 = vunpack.c.l.b16 %v730
  %v886 = vpack.c.b16 %v876, %v875
  %v887 = vpack.c.b16 %v878, %v877
  %v888 = vpack.c.b16 %v880, %v879
  %v889 = vpack.c.b16 %v882, %v881
  %v890 = vpack.c.b16 %v884, %v883
  %v891 = vpack.c.b16 %v885, %v885
  %v898 = vsel %vm674, %v891, 0
  %900 = vmatprep.subr.bf16.mxu0 0
  %901 = vmatpush1.bf16.msra.mxu0 0
  %902 = vmatprep.subr.bf16.mxu0 0
  %903 = vmatpush1.bf16.msra.mxu0 0
  %904 = vmatprep.subr.bf16.mxu0 0
  %905 = vmatpush1.bf16.msra.mxu0 %v898
  %906 = vmatprep.subr.bf16.mxu0 0
  %907 = vmatpush1.bf16.msra.mxu0 %v890
  %908 = vmatprep.subr.bf16.mxu0 0
  %909 = vmatpush1.bf16.msra.mxu0 %v889
  %910 = vmatprep.subr.bf16.mxu0 0
  %911 = vmatpush1.bf16.msra.mxu0 %v888
  %912 = vmatprep.subr.bf16.mxu0 0
  %913 = vmatpush1.bf16.msra.mxu0 %v887
  %914 = vmatprep.subr.bf16.mxu0 0
  %915 = vmatpush1.bf16.msra.mxu0 %v886
  %916 = vmatprep.subr.bf16.mxu0 0
  %917 = vmatpush2.bf16.msra.mxu0 0
  %918 = vmatprep.subr.bf16.mxu0 0
  %919 = vmatpush2.bf16.msra.mxu0 0
  %920 = vmatprep.subr.bf16.mxu0 0
  %921 = vmatpush2.bf16.msra.mxu0 0
  %922 = vmatprep.subr.bf16.mxu0 0
  %923 = vmatpush2.bf16.msra.mxu0 0
  %924 = vmatprep.subr.bf16.mxu0 0
  %925 = vmatpush2.bf16.msra.mxu0 0
  %926 = vmatprep.subr.bf16.mxu0 0
  %927 = vmatpush2.bf16.msra.mxu0 0
  %928 = vmatprep.subr.bf16.mxu0 0
  %929 = vmatpush2.bf16.msra.mxu0 0
  %930 = vmatprep.subr.bf16.mxu0 0
  %931 = vmatpush2.bf16.msra.mxu0 0
  %932 = vmatprep.mubr.bf16.mxu0 0
  %933 = vmatmul.mubr.bf16.gmra.mxu0 %v821
  %v934 = vpop.f32.mrf.mxu0
  %v935 = vadd.f32 0.0, %v934
  %v936 = vpop.f32.mrf.mxu0
  %v937 = vpop.f32.mrf.mxu0
  %v938 = vadd.f32 0.0, %v937
  %v939 = vpop.f32.mrf.mxu0
  %940 = vdwg.mxu0
  %941 = vmatprep.subr.bf16.mxu0 0
  %942 = vmatpush1.bf16.msra.mxu0 0
  %943 = vmatprep.subr.bf16.mxu0 0
  %944 = vmatpush1.bf16.msra.mxu0 0
  %945 = vmatprep.subr.bf16.mxu0 0
  %946 = vmatpush1.bf16.msra.mxu0 %v777
  %947 = vmatprep.subr.bf16.mxu0 0
  %948 = vmatpush1.bf16.msra.mxu0 %v769
  %949 = vmatprep.subr.bf16.mxu0 0
  %950 = vmatpush1.bf16.msra.mxu0 %v768
  %951 = vmatprep.subr.bf16.mxu0 0
  %952 = vmatpush1.bf16.msra.mxu0 %v767
  %953 = vmatprep.subr.bf16.mxu0 0
  %954 = vmatpush1.bf16.msra.mxu0 %v766
  %955 = vmatprep.subr.bf16.mxu0 0
  %956 = vmatpush1.bf16.msra.mxu0 %v765
  %957 = vmatprep.subr.bf16.mxu0 0
  %958 = vmatpush2.bf16.msra.mxu0 0
  %959 = vmatprep.subr.bf16.mxu0 0
  %960 = vmatpush2.bf16.msra.mxu0 0
  %961 = vmatprep.subr.bf16.mxu0 0
  %962 = vmatpush2.bf16.msra.mxu0 0
  %963 = vmatprep.subr.bf16.mxu0 0
  %964 = vmatpush2.bf16.msra.mxu0 0
  %965 = vmatprep.subr.bf16.mxu0 0
  %966 = vmatpush2.bf16.msra.mxu0 0
  %967 = vmatprep.subr.bf16.mxu0 0
  %968 = vmatpush2.bf16.msra.mxu0 0
  %969 = vmatprep.subr.bf16.mxu0 0
  %970 = vmatpush2.bf16.msra.mxu0 0
  %971 = vmatprep.subr.bf16.mxu0 0
  %972 = vmatpush2.bf16.msra.mxu0 0
  %973 = vmatprep.mubr.bf16.mxu0 0
  %974 = vmatmul.mubr.bf16.gmra.mxu0 %v821
  %v975 = vpop.f32.mrf.mxu0
  %v976 = vadd.f32 0.0, %v975
  %v977 = vpop.f32.mrf.mxu0
  %v978 = vpop.f32.mrf.mxu0
  %v979 = vadd.f32 0.0, %v978
  %v980 = vpop.f32.mrf.mxu0
  %981 = vdwg.mxu0
  %v982 = vadd.f32 %v35, %v713
  %v983 = vadd.f32 %v35, %v716
  %v984 = vadd.f32 %v982, %v935
  %v985 = vadd.f32 %v983, %v938
  %v986 = vrot.slane %v814, 1
  %v987 = vrot.slane %v817, 1
  %v988 = vsel %vm331, %v986, %v987
  %v989 = vsel %vm331, %v987, %v986
  %v990 = vadd.f32 %v984, %v988
  %v991 = vadd.f32 %v985, %v989
  %v992 = vmax.f32 %v990, 0.0
  %v993 = vmax.f32 %v991, 0.0
  %v994 = vadd.f32 %v35, %v858
  %v995 = vadd.f32 %v35, %v861
  %996 = vmatprep.subr.bf16.mxu0 0
  %997 = vmatpush1.bf16.msra.mxu0 0
  %998 = vmatprep.subr.bf16.mxu0 0
  %999 = vmatpush1.bf16.msra.mxu0 0
  %1000 = vmatprep.subr.bf16.mxu0 0
  %1001 = vmatpush1.bf16.msra.mxu0 %v898
  %1002 = vmatprep.subr.bf16.mxu0 0
  %1003 = vmatpush1.bf16.msra.mxu0 %v890
  %1004 = vmatprep.subr.bf16.mxu0 0
  %1005 = vmatpush1.bf16.msra.mxu0 %v889
  %1006 = vmatprep.subr.bf16.mxu0 0
  %1007 = vmatpush1.bf16.msra.mxu0 %v888
  %1008 = vmatprep.subr.bf16.mxu0 0
  %1009 = vmatpush1.bf16.msra.mxu0 %v887
  %1010 = vmatprep.subr.bf16.mxu0 0
  %1011 = vmatpush1.bf16.msra.mxu0 %v886
  %1012 = vmatprep.subr.bf16.mxu0 0
  %1013 = vmatpush2.bf16.msra.mxu0 0
  %1014 = vmatprep.subr.bf16.mxu0 0
  %1015 = vmatpush2.bf16.msra.mxu0 0
  %1016 = vmatprep.subr.bf16.mxu0 0
  %1017 = vmatpush2.bf16.msra.mxu0 0
  %1018 = vmatprep.subr.bf16.mxu0 0
  %1019 = vmatpush2.bf16.msra.mxu0 0
  %1020 = vmatprep.subr.bf16.mxu0 0
  %1021 = vmatpush2.bf16.msra.mxu0 0
  %1022 = vmatprep.subr.bf16.mxu0 0
  %1023 = vmatpush2.bf16.msra.mxu0 0
  %1024 = vmatprep.subr.bf16.mxu0 0
  %1025 = vmatpush2.bf16.msra.mxu0 0
  %1026 = vmatprep.subr.bf16.mxu0 0
  %1027 = vmatpush2.bf16.msra.mxu0 0
  %1028 = vmatprep.mubr.bf16.mxu0 0
  %1029 = vmatmul.mubr.bf16.gmra.mxu0 %v672
  %v1030 = vpop.f32.mrf.mxu0
  %v1031 = vadd.f32 %v976, %v1030
  %v1032 = vpop.f32.mrf.mxu0
  %v1033 = vpop.f32.mrf.mxu0
  %v1034 = vadd.f32 %v979, %v1033
  %v1035 = vpop.f32.mrf.mxu0
  %1036 = vdwg.mxu0
  %v1037 = vrot.slane %v1031, 1
  %v1038 = vrot.slane %v1034, 1
  %v1039 = vsel %vm331, %v1037, %v1038
  %v1040 = vsel %vm331, %v1038, %v1037
  %v1041 = vadd.f32 %v994, %v1039
  %v1042 = vadd.f32 %v995, %v1040
  %v1043 = vmax.f32 %v1041, 0.0
  %v1044 = vmax.f32 %v1042, 0.0
  %vm1045 = vcmask 392192
  %1046 = vst.msk [vmem:[%s5] sm:$0xff] %vm1045, %v992
  %1047 = vst.msk [vmem:[%s5 + $0x8] sm:$0xff] %vm1045, %v993
  %s1048 = scalar_lea.vmem %s5, 16
  %1049 = vst.msk [vmem:[%s1048] sm:$0xff] %vm1045, %v1043
  %1050 = vst.msk [vmem:[%s1048 + $0x8] sm:$0xff] %vm1045, %v1044
  // Predicated region
  $region22: #{up_forward.1} parent=0 // pred_check
    _
  $region23: #{up_forward.1} parent=0 // pred_check_branch
    %1052 = sbr.rel (0) target = $region25
  $region24: #{up_forward.1} parent=0 // pred_region
    _
  $region25: #{up_forward.1} parent=0 // pred_fallthru
    _
  // Predicated region
  $region26: #{up_forward.1} parent=0 // pred_check
    _
  $region27: #{up_forward.1} parent=0 // pred_check_branch
    %1054 = sbr.rel (0) target = $region29
  $region28: #{up_forward.1} parent=0 // pred_region
    _
  $region29: #{up_forward.1} parent=0 // pred_fallthru
    _

</llo_original>
